<compile_context>
chip_gen: v7x
topology: tpu7x:2x2x1
jax: 0.10.0
libtpu: 0.0.40
codegen_flags: <defaults>
</compile_context>

<pallas_src>
import functools

import jax
import jax.numpy as jnp
from jax.experimental import pallas as pl
from jax.experimental.pallas import tpu as pltpu


def _round_up(x, m):
    return (x + m - 1) // m * m


# ----------------------------------------------------------------------------
# Kernel 1: conv-as-matmul, resident weights, fused bias / LeakyReLU / BN stats
# ----------------------------------------------------------------------------

def _conv_kernel(a_ref, b_ref, bias_ref, *rest, tk, apply_act, slope,
                 m_total, emit_stats):
    if emit_stats:
        o_ref, stats_ref, acc_ref = rest
    else:
        o_ref, acc_ref = rest
        stats_ref = None

    i = pl.program_id(0)
    k = pl.program_id(1)

    @pl.when(k == 0)
    def _():
        acc_ref[...] = jnp.zeros_like(acc_ref)

    koff = pl.multiple_of(k * tk, tk)
    acc_ref[...] += jnp.dot(a_ref[...], b_ref[pl.ds(koff, tk), :],
                            preferred_element_type=jnp.float32)

    @pl.when(k == pl.num_programs(1) - 1)
    def _():
        y = acc_ref[...] + bias_ref[...]
        if apply_act:
            y = jnp.where(y >= 0, y, y * slope)
        o_ref[...] = y.astype(o_ref.dtype)
        if emit_stats:
            tm = acc_ref.shape[0]
            row = i * tm + jax.lax.broadcasted_iota(jnp.int32, (tm, 1), 0)
            ym = jnp.where(row < m_total, y, 0.0)   # mask padded M rows
            part = jnp.concatenate(
                [jnp.sum(ym, axis=0, keepdims=True),
                 jnp.sum(ym * ym, axis=0, keepdims=True)], axis=0)
            stats_ref[...] = part.reshape(stats_ref.shape)


def pallas_conv(patches, wmat, bias, cout, *, out_dtype, apply_act,
                emit_stats, slope=0.2):
    """(M, K) @ (K, cout) + bias [+ LeakyReLU] [+ per-tile BN partials].

    Returns y_pad (Mp, Np) in out_dtype (padded rows/lanes are zero) and,
    when emit_stats, an (nm, 2, Np) f32 per-tile sum / sum-of-squares slab.
    """
    M, K = patches.shape
    Np = _round_up(cout, 128)
    Kp = _round_up(K, 128)
    if Kp <= 2048:
        tk = Kp                    # single K step; full weight fits in one dot
    else:
        tk = 2048
        Kp = _round_up(Kp, tk)
    tm = min(512, _round_up(M, 16))
    Mp = _round_up(M, tm)
    nm, nk = Mp // tm, Kp // tk

    a = jnp.pad(patches.astype(jnp.bfloat16), ((0, Mp - M), (0, Kp - K)))
    b = jnp.pad(wmat.astype(jnp.bfloat16), ((0, Kp - K), (0, Np - cout)))
    bb = jnp.pad(bias.astype(jnp.float32), (0, Np - cout)).reshape(1, Np)

    in_specs = [
        pl.BlockSpec((tm, tk), lambda i, k: (i, k)),    # A tiles, streamed
        pl.BlockSpec((Kp, Np), lambda i, k: (0, 0)),    # resident weight slab
        pl.BlockSpec((1, Np), lambda i, k: (0, 0)),     # bias row
    ]
    y_shape = jax.ShapeDtypeStruct((Mp, Np), out_dtype)
    y_spec = pl.BlockSpec((tm, Np), lambda i, k: (i, 0))
    if emit_stats:
        out_shape = (y_shape, jax.ShapeDtypeStruct((nm, 2, Np), jnp.float32))
        out_specs = (y_spec, pl.BlockSpec((1, 2, Np), lambda i, k: (i, 0, 0)))
    else:
        out_shape, out_specs = y_shape, y_spec

    fn = pl.pallas_call(
        functools.partial(_conv_kernel, tk=tk, apply_act=apply_act,
                          slope=slope, m_total=M, emit_stats=emit_stats),
        grid=(nm, nk),
        in_specs=in_specs,
        out_specs=out_specs,
        out_shape=out_shape,
        scratch_shapes=[pltpu.VMEM((tm, Np), jnp.float32)],
        compiler_params=pltpu.CompilerParams(
            dimension_semantics=("parallel", "arbitrary"),
            vmem_limit_bytes=48 * 1024 * 1024),
    )
    res = fn(a, b, bb)
    if emit_stats:
        return res[0], res[1]
    return res, None


# ----------------------------------------------------------------------------
# Kernel 2: BatchNorm normalize + affine + fused LeakyReLU (bf16 in/out)
# ----------------------------------------------------------------------------

def _bn_apply_kernel(y_ref, stats_ref, g_ref, b_ref, o_ref, *, slope):
    y = y_ref[...].astype(jnp.float32)
    mean = stats_ref[0:1, :]
    inv = stats_ref[1:2, :]
    z = (y - mean) * (inv * g_ref[...]) + b_ref[...]
    o_ref[...] = jnp.where(z >= 0, z, z * slope).astype(o_ref.dtype)


def pallas_bn_lrelu(y_pad, stats, gamma, beta, cout, *, slope=0.2):
    Mp, Np = y_pad.shape
    tm = min(512, Mp)                      # Mp is a multiple of the conv tm
    gp = jnp.pad(gamma.astype(jnp.float32), (0, Np - cout)).reshape(1, Np)
    bp = jnp.pad(beta.astype(jnp.float32), (0, Np - cout)).reshape(1, Np)
    return pl.pallas_call(
        functools.partial(_bn_apply_kernel, slope=slope),
        grid=(Mp // tm,),
        in_specs=[pl.BlockSpec((tm, Np), lambda i: (i, 0)),
                  pl.BlockSpec((2, Np), lambda i: (0, 0)),
                  pl.BlockSpec((1, Np), lambda i: (0, 0)),
                  pl.BlockSpec((1, Np), lambda i: (0, 0))],
        out_specs=pl.BlockSpec((tm, Np), lambda i: (i, 0)),
        out_shape=jax.ShapeDtypeStruct((Mp, Np), jnp.bfloat16),
        compiler_params=pltpu.CompilerParams(
            dimension_semantics=("parallel",),
            vmem_limit_bytes=48 * 1024 * 1024),
    )(y_pad, stats, gp, bp)


# ----------------------------------------------------------------------------
# JAX glue: im2col (bf16), BN finalization, layer wrappers, init, forward
# ----------------------------------------------------------------------------

def _im2col(x_nhwc, k, stride, pad):
    # zero padding matches nn.Conv2d default padding_mode='zeros'
    xp = jnp.pad(x_nhwc, ((0, 0), (pad, pad), (pad, pad), (0, 0)))
    N, Hp, Wp, C = xp.shape
    Ho = (Hp - k) // stride + 1
    Wo = (Wp - k) // stride + 1
    cols = []
    for di in range(k):
        for dj in range(k):
            cols.append(xp[:, di:di + stride * (Ho - 1) + 1:stride,
                           dj:dj + stride * (Wo - 1) + 1:stride, :])
    patches = jnp.stack(cols, axis=3)                 # (N, Ho, Wo, k*k, C)
    # TODO(synk): patch matrix is still materialised by XLA (k^2/stride^2 HBM
    # blow-up, though now bf16); a fully fused kernel would DMA padded NHWC
    # row-bands (memory_space=pl.ANY) and assemble the taps in VMEM.
    return patches.reshape(N * Ho * Wo, k * k * C), (N, Ho, Wo)


def _bn_stats_from_partials(partials, m_total, eps=1e-5):
    # Tiny (nm, 2, Np) -> (2, Np) finalization in f32 (plain XLA, negligible).
    sums = jnp.sum(partials, axis=0)
    mean = sums[0] / m_total
    var = jnp.maximum(sums[1] / m_total - mean * mean, 0.0)   # biased var
    inv = jax.lax.rsqrt(var + eps)
    return jnp.stack([mean, inv])                             # (2, Np) f32


def _conv_layer(x_nhwc, w, bias, *, stride, apply_act, emit_stats, out_dtype):
    cout, cin, k, _ = w.shape
    patches, (n, ho, wo) = _im2col(x_nhwc, k, stride, 1)
    wmat = jnp.transpose(w, (2, 3, 1, 0)).reshape(k * k * cin, cout)
    if bias is None:
        bias = jnp.zeros((cout,), jnp.float32)
    y_pad, partials = pallas_conv(patches, wmat, bias, cout,
                                  out_dtype=out_dtype, apply_act=apply_act,
                                  emit_stats=emit_stats)
    return y_pad, partials, (n, ho, wo), patches.shape[0]


def init_patchgan(key, in_channels, start_filters, layers=3):
    keys = jax.random.split(key, layers + 4)

    def conv_w(k_, cin, cout):
        return 0.02 * jax.random.normal(k_, (cout, cin, 4, 4), jnp.float32)

    params = {
        'conv0': {'w': conv_w(keys[0], in_channels, start_filters),
                  'b': 0.02 * jax.random.normal(keys[1], (start_filters,),
                                                jnp.float32)},
        'mid': [],
    }
    filters = start_filters
    max_filters = start_filters * 8
    for n in range(layers):
        nf = min(filters * 2, max_filters)
        stride = 1 if n == layers - 1 else 2
        params['mid'].append({
            'w': conv_w(keys[2 + n], filters, nf),
            'stride': stride,
            'gamma': jnp.ones((nf,), jnp.float32),   # BatchNorm2d defaults
            'beta': jnp.zeros((nf,), jnp.float32),
        })
        filters = nf
    params['convN'] = {'w': conv_w(keys[-2], filters, 1),
                       'b': 0.02 * jax.random.normal(keys[-1], (1,),
                                                     jnp.float32)}
    return params


def patchgan_forward(params, x_nchw):
    # NCHW -> NHWC, bf16 activations between layers (f32 math inside kernels).
    x = jnp.transpose(x_nchw, (0, 2, 3, 1)).astype(jnp.bfloat16)

    # Conv(in, sf, k4 s2 p1, bias) + LeakyReLU(0.2) fused in the epilogue.
    w, b = params['conv0']['w'], params['conv0']['b']
    y_pad, _, (n, ho, wo), m = _conv_layer(
        x, w, b, stride=2, apply_act=True, emit_stats=False,
        out_dtype=jnp.bfloat16)
    x = y_pad[:m, :w.shape[0]].reshape(n, ho, wo, w.shape[0])

    # [Conv(no bias) -> BatchNorm (training-mode batch stats) -> LeakyReLU]
    for layer in params['mid']:
        w = layer['w']
        cout = w.shape[0]
        y_pad, partials, (n, ho, wo), m = _conv_layer(
            x, w, None, stride=layer['stride'], apply_act=False,
            emit_stats=True, out_dtype=jnp.bfloat16)
        stats = _bn_stats_from_partials(partials, m)
        z_pad = pallas_bn_lrelu(y_pad, stats, layer['gamma'], layer['beta'],
                                cout)
        x = z_pad[:m, :cout].reshape(n, ho, wo, cout)

    # Conv(filters, 1, k4 s1 p1, bias), no activation, f32 result.
    w, b = params['convN']['w'], params['convN']['b']
    y_pad, _, (n, ho, wo), m = _conv_layer(
        x, w, b, stride=1, apply_act=False, emit_stats=False,
        out_dtype=jnp.float32)
    out = y_pad[:m, :1].reshape(n, ho, wo, 1)
    return jnp.transpose(out, (0, 3, 1, 2))                    # NHWC -> NCHW


if __name__ == "__main__":
    key = jax.random.PRNGKey(0)
    kx, kp = jax.random.split(key)

    # PatchGAN(in_channels=3, start_filters=8, layers=3) on a 2x3x32x32 input.
    # (Spatial 32 is the smallest power-of-two for which the default 3-layer
    # stack keeps a positive output size: 32->16->8->4->3->2.)
    N, C, H, W = 2, 3, 32, 32
    x = jax.random.normal(kx, (N, C, H, W), jnp.float32)
    params = init_patchgan(kp, in_channels=C, start_filters=8, layers=3)

    fwd = jax.jit(lambda inp: patchgan_forward(params, inp))
    out = jax.block_until_ready(fwd(x))

    assert out.shape == (N, 1, 2, 2), out.shape
    assert bool(jnp.all(jnp.isfinite(out)))
    print("KERNEL_OK")
</pallas_src>

<mosaic_0001>
module attributes {stable_mosaic.version = 11 : i64} {
  func.func @_conv_kernel(%arg0: i32, %arg1: i32, %arg2: memref<512x128xbf16, #tpu.memory_space<vmem>>, %arg3: memref<128x128xbf16, #tpu.memory_space<vmem>>, %arg4: memref<1x128xf32, #tpu.memory_space<vmem>>, %arg5: memref<512x128xbf16, #tpu.memory_space<vmem>>, %arg6: memref<512x128xf32, #tpu.memory_space<vmem>>) attributes {dimension_semantics = [#tpu.dimension_semantics<parallel>, #tpu.dimension_semantics<arbitrary>], iteration_bounds = array<i64: 1, 1>, scalar_prefetch = 0 : i64, scratch_operands = 1 : i64, tpu.core_type = #tpu.core_type<tc>, window_params = [{transform_indices = @transform_0, window_bounds = array<i64: 512, 128>}, {pipeline_mode = #tpu.pipeline_mode<synchronous>, transform_indices = @transform_1, window_bounds = array<i64: 128, 128>}, {pipeline_mode = #tpu.pipeline_mode<synchronous>, transform_indices = @transform_2, window_bounds = array<i64: 1, 128>}, {transform_indices = @transform_3, window_bounds = array<i64: 512, 128>}]} {
    %c0_i32 = arith.constant 0 : i32
    %0 = arith.cmpi eq, %arg1, %c0_i32 : i32
    %1 = arith.extui %0 : i1 to i32
    %c0_i32_0 = arith.constant 0 : i32
    %2 = arith.cmpi ne, %1, %c0_i32_0 : i32
    scf.if %2 {
      %cst_9 = arith.constant 0.000000e+00 : f32
      %15 = vector.broadcast %cst_9 : f32 to vector<512x128xf32>
      %c0_10 = arith.constant 0 : index
      %c0_11 = arith.constant 0 : index
      %16 = vector.load %arg6[%c0_10, %c0_11] : memref<512x128xf32, #tpu.memory_space<vmem>>, vector<512x128xf32>
      tpu.vector_store %arg6[%c0_10, %c0_11], %15 {strides = array<i32>} : memref<512x128xf32, #tpu.memory_space<vmem>>, vector<512x128xf32>,
    } else {
    }
    %c128_i32 = arith.constant 128 : i32
    %3 = arith.muli %arg1, %c128_i32 : i32
    %4 = tpu.assume_multiple %3, 128 : i32
    %c0 = arith.constant 0 : index
    %c0_1 = arith.constant 0 : index
    %5 = vector.load %arg6[%c0, %c0_1] : memref<512x128xf32, #tpu.memory_space<vmem>>, vector<512x128xf32>
    %c0_2 = arith.constant 0 : index
    %c0_3 = arith.constant 0 : index
    %6 = vector.load %arg2[%c0_2, %c0_3] : memref<512x128xbf16, #tpu.memory_space<vmem>>, vector<512x128xbf16>
    %7 = arith.index_cast %4 : i32 to index
    %c0_4 = arith.constant 0 : index
    %8 = vector.load %arg3[%7, %c0_4] : memref<128x128xbf16, #tpu.memory_space<vmem>>, vector<128x128xbf16>
    %cst = arith.constant dense<0.000000e+00> : vector<512x128xf32>
    %9 = tpu.matmul %6, %8, %cst {dimension_numbers = #tpu.dot_dimension_numbers<[1], [0], [0], [1], [0, 0, 1, 1], [], []>} : vector<512x128xbf16>, vector<128x128xbf16>, vector<512x128xf32> -> vector<512x128xf32>
    %10 = arith.addf %5, %9 : vector<512x128xf32>
    %c0_5 = arith.constant 0 : index
    %c0_6 = arith.constant 0 : index
    %11 = vector.load %arg6[%c0_5, %c0_6] : memref<512x128xf32, #tpu.memory_space<vmem>>, vector<512x128xf32>
    tpu.vector_store %arg6[%c0_5, %c0_6], %10 {strides = array<i32>} : memref<512x128xf32, #tpu.memory_space<vmem>>, vector<512x128xf32>,
    %c0_i32_7 = arith.constant 0 : i32
    %12 = arith.cmpi eq, %arg1, %c0_i32_7 : i32
    %13 = arith.extui %12 : i1 to i32
    %c0_i32_8 = arith.constant 0 : i32
    %14 = arith.cmpi ne, %13, %c0_i32_8 : i32
    scf.if %14 {
      %c0_9 = arith.constant 0 : index
      %c0_10 = arith.constant 0 : index
      %15 = vector.load %arg6[%c0_9, %c0_10] : memref<512x128xf32, #tpu.memory_space<vmem>>, vector<512x128xf32>
      %c0_11 = arith.constant 0 : index
      %c0_12 = arith.constant 0 : index
      %16 = vector.load %arg4[%c0_11, %c0_12] : memref<1x128xf32, #tpu.memory_space<vmem>>, vector<1x128xf32>
      %17 = vector.broadcast %16 : vector<1x128xf32> to vector<512x128xf32>
      %18 = arith.addf %15, %17 : vector<512x128xf32>
      %cst_13 = arith.constant 0.000000e+00 : f32
      %19 = vector.broadcast %cst_13 : f32 to vector<512x128xf32>
      %20 = arith.cmpf oge, %18, %19 : vector<512x128xf32>
      %cst_14 = arith.constant 2.000000e-01 : f32
      %21 = vector.broadcast %cst_14 : f32 to vector<512x128xf32>
      %22 = arith.mulf %18, %21 : vector<512x128xf32>
      %23 = arith.select %20, %18, %22 : vector<512x128xi1>, vector<512x128xf32>
      %24 = arith.truncf %23 : vector<512x128xf32> to vector<512x128xbf16>
      %c0_15 = arith.constant 0 : index
      %c0_16 = arith.constant 0 : index
      %25 = vector.load %arg5[%c0_15, %c0_16] : memref<512x128xbf16, #tpu.memory_space<vmem>>, vector<512x128xbf16>
      tpu.vector_store %arg5[%c0_15, %c0_16], %24 {strides = array<i32>} : memref<512x128xbf16, #tpu.memory_space<vmem>>, vector<512x128xbf16>,
    } else {
    }
    return
  }
  func.func @transform_0(%arg0: i32, %arg1: i32) -> (i32, i32) {
    %c0_i32 = arith.constant 0 : i32
    return %arg0, %arg1 : i32, i32
  }
  func.func @transform_1(%arg0: i32, %arg1: i32) -> (i32, i32) {
    %c0_i32 = arith.constant 0 : i32
    %c0_i32_0 = arith.constant 0 : i32
    %c0_i32_1 = arith.constant 0 : i32
    return %c0_i32, %c0_i32_0 : i32, i32
  }
  func.func @transform_2(%arg0: i32, %arg1: i32) -> (i32, i32) {
    %c0_i32 = arith.constant 0 : i32
    %c0_i32_0 = arith.constant 0 : i32
    %c0_i32_1 = arith.constant 0 : i32
    return %c0_i32, %c0_i32_0 : i32, i32
  }
  func.func @transform_3(%arg0: i32, %arg1: i32) -> (i32, i32) {
    %c0_i32 = arith.constant 0 : i32
    %c0_i32_0 = arith.constant 0 : i32
    return %arg0, %c0_i32 : i32, i32
  }
}

module attributes {stable_mosaic.version = 11 : i64} {
  func.func @_conv_kernel(%arg0: i32, %arg1: i32, %arg2: memref<128x128xbf16, #tpu.memory_space<vmem>>, %arg3: memref<128x128xbf16, #tpu.memory_space<vmem>>, %arg4: memref<1x128xf32, #tpu.memory_space<vmem>>, %arg5: memref<128x128xbf16, #tpu.memory_space<vmem>>, %arg6: memref<1x2x128xf32, #tpu.memory_space<vmem>>, %arg7: memref<128x128xf32, #tpu.memory_space<vmem>>) attributes {dimension_semantics = [#tpu.dimension_semantics<parallel>, #tpu.dimension_semantics<arbitrary>], iteration_bounds = array<i64: 1, 1>, scalar_prefetch = 0 : i64, scratch_operands = 1 : i64, tpu.core_type = #tpu.core_type<tc>, window_params = [{transform_indices = @transform_0, window_bounds = array<i64: 128, 128>}, {pipeline_mode = #tpu.pipeline_mode<synchronous>, transform_indices = @transform_1, window_bounds = array<i64: 128, 128>}, {pipeline_mode = #tpu.pipeline_mode<synchronous>, transform_indices = @transform_2, window_bounds = array<i64: 1, 128>}, {transform_indices = @transform_3, window_bounds = array<i64: 128, 128>}, {transform_indices = @transform_4, window_bounds = array<i64: 1, 2, 128>}]} {
    %c0_i32 = arith.constant 0 : i32
    %0 = arith.cmpi eq, %arg1, %c0_i32 : i32
    %1 = arith.extui %0 : i1 to i32
    %c0_i32_0 = arith.constant 0 : i32
    %2 = arith.cmpi ne, %1, %c0_i32_0 : i32
    scf.if %2 {
      %cst_9 = arith.constant 0.000000e+00 : f32
      %15 = vector.broadcast %cst_9 : f32 to vector<128x128xf32>
      %c0_10 = arith.constant 0 : index
      %c0_11 = arith.constant 0 : index
      %16 = vector.load %arg7[%c0_10, %c0_11] : memref<128x128xf32, #tpu.memory_space<vmem>>, vector<128x128xf32>
      tpu.vector_store %arg7[%c0_10, %c0_11], %15 {strides = array<i32>} : memref<128x128xf32, #tpu.memory_space<vmem>>, vector<128x128xf32>,
    } else {
    }
    %c128_i32 = arith.constant 128 : i32
    %3 = arith.muli %arg1, %c128_i32 : i32
    %4 = tpu.assume_multiple %3, 128 : i32
    %c0 = arith.constant 0 : index
    %c0_1 = arith.constant 0 : index
    %5 = vector.load %arg7[%c0, %c0_1] : memref<128x128xf32, #tpu.memory_space<vmem>>, vector<128x128xf32>
    %c0_2 = arith.constant 0 : index
    %c0_3 = arith.constant 0 : index
    %6 = vector.load %arg2[%c0_2, %c0_3] : memref<128x128xbf16, #tpu.memory_space<vmem>>, vector<128x128xbf16>
    %7 = arith.index_cast %4 : i32 to index
    %c0_4 = arith.constant 0 : index
    %8 = vector.load %arg3[%7, %c0_4] : memref<128x128xbf16, #tpu.memory_space<vmem>>, vector<128x128xbf16>
    %cst = arith.constant dense<0.000000e+00> : vector<128x128xf32>
    %9 = tpu.matmul %6, %8, %cst {dimension_numbers = #tpu.dot_dimension_numbers<[1], [0], [0], [1], [0, 0, 1, 1], [], []>} : vector<128x128xbf16>, vector<128x128xbf16>, vector<128x128xf32> -> vector<128x128xf32>
    %10 = arith.addf %5, %9 : vector<128x128xf32>
    %c0_5 = arith.constant 0 : index
    %c0_6 = arith.constant 0 : index
    %11 = vector.load %arg7[%c0_5, %c0_6] : memref<128x128xf32, #tpu.memory_space<vmem>>, vector<128x128xf32>
    tpu.vector_store %arg7[%c0_5, %c0_6], %10 {strides = array<i32>} : memref<128x128xf32, #tpu.memory_space<vmem>>, vector<128x128xf32>,
    %c0_i32_7 = arith.constant 0 : i32
    %12 = arith.cmpi eq, %arg1, %c0_i32_7 : i32
    %13 = arith.extui %12 : i1 to i32
    %c0_i32_8 = arith.constant 0 : i32
    %14 = arith.cmpi ne, %13, %c0_i32_8 : i32
    scf.if %14 {
      %c0_9 = arith.constant 0 : index
      %c0_10 = arith.constant 0 : index
      %15 = vector.load %arg7[%c0_9, %c0_10] : memref<128x128xf32, #tpu.memory_space<vmem>>, vector<128x128xf32>
      %c0_11 = arith.constant 0 : index
      %c0_12 = arith.constant 0 : index
      %16 = vector.load %arg4[%c0_11, %c0_12] : memref<1x128xf32, #tpu.memory_space<vmem>>, vector<1x128xf32>
      %17 = vector.broadcast %16 : vector<1x128xf32> to vector<128x128xf32>
      %18 = arith.addf %15, %17 : vector<128x128xf32>
      %19 = arith.truncf %18 : vector<128x128xf32> to vector<128x128xbf16>
      %c0_13 = arith.constant 0 : index
      %c0_14 = arith.constant 0 : index
      %20 = vector.load %arg5[%c0_13, %c0_14] : memref<128x128xbf16, #tpu.memory_space<vmem>>, vector<128x128xbf16>
      tpu.vector_store %arg5[%c0_13, %c0_14], %19 {strides = array<i32>} : memref<128x128xbf16, #tpu.memory_space<vmem>>, vector<128x128xbf16>,
      %c128_i32_15 = arith.constant 128 : i32
      %21 = arith.muli %arg0, %c128_i32_15 : i32
      %22 = tpu.iota {dimensions = array<i32: 0>} : vector<128x1xi32>
      %23 = vector.broadcast %21 : i32 to vector<128x1xi32>
      %24 = arith.addi %23, %22 : vector<128x1xi32>
      %c128_i32_16 = arith.constant 128 : i32
      %25 = vector.broadcast %c128_i32_16 : i32 to vector<128x1xi32>
      %26 = arith.cmpi slt, %24, %25 : vector<128x1xi32>
      %cst_17 = arith.constant 0.000000e+00 : f32
      %27 = vector.shape_cast %26 : vector<128x1xi1> to vector<128x1xi1>
      %28 = vector.broadcast %27 : vector<128x1xi1> to vector<128x128xi1>
      %29 = vector.broadcast %cst_17 : f32 to vector<128x128xf32>
      %30 = arith.select %28, %18, %29 : vector<128x128xi1>, vector<128x128xf32>
      %cst_18 = arith.constant dense<0.000000e+00> : vector<128xf32>
      %31 = vector.multi_reduction <add>, %30, %cst_18 [0] : vector<128x128xf32> to vector<128xf32>
      %32 = vector.shape_cast %31 : vector<128xf32> to vector<1x128xf32>
      %33 = arith.mulf %30, %30 : vector<128x128xf32>
      %cst_19 = arith.constant dense<0.000000e+00> : vector<128xf32>
      %34 = vector.multi_reduction <add>, %33, %cst_19 [0] : vector<128x128xf32> to vector<128xf32>
      %35 = vector.shape_cast %34 : vector<128xf32> to vector<1x128xf32>
      %36 = tpu.concatenate %32, %35 in 0 : vector<1x128xf32>, vector<1x128xf32> -> vector<2x128xf32>
      %37 = vector.shape_cast %36 : vector<2x128xf32> to vector<1x2x128xf32>
      %c0_20 = arith.constant 0 : index
      %c0_21 = arith.constant 0 : index
      %c0_22 = arith.constant 0 : index
      %38 = vector.load %arg6[%c0_20, %c0_21, %c0_22] : memref<1x2x128xf32, #tpu.memory_space<vmem>>, vector<1x2x128xf32>
      tpu.vector_store %arg6[%c0_20, %c0_21, %c0_22], %37 {strides = array<i32>} : memref<1x2x128xf32, #tpu.memory_space<vmem>>, vector<1x2x128xf32>,
    } else {
    }
    return
  }
  func.func @transform_0(%arg0: i32, %arg1: i32) -> (i32, i32) {
    %c0_i32 = arith.constant 0 : i32
    return %arg0, %arg1 : i32, i32
  }
  func.func @transform_1(%arg0: i32, %arg1: i32) -> (i32, i32) {
    %c0_i32 = arith.constant 0 : i32
    %c0_i32_0 = arith.constant 0 : i32
    %c0_i32_1 = arith.constant 0 : i32
    return %c0_i32, %c0_i32_0 : i32, i32
  }
  func.func @transform_2(%arg0: i32, %arg1: i32) -> (i32, i32) {
    %c0_i32 = arith.constant 0 : i32
    %c0_i32_0 = arith.constant 0 : i32
    %c0_i32_1 = arith.constant 0 : i32
    return %c0_i32, %c0_i32_0 : i32, i32
  }
  func.func @transform_3(%arg0: i32, %arg1: i32) -> (i32, i32) {
    %c0_i32 = arith.constant 0 : i32
    %c0_i32_0 = arith.constant 0 : i32
    return %arg0, %c0_i32 : i32, i32
  }
  func.func @transform_4(%arg0: i32, %arg1: i32) -> (i32, i32, i32) {
    %c0_i32 = arith.constant 0 : i32
    %c0_i32_0 = arith.constant 0 : i32
    %c0_i32_1 = arith.constant 0 : i32
    return %arg0, %c0_i32, %c0_i32_0 : i32, i32, i32
  }
}

module attributes {stable_mosaic.version = 11 : i64} {
  func.func @_bn_apply_kernel(%arg0: i32, %arg1: memref<128x128xbf16, #tpu.memory_space<vmem>>, %arg2: memref<2x128xf32, #tpu.memory_space<vmem>>, %arg3: memref<1x128xf32, #tpu.memory_space<vmem>>, %arg4: memref<1x128xf32, #tpu.memory_space<vmem>>, %arg5: memref<128x128xbf16, #tpu.memory_space<vmem>>) attributes {dimension_semantics = [#tpu.dimension_semantics<parallel>], iteration_bounds = array<i64: 1>, scalar_prefetch = 0 : i64, scratch_operands = 0 : i64, tpu.core_type = #tpu.core_type<tc>, window_params = [{transform_indices = @transform_0, window_bounds = array<i64: 128, 128>}, {pipeline_mode = #tpu.pipeline_mode<synchronous>, transform_indices = @transform_1, window_bounds = array<i64: 2, 128>}, {pipeline_mode = #tpu.pipeline_mode<synchronous>, transform_indices = @transform_2, window_bounds = array<i64: 1, 128>}, {pipeline_mode = #tpu.pipeline_mode<synchronous>, transform_indices = @transform_3, window_bounds = array<i64: 1, 128>}, {transform_indices = @transform_4, window_bounds = array<i64: 128, 128>}]} {
    %c0 = arith.constant 0 : index
    %c0_0 = arith.constant 0 : index
    %0 = vector.load %arg1[%c0, %c0_0] : memref<128x128xbf16, #tpu.memory_space<vmem>>, vector<128x128xbf16>
    %1 = arith.extf %0 : vector<128x128xbf16> to vector<128x128xf32>
    %c0_1 = arith.constant 0 : index
    %c0_2 = arith.constant 0 : index
    %2 = vector.load %arg2[%c0_1, %c0_2] : memref<2x128xf32, #tpu.memory_space<vmem>>, vector<1x128xf32>
    %c1 = arith.constant 1 : index
    %c0_3 = arith.constant 0 : index
    %3 = vector.load %arg2[%c1, %c0_3] : memref<2x128xf32, #tpu.memory_space<vmem>>, vector<1x128xf32>
    %4 = vector.broadcast %2 : vector<1x128xf32> to vector<128x128xf32>
    %5 = arith.subf %1, %4 : vector<128x128xf32>
    %c0_4 = arith.constant 0 : index
    %c0_5 = arith.constant 0 : index
    %6 = vector.load %arg3[%c0_4, %c0_5] : memref<1x128xf32, #tpu.memory_space<vmem>>, vector<1x128xf32>
    %7 = arith.mulf %3, %6 : vector<1x128xf32>
    %8 = vector.broadcast %7 : vector<1x128xf32> to vector<128x128xf32>
    %9 = arith.mulf %5, %8 : vector<128x128xf32>
    %c0_6 = arith.constant 0 : index
    %c0_7 = arith.constant 0 : index
    %10 = vector.load %arg4[%c0_6, %c0_7] : memref<1x128xf32, #tpu.memory_space<vmem>>, vector<1x128xf32>
    %11 = vector.broadcast %10 : vector<1x128xf32> to vector<128x128xf32>
    %12 = arith.addf %9, %11 : vector<128x128xf32>
    %cst = arith.constant 0.000000e+00 : f32
    %13 = vector.broadcast %cst : f32 to vector<128x128xf32>
    %14 = arith.cmpf oge, %12, %13 : vector<128x128xf32>
    %cst_8 = arith.constant 2.000000e-01 : f32
    %15 = vector.broadcast %cst_8 : f32 to vector<128x128xf32>
    %16 = arith.mulf %12, %15 : vector<128x128xf32>
    %17 = arith.select %14, %12, %16 : vector<128x128xi1>, vector<128x128xf32>
    %18 = arith.truncf %17 : vector<128x128xf32> to vector<128x128xbf16>
    %c0_9 = arith.constant 0 : index
    %c0_10 = arith.constant 0 : index
    %19 = vector.load %arg5[%c0_9, %c0_10] : memref<128x128xbf16, #tpu.memory_space<vmem>>, vector<128x128xbf16>
    tpu.vector_store %arg5[%c0_9, %c0_10], %18 {strides = array<i32>} : memref<128x128xbf16, #tpu.memory_space<vmem>>, vector<128x128xbf16>,
    return
  }
  func.func @transform_0(%arg0: i32) -> (i32, i32) {
    %c0_i32 = arith.constant 0 : i32
    %c0_i32_0 = arith.constant 0 : i32
    return %arg0, %c0_i32 : i32, i32
  }
  func.func @transform_1(%arg0: i32) -> (i32, i32) {
    %c0_i32 = arith.constant 0 : i32
    %c0_i32_0 = arith.constant 0 : i32
    %c0_i32_1 = arith.constant 0 : i32
    return %c0_i32, %c0_i32_0 : i32, i32
  }
  func.func @transform_2(%arg0: i32) -> (i32, i32) {
    %c0_i32 = arith.constant 0 : i32
    %c0_i32_0 = arith.constant 0 : i32
    %c0_i32_1 = arith.constant 0 : i32
    return %c0_i32, %c0_i32_0 : i32, i32
  }
  func.func @transform_3(%arg0: i32) -> (i32, i32) {
    %c0_i32 = arith.constant 0 : i32
    %c0_i32_0 = arith.constant 0 : i32
    %c0_i32_1 = arith.constant 0 : i32
    return %c0_i32, %c0_i32_0 : i32, i32
  }
  func.func @transform_4(%arg0: i32) -> (i32, i32) {
    %c0_i32 = arith.constant 0 : i32
    %c0_i32_0 = arith.constant 0 : i32
    return %arg0, %c0_i32 : i32, i32
  }
}

module attributes {stable_mosaic.version = 11 : i64} {
  func.func @_conv_kernel(%arg0: i32, %arg1: i32, %arg2: memref<32x256xbf16, #tpu.memory_space<vmem>>, %arg3: memref<256x128xbf16, #tpu.memory_space<vmem>>, %arg4: memref<1x128xf32, #tpu.memory_space<vmem>>, %arg5: memref<32x128xbf16, #tpu.memory_space<vmem>>, %arg6: memref<1x2x128xf32, #tpu.memory_space<vmem>>, %arg7: memref<32x128xf32, #tpu.memory_space<vmem>>) attributes {dimension_semantics = [#tpu.dimension_semantics<parallel>, #tpu.dimension_semantics<arbitrary>], iteration_bounds = array<i64: 1, 1>, scalar_prefetch = 0 : i64, scratch_operands = 1 : i64, tpu.core_type = #tpu.core_type<tc>, window_params = [{transform_indices = @transform_0, window_bounds = array<i64: 32, 256>}, {pipeline_mode = #tpu.pipeline_mode<synchronous>, transform_indices = @transform_1, window_bounds = array<i64: 256, 128>}, {pipeline_mode = #tpu.pipeline_mode<synchronous>, transform_indices = @transform_2, window_bounds = array<i64: 1, 128>}, {transform_indices = @transform_3, window_bounds = array<i64: 32, 128>}, {transform_indices = @transform_4, window_bounds = array<i64: 1, 2, 128>}]} {
    %c0_i32 = arith.constant 0 : i32
    %0 = arith.cmpi eq, %arg1, %c0_i32 : i32
    %1 = arith.extui %0 : i1 to i32
    %c0_i32_0 = arith.constant 0 : i32
    %2 = arith.cmpi ne, %1, %c0_i32_0 : i32
    scf.if %2 {
      %cst_9 = arith.constant 0.000000e+00 : f32
      %15 = vector.broadcast %cst_9 : f32 to vector<32x128xf32>
      %c0_10 = arith.constant 0 : index
      %c0_11 = arith.constant 0 : index
      %16 = vector.load %arg7[%c0_10, %c0_11] : memref<32x128xf32, #tpu.memory_space<vmem>>, vector<32x128xf32>
      tpu.vector_store %arg7[%c0_10, %c0_11], %15 {strides = array<i32>} : memref<32x128xf32, #tpu.memory_space<vmem>>, vector<32x128xf32>,
    } else {
    }
    %c256_i32 = arith.constant 256 : i32
    %3 = arith.muli %arg1, %c256_i32 : i32
    %4 = tpu.assume_multiple %3, 256 : i32
    %c0 = arith.constant 0 : index
    %c0_1 = arith.constant 0 : index
    %5 = vector.load %arg7[%c0, %c0_1] : memref<32x128xf32, #tpu.memory_space<vmem>>, vector<32x128xf32>
    %c0_2 = arith.constant 0 : index
    %c0_3 = arith.constant 0 : index
    %6 = vector.load %arg2[%c0_2, %c0_3] : memref<32x256xbf16, #tpu.memory_space<vmem>>, vector<32x256xbf16>
    %7 = arith.index_cast %4 : i32 to index
    %c0_4 = arith.constant 0 : index
    %8 = vector.load %arg3[%7, %c0_4] : memref<256x128xbf16, #tpu.memory_space<vmem>>, vector<256x128xbf16>
    %cst = arith.constant dense<0.000000e+00> : vector<32x128xf32>
    %9 = tpu.matmul %6, %8, %cst {dimension_numbers = #tpu.dot_dimension_numbers<[1], [0], [0], [1], [0, 0, 1, 1], [], []>} : vector<32x256xbf16>, vector<256x128xbf16>, vector<32x128xf32> -> vector<32x128xf32>
    %10 = arith.addf %5, %9 : vector<32x128xf32>
    %c0_5 = arith.constant 0 : index
    %c0_6 = arith.constant 0 : index
    %11 = vector.load %arg7[%c0_5, %c0_6] : memref<32x128xf32, #tpu.memory_space<vmem>>, vector<32x128xf32>
    tpu.vector_store %arg7[%c0_5, %c0_6], %10 {strides = array<i32>} : memref<32x128xf32, #tpu.memory_space<vmem>>, vector<32x128xf32>,
    %c0_i32_7 = arith.constant 0 : i32
    %12 = arith.cmpi eq, %arg1, %c0_i32_7 : i32
    %13 = arith.extui %12 : i1 to i32
    %c0_i32_8 = arith.constant 0 : i32
    %14 = arith.cmpi ne, %13, %c0_i32_8 : i32
    scf.if %14 {
      %c0_9 = arith.constant 0 : index
      %c0_10 = arith.constant 0 : index
      %15 = vector.load %arg7[%c0_9, %c0_10] : memref<32x128xf32, #tpu.memory_space<vmem>>, vector<32x128xf32>
      %c0_11 = arith.constant 0 : index
      %c0_12 = arith.constant 0 : index
      %16 = vector.load %arg4[%c0_11, %c0_12] : memref<1x128xf32, #tpu.memory_space<vmem>>, vector<1x128xf32>
      %17 = vector.broadcast %16 : vector<1x128xf32> to vector<32x128xf32>
      %18 = arith.addf %15, %17 : vector<32x128xf32>
      %19 = arith.truncf %18 : vector<32x128xf32> to vector<32x128xbf16>
      %c0_13 = arith.constant 0 : index
      %c0_14 = arith.constant 0 : index
      %20 = vector.load %arg5[%c0_13, %c0_14] : memref<32x128xbf16, #tpu.memory_space<vmem>>, vector<32x128xbf16>
      tpu.vector_store %arg5[%c0_13, %c0_14], %19 {strides = array<i32>} : memref<32x128xbf16, #tpu.memory_space<vmem>>, vector<32x128xbf16>,
      %c32_i32 = arith.constant 32 : i32
      %21 = arith.muli %arg0, %c32_i32 : i32
      %22 = tpu.iota {dimensions = array<i32: 0>} : vector<32x1xi32>
      %23 = vector.broadcast %21 : i32 to vector<32x1xi32>
      %24 = arith.addi %23, %22 : vector<32x1xi32>
      %c32_i32_15 = arith.constant 32 : i32
      %25 = vector.broadcast %c32_i32_15 : i32 to vector<32x1xi32>
      %26 = arith.cmpi slt, %24, %25 : vector<32x1xi32>
      %cst_16 = arith.constant 0.000000e+00 : f32
      %27 = vector.shape_cast %26 : vector<32x1xi1> to vector<32x1xi1>
      %28 = vector.broadcast %27 : vector<32x1xi1> to vector<32x128xi1>
      %29 = vector.broadcast %cst_16 : f32 to vector<32x128xf32>
      %30 = arith.select %28, %18, %29 : vector<32x128xi1>, vector<32x128xf32>
      %cst_17 = arith.constant dense<0.000000e+00> : vector<128xf32>
      %31 = vector.multi_reduction <add>, %30, %cst_17 [0] : vector<32x128xf32> to vector<128xf32>
      %32 = vector.shape_cast %31 : vector<128xf32> to vector<1x128xf32>
      %33 = arith.mulf %30, %30 : vector<32x128xf32>
      %cst_18 = arith.constant dense<0.000000e+00> : vector<128xf32>
      %34 = vector.multi_reduction <add>, %33, %cst_18 [0] : vector<32x128xf32> to vector<128xf32>
      %35 = vector.shape_cast %34 : vector<128xf32> to vector<1x128xf32>
      %36 = tpu.concatenate %32, %35 in 0 : vector<1x128xf32>, vector<1x128xf32> -> vector<2x128xf32>
      %37 = vector.shape_cast %36 : vector<2x128xf32> to vector<1x2x128xf32>
      %c0_19 = arith.constant 0 : index
      %c0_20 = arith.constant 0 : index
      %c0_21 = arith.constant 0 : index
      %38 = vector.load %arg6[%c0_19, %c0_20, %c0_21] : memref<1x2x128xf32, #tpu.memory_space<vmem>>, vector<1x2x128xf32>
      tpu.vector_store %arg6[%c0_19, %c0_20, %c0_21], %37 {strides = array<i32>} : memref<1x2x128xf32, #tpu.memory_space<vmem>>, vector<1x2x128xf32>,
    } else {
    }
    return
  }
  func.func @transform_0(%arg0: i32, %arg1: i32) -> (i32, i32) {
    %c0_i32 = arith.constant 0 : i32
    return %arg0, %arg1 : i32, i32
  }
  func.func @transform_1(%arg0: i32, %arg1: i32) -> (i32, i32) {
    %c0_i32 = arith.constant 0 : i32
    %c0_i32_0 = arith.constant 0 : i32
    %c0_i32_1 = arith.constant 0 : i32
    return %c0_i32, %c0_i32_0 : i32, i32
  }
  func.func @transform_2(%arg0: i32, %arg1: i32) -> (i32, i32) {
    %c0_i32 = arith.constant 0 : i32
    %c0_i32_0 = arith.constant 0 : i32
    %c0_i32_1 = arith.constant 0 : i32
    return %c0_i32, %c0_i32_0 : i32, i32
  }
  func.func @transform_3(%arg0: i32, %arg1: i32) -> (i32, i32) {
    %c0_i32 = arith.constant 0 : i32
    %c0_i32_0 = arith.constant 0 : i32
    return %arg0, %c0_i32 : i32, i32
  }
  func.func @transform_4(%arg0: i32, %arg1: i32) -> (i32, i32, i32) {
    %c0_i32 = arith.constant 0 : i32
    %c0_i32_0 = arith.constant 0 : i32
    %c0_i32_1 = arith.constant 0 : i32
    return %arg0, %c0_i32, %c0_i32_0 : i32, i32, i32
  }
}

module attributes {stable_mosaic.version = 11 : i64} {
  func.func @_bn_apply_kernel(%arg0: i32, %arg1: memref<32x128xbf16, #tpu.memory_space<vmem>>, %arg2: memref<2x128xf32, #tpu.memory_space<vmem>>, %arg3: memref<1x128xf32, #tpu.memory_space<vmem>>, %arg4: memref<1x128xf32, #tpu.memory_space<vmem>>, %arg5: memref<32x128xbf16, #tpu.memory_space<vmem>>) attributes {dimension_semantics = [#tpu.dimension_semantics<parallel>], iteration_bounds = array<i64: 1>, scalar_prefetch = 0 : i64, scratch_operands = 0 : i64, tpu.core_type = #tpu.core_type<tc>, window_params = [{transform_indices = @transform_0, window_bounds = array<i64: 32, 128>}, {pipeline_mode = #tpu.pipeline_mode<synchronous>, transform_indices = @transform_1, window_bounds = array<i64: 2, 128>}, {pipeline_mode = #tpu.pipeline_mode<synchronous>, transform_indices = @transform_2, window_bounds = array<i64: 1, 128>}, {pipeline_mode = #tpu.pipeline_mode<synchronous>, transform_indices = @transform_3, window_bounds = array<i64: 1, 128>}, {transform_indices = @transform_4, window_bounds = array<i64: 32, 128>}]} {
    %c0 = arith.constant 0 : index
    %c0_0 = arith.constant 0 : index
    %0 = vector.load %arg1[%c0, %c0_0] : memref<32x128xbf16, #tpu.memory_space<vmem>>, vector<32x128xbf16>
    %1 = arith.extf %0 : vector<32x128xbf16> to vector<32x128xf32>
    %c0_1 = arith.constant 0 : index
    %c0_2 = arith.constant 0 : index
    %2 = vector.load %arg2[%c0_1, %c0_2] : memref<2x128xf32, #tpu.memory_space<vmem>>, vector<1x128xf32>
    %c1 = arith.constant 1 : index
    %c0_3 = arith.constant 0 : index
    %3 = vector.load %arg2[%c1, %c0_3] : memref<2x128xf32, #tpu.memory_space<vmem>>, vector<1x128xf32>
    %4 = vector.broadcast %2 : vector<1x128xf32> to vector<32x128xf32>
    %5 = arith.subf %1, %4 : vector<32x128xf32>
    %c0_4 = arith.constant 0 : index
    %c0_5 = arith.constant 0 : index
    %6 = vector.load %arg3[%c0_4, %c0_5] : memref<1x128xf32, #tpu.memory_space<vmem>>, vector<1x128xf32>
    %7 = arith.mulf %3, %6 : vector<1x128xf32>
    %8 = vector.broadcast %7 : vector<1x128xf32> to vector<32x128xf32>
    %9 = arith.mulf %5, %8 : vector<32x128xf32>
    %c0_6 = arith.constant 0 : index
    %c0_7 = arith.constant 0 : index
    %10 = vector.load %arg4[%c0_6, %c0_7] : memref<1x128xf32, #tpu.memory_space<vmem>>, vector<1x128xf32>
    %11 = vector.broadcast %10 : vector<1x128xf32> to vector<32x128xf32>
    %12 = arith.addf %9, %11 : vector<32x128xf32>
    %cst = arith.constant 0.000000e+00 : f32
    %13 = vector.broadcast %cst : f32 to vector<32x128xf32>
    %14 = arith.cmpf oge, %12, %13 : vector<32x128xf32>
    %cst_8 = arith.constant 2.000000e-01 : f32
    %15 = vector.broadcast %cst_8 : f32 to vector<32x128xf32>
    %16 = arith.mulf %12, %15 : vector<32x128xf32>
    %17 = arith.select %14, %12, %16 : vector<32x128xi1>, vector<32x128xf32>
    %18 = arith.truncf %17 : vector<32x128xf32> to vector<32x128xbf16>
    %c0_9 = arith.constant 0 : index
    %c0_10 = arith.constant 0 : index
    %19 = vector.load %arg5[%c0_9, %c0_10] : memref<32x128xbf16, #tpu.memory_space<vmem>>, vector<32x128xbf16>
    tpu.vector_store %arg5[%c0_9, %c0_10], %18 {strides = array<i32>} : memref<32x128xbf16, #tpu.memory_space<vmem>>, vector<32x128xbf16>,
    return
  }
  func.func @transform_0(%arg0: i32) -> (i32, i32) {
    %c0_i32 = arith.constant 0 : i32
    %c0_i32_0 = arith.constant 0 : i32
    return %arg0, %c0_i32 : i32, i32
  }
  func.func @transform_1(%arg0: i32) -> (i32, i32) {
    %c0_i32 = arith.constant 0 : i32
    %c0_i32_0 = arith.constant 0 : i32
    %c0_i32_1 = arith.constant 0 : i32
    return %c0_i32, %c0_i32_0 : i32, i32
  }
  func.func @transform_2(%arg0: i32) -> (i32, i32) {
    %c0_i32 = arith.constant 0 : i32
    %c0_i32_0 = arith.constant 0 : i32
    %c0_i32_1 = arith.constant 0 : i32
    return %c0_i32, %c0_i32_0 : i32, i32
  }
  func.func @transform_3(%arg0: i32) -> (i32, i32) {
    %c0_i32 = arith.constant 0 : i32
    %c0_i32_0 = arith.constant 0 : i32
    %c0_i32_1 = arith.constant 0 : i32
    return %c0_i32, %c0_i32_0 : i32, i32
  }
  func.func @transform_4(%arg0: i32) -> (i32, i32) {
    %c0_i32 = arith.constant 0 : i32
    %c0_i32_0 = arith.constant 0 : i32
    return %arg0, %c0_i32 : i32, i32
  }
}

module attributes {stable_mosaic.version = 11 : i64} {
  func.func @_conv_kernel(%arg0: i32, %arg1: i32, %arg2: memref<32x512xbf16, #tpu.memory_space<vmem>>, %arg3: memref<512x128xbf16, #tpu.memory_space<vmem>>, %arg4: memref<1x128xf32, #tpu.memory_space<vmem>>, %arg5: memref<32x128xbf16, #tpu.memory_space<vmem>>, %arg6: memref<1x2x128xf32, #tpu.memory_space<vmem>>, %arg7: memref<32x128xf32, #tpu.memory_space<vmem>>) attributes {dimension_semantics = [#tpu.dimension_semantics<parallel>, #tpu.dimension_semantics<arbitrary>], iteration_bounds = array<i64: 1, 1>, scalar_prefetch = 0 : i64, scratch_operands = 1 : i64, tpu.core_type = #tpu.core_type<tc>, window_params = [{transform_indices = @transform_0, window_bounds = array<i64: 32, 512>}, {pipeline_mode = #tpu.pipeline_mode<synchronous>, transform_indices = @transform_1, window_bounds = array<i64: 512, 128>}, {pipeline_mode = #tpu.pipeline_mode<synchronous>, transform_indices = @transform_2, window_bounds = array<i64: 1, 128>}, {transform_indices = @transform_3, window_bounds = array<i64: 32, 128>}, {transform_indices = @transform_4, window_bounds = array<i64: 1, 2, 128>}]} {
    %c0_i32 = arith.constant 0 : i32
    %0 = arith.cmpi eq, %arg1, %c0_i32 : i32
    %1 = arith.extui %0 : i1 to i32
    %c0_i32_0 = arith.constant 0 : i32
    %2 = arith.cmpi ne, %1, %c0_i32_0 : i32
    scf.if %2 {
      %cst_9 = arith.constant 0.000000e+00 : f32
      %15 = vector.broadcast %cst_9 : f32 to vector<32x128xf32>
      %c0_10 = arith.constant 0 : index
      %c0_11 = arith.constant 0 : index
      %16 = vector.load %arg7[%c0_10, %c0_11] : memref<32x128xf32, #tpu.memory_space<vmem>>, vector<32x128xf32>
      tpu.vector_store %arg7[%c0_10, %c0_11], %15 {strides = array<i32>} : memref<32x128xf32, #tpu.memory_space<vmem>>, vector<32x128xf32>,
    } else {
    }
    %c512_i32 = arith.constant 512 : i32
    %3 = arith.muli %arg1, %c512_i32 : i32
    %4 = tpu.assume_multiple %3, 512 : i32
    %c0 = arith.constant 0 : index
    %c0_1 = arith.constant 0 : index
    %5 = vector.load %arg7[%c0, %c0_1] : memref<32x128xf32, #tpu.memory_space<vmem>>, vector<32x128xf32>
    %c0_2 = arith.constant 0 : index
    %c0_3 = arith.constant 0 : index
    %6 = vector.load %arg2[%c0_2, %c0_3] : memref<32x512xbf16, #tpu.memory_space<vmem>>, vector<32x512xbf16>
    %7 = arith.index_cast %4 : i32 to index
    %c0_4 = arith.constant 0 : index
    %8 = vector.load %arg3[%7, %c0_4] : memref<512x128xbf16, #tpu.memory_space<vmem>>, vector<512x128xbf16>
    %cst = arith.constant dense<0.000000e+00> : vector<32x128xf32>
    %9 = tpu.matmul %6, %8, %cst {dimension_numbers = #tpu.dot_dimension_numbers<[1], [0], [0], [1], [0, 0, 1, 1], [], []>} : vector<32x512xbf16>, vector<512x128xbf16>, vector<32x128xf32> -> vector<32x128xf32>
    %10 = arith.addf %5, %9 : vector<32x128xf32>
    %c0_5 = arith.constant 0 : index
    %c0_6 = arith.constant 0 : index
    %11 = vector.load %arg7[%c0_5, %c0_6] : memref<32x128xf32, #tpu.memory_space<vmem>>, vector<32x128xf32>
    tpu.vector_store %arg7[%c0_5, %c0_6], %10 {strides = array<i32>} : memref<32x128xf32, #tpu.memory_space<vmem>>, vector<32x128xf32>,
    %c0_i32_7 = arith.constant 0 : i32
    %12 = arith.cmpi eq, %arg1, %c0_i32_7 : i32
    %13 = arith.extui %12 : i1 to i32
    %c0_i32_8 = arith.constant 0 : i32
    %14 = arith.cmpi ne, %13, %c0_i32_8 : i32
    scf.if %14 {
      %c0_9 = arith.constant 0 : index
      %c0_10 = arith.constant 0 : index
      %15 = vector.load %arg7[%c0_9, %c0_10] : memref<32x128xf32, #tpu.memory_space<vmem>>, vector<32x128xf32>
      %c0_11 = arith.constant 0 : index
      %c0_12 = arith.constant 0 : index
      %16 = vector.load %arg4[%c0_11, %c0_12] : memref<1x128xf32, #tpu.memory_space<vmem>>, vector<1x128xf32>
      %17 = vector.broadcast %16 : vector<1x128xf32> to vector<32x128xf32>
      %18 = arith.addf %15, %17 : vector<32x128xf32>
      %19 = arith.truncf %18 : vector<32x128xf32> to vector<32x128xbf16>
      %c0_13 = arith.constant 0 : index
      %c0_14 = arith.constant 0 : index
      %20 = vector.load %arg5[%c0_13, %c0_14] : memref<32x128xbf16, #tpu.memory_space<vmem>>, vector<32x128xbf16>
      tpu.vector_store %arg5[%c0_13, %c0_14], %19 {strides = array<i32>} : memref<32x128xbf16, #tpu.memory_space<vmem>>, vector<32x128xbf16>,
      %c32_i32 = arith.constant 32 : i32
      %21 = arith.muli %arg0, %c32_i32 : i32
      %22 = tpu.iota {dimensions = array<i32: 0>} : vector<32x1xi32>
      %23 = vector.broadcast %21 : i32 to vector<32x1xi32>
      %24 = arith.addi %23, %22 : vector<32x1xi32>
      %c18_i32 = arith.constant 18 : i32
      %25 = vector.broadcast %c18_i32 : i32 to vector<32x1xi32>
      %26 = arith.cmpi slt, %24, %25 : vector<32x1xi32>
      %cst_15 = arith.constant 0.000000e+00 : f32
      %27 = vector.shape_cast %26 : vector<32x1xi1> to vector<32x1xi1>
      %28 = vector.broadcast %27 : vector<32x1xi1> to vector<32x128xi1>
      %29 = vector.broadcast %cst_15 : f32 to vector<32x128xf32>
      %30 = arith.select %28, %18, %29 : vector<32x128xi1>, vector<32x128xf32>
      %cst_16 = arith.constant dense<0.000000e+00> : vector<128xf32>
      %31 = vector.multi_reduction <add>, %30, %cst_16 [0] : vector<32x128xf32> to vector<128xf32>
      %32 = vector.shape_cast %31 : vector<128xf32> to vector<1x128xf32>
      %33 = arith.mulf %30, %30 : vector<32x128xf32>
      %cst_17 = arith.constant dense<0.000000e+00> : vector<128xf32>
      %34 = vector.multi_reduction <add>, %33, %cst_17 [0] : vector<32x128xf32> to vector<128xf32>
      %35 = vector.shape_cast %34 : vector<128xf32> to vector<1x128xf32>
      %36 = tpu.concatenate %32, %35 in 0 : vector<1x128xf32>, vector<1x128xf32> -> vector<2x128xf32>
      %37 = vector.shape_cast %36 : vector<2x128xf32> to vector<1x2x128xf32>
      %c0_18 = arith.constant 0 : index
      %c0_19 = arith.constant 0 : index
      %c0_20 = arith.constant 0 : index
      %38 = vector.load %arg6[%c0_18, %c0_19, %c0_20] : memref<1x2x128xf32, #tpu.memory_space<vmem>>, vector<1x2x128xf32>
      tpu.vector_store %arg6[%c0_18, %c0_19, %c0_20], %37 {strides = array<i32>} : memref<1x2x128xf32, #tpu.memory_space<vmem>>, vector<1x2x128xf32>,
    } else {
    }
    return
  }
  func.func @transform_0(%arg0: i32, %arg1: i32) -> (i32, i32) {
    %c0_i32 = arith.constant 0 : i32
    return %arg0, %arg1 : i32, i32
  }
  func.func @transform_1(%arg0: i32, %arg1: i32) -> (i32, i32) {
    %c0_i32 = arith.constant 0 : i32
    %c0_i32_0 = arith.constant 0 : i32
    %c0_i32_1 = arith.constant 0 : i32
    return %c0_i32, %c0_i32_0 : i32, i32
  }
  func.func @transform_2(%arg0: i32, %arg1: i32) -> (i32, i32) {
    %c0_i32 = arith.constant 0 : i32
    %c0_i32_0 = arith.constant 0 : i32
    %c0_i32_1 = arith.constant 0 : i32
    return %c0_i32, %c0_i32_0 : i32, i32
  }
  func.func @transform_3(%arg0: i32, %arg1: i32) -> (i32, i32) {
    %c0_i32 = arith.constant 0 : i32
    %c0_i32_0 = arith.constant 0 : i32
    return %arg0, %c0_i32 : i32, i32
  }
  func.func @transform_4(%arg0: i32, %arg1: i32) -> (i32, i32, i32) {
    %c0_i32 = arith.constant 0 : i32
    %c0_i32_0 = arith.constant 0 : i32
    %c0_i32_1 = arith.constant 0 : i32
    return %arg0, %c0_i32, %c0_i32_0 : i32, i32, i32
  }
}

module attributes {stable_mosaic.version = 11 : i64} {
  func.func @_conv_kernel(%arg0: i32, %arg1: i32, %arg2: memref<16x1024xbf16, #tpu.memory_space<vmem>>, %arg3: memref<1024x128xbf16, #tpu.memory_space<vmem>>, %arg4: memref<1x128xf32, #tpu.memory_space<vmem>>, %arg5: memref<16x128xf32, #tpu.memory_space<vmem>>, %arg6: memref<16x128xf32, #tpu.memory_space<vmem>>) attributes {dimension_semantics = [#tpu.dimension_semantics<parallel>, #tpu.dimension_semantics<arbitrary>], iteration_bounds = array<i64: 1, 1>, scalar_prefetch = 0 : i64, scratch_operands = 1 : i64, tpu.core_type = #tpu.core_type<tc>, window_params = [{transform_indices = @transform_0, window_bounds = array<i64: 16, 1024>}, {pipeline_mode = #tpu.pipeline_mode<synchronous>, transform_indices = @transform_1, window_bounds = array<i64: 1024, 128>}, {pipeline_mode = #tpu.pipeline_mode<synchronous>, transform_indices = @transform_2, window_bounds = array<i64: 1, 128>}, {transform_indices = @transform_3, window_bounds = array<i64: 16, 128>}]} {
    %c0_i32 = arith.constant 0 : i32
    %0 = arith.cmpi eq, %arg1, %c0_i32 : i32
    %1 = arith.extui %0 : i1 to i32
    %c0_i32_0 = arith.constant 0 : i32
    %2 = arith.cmpi ne, %1, %c0_i32_0 : i32
    scf.if %2 {
      %cst_9 = arith.constant 0.000000e+00 : f32
      %15 = vector.broadcast %cst_9 : f32 to vector<16x128xf32>
      %c0_10 = arith.constant 0 : index
      %c0_11 = arith.constant 0 : index
      %16 = vector.load %arg6[%c0_10, %c0_11] : memref<16x128xf32, #tpu.memory_space<vmem>>, vector<16x128xf32>
      tpu.vector_store %arg6[%c0_10, %c0_11], %15 {strides = array<i32>} : memref<16x128xf32, #tpu.memory_space<vmem>>, vector<16x128xf32>,
    } else {
    }
    %c1024_i32 = arith.constant 1024 : i32
    %3 = arith.muli %arg1, %c1024_i32 : i32
    %4 = tpu.assume_multiple %3, 1024 : i32
    %c0 = arith.constant 0 : index
    %c0_1 = arith.constant 0 : index
    %5 = vector.load %arg6[%c0, %c0_1] : memref<16x128xf32, #tpu.memory_space<vmem>>, vector<16x128xf32>
    %c0_2 = arith.constant 0 : index
    %c0_3 = arith.constant 0 : index
    %6 = vector.load %arg2[%c0_2, %c0_3] : memref<16x1024xbf16, #tpu.memory_space<vmem>>, vector<16x1024xbf16>
    %7 = arith.index_cast %4 : i32 to index
    %c0_4 = arith.constant 0 : index
    %8 = vector.load %arg3[%7, %c0_4] : memref<1024x128xbf16, #tpu.memory_space<vmem>>, vector<1024x128xbf16>
    %cst = arith.constant dense<0.000000e+00> : vector<16x128xf32>
    %9 = tpu.matmul %6, %8, %cst {dimension_numbers = #tpu.dot_dimension_numbers<[1], [0], [0], [1], [0, 0, 1, 1], [], []>} : vector<16x1024xbf16>, vector<1024x128xbf16>, vector<16x128xf32> -> vector<16x128xf32>
    %10 = arith.addf %5, %9 : vector<16x128xf32>
    %c0_5 = arith.constant 0 : index
    %c0_6 = arith.constant 0 : index
    %11 = vector.load %arg6[%c0_5, %c0_6] : memref<16x128xf32, #tpu.memory_space<vmem>>, vector<16x128xf32>
    tpu.vector_store %arg6[%c0_5, %c0_6], %10 {strides = array<i32>} : memref<16x128xf32, #tpu.memory_space<vmem>>, vector<16x128xf32>,
    %c0_i32_7 = arith.constant 0 : i32
    %12 = arith.cmpi eq, %arg1, %c0_i32_7 : i32
    %13 = arith.extui %12 : i1 to i32
    %c0_i32_8 = arith.constant 0 : i32
    %14 = arith.cmpi ne, %13, %c0_i32_8 : i32
    scf.if %14 {
      %c0_9 = arith.constant 0 : index
      %c0_10 = arith.constant 0 : index
      %15 = vector.load %arg6[%c0_9, %c0_10] : memref<16x128xf32, #tpu.memory_space<vmem>>, vector<16x128xf32>
      %c0_11 = arith.constant 0 : index
      %c0_12 = arith.constant 0 : index
      %16 = vector.load %arg4[%c0_11, %c0_12] : memref<1x128xf32, #tpu.memory_space<vmem>>, vector<1x128xf32>
      %17 = vector.broadcast %16 : vector<1x128xf32> to vector<16x128xf32>
      %18 = arith.addf %15, %17 : vector<16x128xf32>
      %c0_13 = arith.constant 0 : index
      %c0_14 = arith.constant 0 : index
      %19 = vector.load %arg5[%c0_13, %c0_14] : memref<16x128xf32, #tpu.memory_space<vmem>>, vector<16x128xf32>
      tpu.vector_store %arg5[%c0_13, %c0_14], %18 {strides = array<i32>} : memref<16x128xf32, #tpu.memory_space<vmem>>, vector<16x128xf32>,
    } else {
    }
    return
  }
  func.func @transform_0(%arg0: i32, %arg1: i32) -> (i32, i32) {
    %c0_i32 = arith.constant 0 : i32
    return %arg0, %arg1 : i32, i32
  }
  func.func @transform_1(%arg0: i32, %arg1: i32) -> (i32, i32) {
    %c0_i32 = arith.constant 0 : i32
    %c0_i32_0 = arith.constant 0 : i32
    %c0_i32_1 = arith.constant 0 : i32
    return %c0_i32, %c0_i32_0 : i32, i32
  }
  func.func @transform_2(%arg0: i32, %arg1: i32) -> (i32, i32) {
    %c0_i32 = arith.constant 0 : i32
    %c0_i32_0 = arith.constant 0 : i32
    %c0_i32_1 = arith.constant 0 : i32
    return %c0_i32, %c0_i32_0 : i32, i32
  }
  func.func @transform_3(%arg0: i32, %arg1: i32) -> (i32, i32) {
    %c0_i32 = arith.constant 0 : i32
    %c0_i32_0 = arith.constant 0 : i32
    return %arg0, %c0_i32 : i32, i32
  }
}

</mosaic_0001>

<llo_original>
// kernel: _lambda_.8
$region0: #{_lambda_.8}
  #allocation0 [shape = 'u32[]', space=smem, size = 0x4, offset = 0x4, fixed_abs, tag = 'smem constant byte address 0x4 - core index']
  #allocation1 [shape = 'u32[144,128]{1,0:T(1,128)}', space=vmem, size = 0x12000, scoped, tag = 'internal scratch']
  #allocation2 [shape = 'f32[512,128]{1,0:T(8,128)}', space=vmem, size = 0x40000, scoped, tag = 'scratch operand']
  %s0 = inlined_call_operand.vmem [shape: bf16[512,128], index: 0, kind: input, shape index: {}]
  %s1 = inlined_call_operand.vmem [shape: bf16[128,128], index: 1, kind: input, shape index: {}]
  %s2 = inlined_call_operand.vmem [shape: f32[1,128], index: 2, kind: input, shape index: {}]
  %s3 = inlined_call_operand.vmem [shape: bf16[512,128], index: 3, kind: output, shape index: {}]
  %s4 = sld [smem:[#allocation0]]
  $region30: #{_lambda_.8} parent=0
    _
  %s6 = ssub.s32 1, %s4
  %s7 = scalar_select 0, %s6, %s4
  // Predicated region
  $region2: #{_lambda_.8} parent=0 // pred_check
    _
  $region3: #{_lambda_.8} parent=0 // pred_check_branch
    %9 = sbr.rel (0) target = $region5
  $region4: #{_lambda_.8} parent=0 // pred_region
    _
  $region5: #{_lambda_.8} parent=0 // pred_fallthru
    _
  // Predicated region
  $region6: #{_lambda_.8} parent=0 // pred_check
    _
  $region7: #{_lambda_.8} parent=0 // pred_check_branch
    %11 = sbr.rel (0) target = $region9
  $region8: #{_lambda_.8} parent=0 // pred_region
    _
  $region9: #{_lambda_.8} parent=0 // pred_fallthru
    _
  // Predicated region
  $region10: #{_lambda_.8} parent=0 // pred_check
    _
  $region11: #{_lambda_.8} parent=0 // pred_check_branch
    %13 = sbr.rel (0) target = $region13
  $region12: #{_lambda_.8} parent=0 // pred_region
    _
  $region13: #{_lambda_.8} parent=0 // pred_fallthru
    _
  %p15 = scmp.eq.s32.totalorder 0, 0
  // Predicated region
  $region14: #{_lambda_.8} parent=0 // pred_check
    %p16 = pneg %p15
  $region15: #{_lambda_.8} parent=0 // pred_check_branch
    %18 = sbr.rel (%p16) target = $region17
  $region16: #{_lambda_.8} parent=0 // pred_region
    %19 = vst [vmem:[#allocation2] sm:$0xff] 0.0
    %20 = vst [vmem:[#allocation2 + $0x8] sm:$0xff] 0.0
    %21 = vst [vmem:[#allocation2 + $0x10] sm:$0xff] 0.0
    %22 = vst [vmem:[#allocation2 + $0x18] sm:$0xff] 0.0
    %23 = vst [vmem:[#allocation2 + $0x20] sm:$0xff] 0.0
    %24 = vst [vmem:[#allocation2 + $0x28] sm:$0xff] 0.0
    %25 = vst [vmem:[#allocation2 + $0x30] sm:$0xff] 0.0
    %26 = vst [vmem:[#allocation2 + $0x38] sm:$0xff] 0.0
    %27 = vst [vmem:[#allocation2 + $0x40] sm:$0xff] 0.0
    %28 = vst [vmem:[#allocation2 + $0x48] sm:$0xff] 0.0
    %29 = vst [vmem:[#allocation2 + $0x50] sm:$0xff] 0.0
    %30 = vst [vmem:[#allocation2 + $0x58] sm:$0xff] 0.0
    %31 = vst [vmem:[#allocation2 + $0x60] sm:$0xff] 0.0
    %32 = vst [vmem:[#allocation2 + $0x68] sm:$0xff] 0.0
    %33 = vst [vmem:[#allocation2 + $0x70] sm:$0xff] 0.0
    %34 = vst [vmem:[#allocation2 + $0x78] sm:$0xff] 0.0
    %35 = vst [vmem:[#allocation2 + $0x80] sm:$0xff] 0.0
    %36 = vst [vmem:[#allocation2 + $0x88] sm:$0xff] 0.0
    %37 = vst [vmem:[#allocation2 + $0x90] sm:$0xff] 0.0
    %38 = vst [vmem:[#allocation2 + $0x98] sm:$0xff] 0.0
    %39 = vst [vmem:[#allocation2 + $0xa0] sm:$0xff] 0.0
    %40 = vst [vmem:[#allocation2 + $0xa8] sm:$0xff] 0.0
    %41 = vst [vmem:[#allocation2 + $0xb0] sm:$0xff] 0.0
    %42 = vst [vmem:[#allocation2 + $0xb8] sm:$0xff] 0.0
    %43 = vst [vmem:[#allocation2 + $0xc0] sm:$0xff] 0.0
    %44 = vst [vmem:[#allocation2 + $0xc8] sm:$0xff] 0.0
    %45 = vst [vmem:[#allocation2 + $0xd0] sm:$0xff] 0.0
    %46 = vst [vmem:[#allocation2 + $0xd8] sm:$0xff] 0.0
    %47 = vst [vmem:[#allocation2 + $0xe0] sm:$0xff] 0.0
    %48 = vst [vmem:[#allocation2 + $0xe8] sm:$0xff] 0.0
    %49 = vst [vmem:[#allocation2 + $0xf0] sm:$0xff] 0.0
    %50 = vst [vmem:[#allocation2 + $0xf8] sm:$0xff] 0.0
    %51 = vst [vmem:[#allocation2 + $0x100] sm:$0xff] 0.0
    %52 = vst [vmem:[#allocation2 + $0x108] sm:$0xff] 0.0
    %53 = vst [vmem:[#allocation2 + $0x110] sm:$0xff] 0.0
    %54 = vst [vmem:[#allocation2 + $0x118] sm:$0xff] 0.0
    %55 = vst [vmem:[#allocation2 + $0x120] sm:$0xff] 0.0
    %56 = vst [vmem:[#allocation2 + $0x128] sm:$0xff] 0.0
    %57 = vst [vmem:[#allocation2 + $0x130] sm:$0xff] 0.0
    %58 = vst [vmem:[#allocation2 + $0x138] sm:$0xff] 0.0
    %59 = vst [vmem:[#allocation2 + $0x140] sm:$0xff] 0.0
    %60 = vst [vmem:[#allocation2 + $0x148] sm:$0xff] 0.0
    %61 = vst [vmem:[#allocation2 + $0x150] sm:$0xff] 0.0
    %62 = vst [vmem:[#allocation2 + $0x158] sm:$0xff] 0.0
    %63 = vst [vmem:[#allocation2 + $0x160] sm:$0xff] 0.0
    %64 = vst [vmem:[#allocation2 + $0x168] sm:$0xff] 0.0
    %65 = vst [vmem:[#allocation2 + $0x170] sm:$0xff] 0.0
    %66 = vst [vmem:[#allocation2 + $0x178] sm:$0xff] 0.0
    %67 = vst [vmem:[#allocation2 + $0x180] sm:$0xff] 0.0
    %68 = vst [vmem:[#allocation2 + $0x188] sm:$0xff] 0.0
    %69 = vst [vmem:[#allocation2 + $0x190] sm:$0xff] 0.0
    %70 = vst [vmem:[#allocation2 + $0x198] sm:$0xff] 0.0
    %71 = vst [vmem:[#allocation2 + $0x1a0] sm:$0xff] 0.0
    %72 = vst [vmem:[#allocation2 + $0x1a8] sm:$0xff] 0.0
    %73 = vst [vmem:[#allocation2 + $0x1b0] sm:$0xff] 0.0
    %74 = vst [vmem:[#allocation2 + $0x1b8] sm:$0xff] 0.0
    %75 = vst [vmem:[#allocation2 + $0x1c0] sm:$0xff] 0.0
    %76 = vst [vmem:[#allocation2 + $0x1c8] sm:$0xff] 0.0
    %77 = vst [vmem:[#allocation2 + $0x1d0] sm:$0xff] 0.0
    %78 = vst [vmem:[#allocation2 + $0x1d8] sm:$0xff] 0.0
    %79 = vst [vmem:[#allocation2 + $0x1e0] sm:$0xff] 0.0
    %80 = vst [vmem:[#allocation2 + $0x1e8] sm:$0xff] 0.0
    %81 = vst [vmem:[#allocation2 + $0x1f0] sm:$0xff] 0.0
    %82 = vst [vmem:[#allocation2 + $0x1f8] sm:$0xff] 0.0
  $region17: #{_lambda_.8} parent=0 // pred_fallthru
    _
  %s83 = smul.u32 0, 128
  %v84 = vld [vmem:[#allocation2] sm:$0xff]
  %v85 = vld [vmem:[#allocation2 + $0x8] sm:$0xff]
  %v86 = vld [vmem:[#allocation2 + $0x10] sm:$0xff]
  %v87 = vld [vmem:[#allocation2 + $0x18] sm:$0xff]
  %v88 = vld [vmem:[#allocation2 + $0x20] sm:$0xff]
  %v89 = vld [vmem:[#allocation2 + $0x28] sm:$0xff]
  %v90 = vld [vmem:[#allocation2 + $0x30] sm:$0xff]
  %v91 = vld [vmem:[#allocation2 + $0x38] sm:$0xff]
  %v92 = vld [vmem:[#allocation2 + $0x40] sm:$0xff]
  %v93 = vld [vmem:[#allocation2 + $0x48] sm:$0xff]
  %v94 = vld [vmem:[#allocation2 + $0x50] sm:$0xff]
  %v95 = vld [vmem:[#allocation2 + $0x58] sm:$0xff]
  %v96 = vld [vmem:[#allocation2 + $0x60] sm:$0xff]
  %v97 = vld [vmem:[#allocation2 + $0x68] sm:$0xff]
  %v98 = vld [vmem:[#allocation2 + $0x70] sm:$0xff]
  %v99 = vld [vmem:[#allocation2 + $0x78] sm:$0xff]
  %v100 = vld [vmem:[#allocation2 + $0x80] sm:$0xff]
  %v101 = vld [vmem:[#allocation2 + $0x88] sm:$0xff]
  %v102 = vld [vmem:[#allocation2 + $0x90] sm:$0xff]
  %v103 = vld [vmem:[#allocation2 + $0x98] sm:$0xff]
  %v104 = vld [vmem:[#allocation2 + $0xa0] sm:$0xff]
  %v105 = vld [vmem:[#allocation2 + $0xa8] sm:$0xff]
  %v106 = vld [vmem:[#allocation2 + $0xb0] sm:$0xff]
  %v107 = vld [vmem:[#allocation2 + $0xb8] sm:$0xff]
  %v108 = vld [vmem:[#allocation2 + $0xc0] sm:$0xff]
  %v109 = vld [vmem:[#allocation2 + $0xc8] sm:$0xff]
  %v110 = vld [vmem:[#allocation2 + $0xd0] sm:$0xff]
  %v111 = vld [vmem:[#allocation2 + $0xd8] sm:$0xff]
  %v112 = vld [vmem:[#allocation2 + $0xe0] sm:$0xff]
  %v113 = vld [vmem:[#allocation2 + $0xe8] sm:$0xff]
  %v114 = vld [vmem:[#allocation2 + $0xf0] sm:$0xff]
  %v115 = vld [vmem:[#allocation2 + $0xf8] sm:$0xff]
  %v116 = vld [vmem:[#allocation2 + $0x100] sm:$0xff]
  %v117 = vld [vmem:[#allocation2 + $0x108] sm:$0xff]
  %v118 = vld [vmem:[#allocation2 + $0x110] sm:$0xff]
  %v119 = vld [vmem:[#allocation2 + $0x118] sm:$0xff]
  %v120 = vld [vmem:[#allocation2 + $0x120] sm:$0xff]
  %v121 = vld [vmem:[#allocation2 + $0x128] sm:$0xff]
  %v122 = vld [vmem:[#allocation2 + $0x130] sm:$0xff]
  %v123 = vld [vmem:[#allocation2 + $0x138] sm:$0xff]
  %v124 = vld [vmem:[#allocation2 + $0x140] sm:$0xff]
  %v125 = vld [vmem:[#allocation2 + $0x148] sm:$0xff]
  %v126 = vld [vmem:[#allocation2 + $0x150] sm:$0xff]
  %v127 = vld [vmem:[#allocation2 + $0x158] sm:$0xff]
  %v128 = vld [vmem:[#allocation2 + $0x160] sm:$0xff]
  %v129 = vld [vmem:[#allocation2 + $0x168] sm:$0xff]
  %v130 = vld [vmem:[#allocation2 + $0x170] sm:$0xff]
  %v131 = vld [vmem:[#allocation2 + $0x178] sm:$0xff]
  %v132 = vld [vmem:[#allocation2 + $0x180] sm:$0xff]
  %v133 = vld [vmem:[#allocation2 + $0x188] sm:$0xff]
  %v134 = vld [vmem:[#allocation2 + $0x190] sm:$0xff]
  %v135 = vld [vmem:[#allocation2 + $0x198] sm:$0xff]
  %v136 = vld [vmem:[#allocation2 + $0x1a0] sm:$0xff]
  %v137 = vld [vmem:[#allocation2 + $0x1a8] sm:$0xff]
  %v138 = vld [vmem:[#allocation2 + $0x1b0] sm:$0xff]
  %v139 = vld [vmem:[#allocation2 + $0x1b8] sm:$0xff]
  %v140 = vld [vmem:[#allocation2 + $0x1c0] sm:$0xff]
  %v141 = vld [vmem:[#allocation2 + $0x1c8] sm:$0xff]
  %v142 = vld [vmem:[#allocation2 + $0x1d0] sm:$0xff]
  %v143 = vld [vmem:[#allocation2 + $0x1d8] sm:$0xff]
  %v144 = vld [vmem:[#allocation2 + $0x1e0] sm:$0xff]
  %v145 = vld [vmem:[#allocation2 + $0x1e8] sm:$0xff]
  %v146 = vld [vmem:[#allocation2 + $0x1f0] sm:$0xff]
  %v147 = vld [vmem:[#allocation2 + $0x1f8] sm:$0xff]
  %v148 = vld [vmem:[%s0] sm:$0xf]
  %v149 = vld [vmem:[%s0 + $0x4] sm:$0xf]
  %v150 = vld [vmem:[%s0 + $0x8] sm:$0xf]
  %v151 = vld [vmem:[%s0 + $0xc] sm:$0xf]
  %v152 = vld [vmem:[%s0 + $0x10] sm:$0xf]
  %v153 = vld [vmem:[%s0 + $0x14] sm:$0xf]
  %v154 = vld [vmem:[%s0 + $0x18] sm:$0xf]
  %v155 = vld [vmem:[%s0 + $0x1c] sm:$0xf]
  %v156 = vld [vmem:[%s0 + $0x20] sm:$0xf]
  %v157 = vld [vmem:[%s0 + $0x24] sm:$0xf]
  %v158 = vld [vmem:[%s0 + $0x28] sm:$0xf]
  %v159 = vld [vmem:[%s0 + $0x2c] sm:$0xf]
  %v160 = vld [vmem:[%s0 + $0x30] sm:$0xf]
  %v161 = vld [vmem:[%s0 + $0x34] sm:$0xf]
  %v162 = vld [vmem:[%s0 + $0x38] sm:$0xf]
  %v163 = vld [vmem:[%s0 + $0x3c] sm:$0xf]
  %v164 = vld [vmem:[%s0 + $0x40] sm:$0xf]
  %v165 = vld [vmem:[%s0 + $0x44] sm:$0xf]
  %v166 = vld [vmem:[%s0 + $0x48] sm:$0xf]
  %v167 = vld [vmem:[%s0 + $0x4c] sm:$0xf]
  %v168 = vld [vmem:[%s0 + $0x50] sm:$0xf]
  %v169 = vld [vmem:[%s0 + $0x54] sm:$0xf]
  %v170 = vld [vmem:[%s0 + $0x58] sm:$0xf]
  %v171 = vld [vmem:[%s0 + $0x5c] sm:$0xf]
  %v172 = vld [vmem:[%s0 + $0x60] sm:$0xf]
  %v173 = vld [vmem:[%s0 + $0x64] sm:$0xf]
  %v174 = vld [vmem:[%s0 + $0x68] sm:$0xf]
  %v175 = vld [vmem:[%s0 + $0x6c] sm:$0xf]
  %v176 = vld [vmem:[%s0 + $0x70] sm:$0xf]
  %v177 = vld [vmem:[%s0 + $0x74] sm:$0xf]
  %v178 = vld [vmem:[%s0 + $0x78] sm:$0xf]
  %v179 = vld [vmem:[%s0 + $0x7c] sm:$0xf]
  %v180 = vld [vmem:[%s0 + $0x80] sm:$0xf]
  %v181 = vld [vmem:[%s0 + $0x84] sm:$0xf]
  %v182 = vld [vmem:[%s0 + $0x88] sm:$0xf]
  %v183 = vld [vmem:[%s0 + $0x8c] sm:$0xf]
  %v184 = vld [vmem:[%s0 + $0x90] sm:$0xf]
  %v185 = vld [vmem:[%s0 + $0x94] sm:$0xf]
  %v186 = vld [vmem:[%s0 + $0x98] sm:$0xf]
  %v187 = vld [vmem:[%s0 + $0x9c] sm:$0xf]
  %v188 = vld [vmem:[%s0 + $0xa0] sm:$0xf]
  %v189 = vld [vmem:[%s0 + $0xa4] sm:$0xf]
  %v190 = vld [vmem:[%s0 + $0xa8] sm:$0xf]
  %v191 = vld [vmem:[%s0 + $0xac] sm:$0xf]
  %v192 = vld [vmem:[%s0 + $0xb0] sm:$0xf]
  %v193 = vld [vmem:[%s0 + $0xb4] sm:$0xf]
  %v194 = vld [vmem:[%s0 + $0xb8] sm:$0xf]
  %v195 = vld [vmem:[%s0 + $0xbc] sm:$0xf]
  %v196 = vld [vmem:[%s0 + $0xc0] sm:$0xf]
  %v197 = vld [vmem:[%s0 + $0xc4] sm:$0xf]
  %v198 = vld [vmem:[%s0 + $0xc8] sm:$0xf]
  %v199 = vld [vmem:[%s0 + $0xcc] sm:$0xf]
  %v200 = vld [vmem:[%s0 + $0xd0] sm:$0xf]
  %v201 = vld [vmem:[%s0 + $0xd4] sm:$0xf]
  %v202 = vld [vmem:[%s0 + $0xd8] sm:$0xf]
  %v203 = vld [vmem:[%s0 + $0xdc] sm:$0xf]
  %v204 = vld [vmem:[%s0 + $0xe0] sm:$0xf]
  %v205 = vld [vmem:[%s0 + $0xe4] sm:$0xf]
  %v206 = vld [vmem:[%s0 + $0xe8] sm:$0xf]
  %v207 = vld [vmem:[%s0 + $0xec] sm:$0xf]
  %v208 = vld [vmem:[%s0 + $0xf0] sm:$0xf]
  %v209 = vld [vmem:[%s0 + $0xf4] sm:$0xf]
  %v210 = vld [vmem:[%s0 + $0xf8] sm:$0xf]
  %v211 = vld [vmem:[%s0 + $0xfc] sm:$0xf]
  %s212 = sshra.s32 %s83, 3
  %s213 = sand.u32 %s83, 7
  %s214 = smul.addr %s212, 4
  %s215 = scalar_lea.vmem %s1, %s214
  %v216 = vld [vmem:[%s215] sm:$0xf]
  %v217 = vld [vmem:[%s215 + $0x4] sm:$0xf]
  %v218 = vld [vmem:[%s215 + $0x8] sm:$0xf]
  %v219 = vld [vmem:[%s215 + $0xc] sm:$0xf]
  %v220 = vld [vmem:[%s215 + $0x10] sm:$0xf]
  %v221 = vld [vmem:[%s215 + $0x14] sm:$0xf]
  %v222 = vld [vmem:[%s215 + $0x18] sm:$0xf]
  %v223 = vld [vmem:[%s215 + $0x1c] sm:$0xf]
  %v224 = vld [vmem:[%s215 + $0x20] sm:$0xf]
  %v225 = vld [vmem:[%s215 + $0x24] sm:$0xf]
  %v226 = vld [vmem:[%s215 + $0x28] sm:$0xf]
  %v227 = vld [vmem:[%s215 + $0x2c] sm:$0xf]
  %v228 = vld [vmem:[%s215 + $0x30] sm:$0xf]
  %v229 = vld [vmem:[%s215 + $0x34] sm:$0xf]
  %v230 = vld [vmem:[%s215 + $0x38] sm:$0xf]
  %v231 = vld [vmem:[%s215 + $0x3c] sm:$0xf]
  %v296 = vunpack.c.l.b16 %v148
  %v297 = vunpack.c.l.b16 %v149
  %v298 = vunpack.c.l.b16 %v150
  %v299 = vunpack.c.l.b16 %v151
  %v300 = vunpack.c.l.b16 %v152
  %v301 = vunpack.c.l.b16 %v153
  %v302 = vunpack.c.l.b16 %v154
  %v303 = vunpack.c.l.b16 %v155
  %v304 = vunpack.c.l.b16 %v156
  %v305 = vunpack.c.l.b16 %v157
  %v306 = vunpack.c.l.b16 %v158
  %v307 = vunpack.c.l.b16 %v159
  %v308 = vunpack.c.l.b16 %v160
  %v309 = vunpack.c.l.b16 %v161
  %v310 = vunpack.c.l.b16 %v162
  %v311 = vunpack.c.l.b16 %v163
  %v312 = vunpack.c.l.b16 %v164
  %v313 = vunpack.c.l.b16 %v165
  %v314 = vunpack.c.l.b16 %v166
  %v315 = vunpack.c.l.b16 %v167
  %v316 = vunpack.c.l.b16 %v168
  %v317 = vunpack.c.l.b16 %v169
  %v318 = vunpack.c.l.b16 %v170
  %v319 = vunpack.c.l.b16 %v171
  %v320 = vunpack.c.l.b16 %v172
  %v321 = vunpack.c.l.b16 %v173
  %v322 = vunpack.c.l.b16 %v174
  %v323 = vunpack.c.l.b16 %v175
  %v324 = vunpack.c.l.b16 %v176
  %v325 = vunpack.c.l.b16 %v177
  %v326 = vunpack.c.l.b16 %v178
  %v327 = vunpack.c.l.b16 %v179
  %v328 = vunpack.c.l.b16 %v180
  %v329 = vunpack.c.l.b16 %v181
  %v330 = vunpack.c.l.b16 %v182
  %v331 = vunpack.c.l.b16 %v183
  %v332 = vunpack.c.l.b16 %v184
  %v333 = vunpack.c.l.b16 %v185
  %v334 = vunpack.c.l.b16 %v186
  %v335 = vunpack.c.l.b16 %v187
  %v336 = vunpack.c.l.b16 %v188
  %v337 = vunpack.c.l.b16 %v189
  %v338 = vunpack.c.l.b16 %v190
  %v339 = vunpack.c.l.b16 %v191
  %v340 = vunpack.c.l.b16 %v192
  %v341 = vunpack.c.l.b16 %v193
  %v342 = vunpack.c.l.b16 %v194
  %v343 = vunpack.c.l.b16 %v195
  %v344 = vunpack.c.l.b16 %v196
  %v345 = vunpack.c.l.b16 %v197
  %v346 = vunpack.c.l.b16 %v198
  %v347 = vunpack.c.l.b16 %v199
  %v348 = vunpack.c.l.b16 %v200
  %v349 = vunpack.c.l.b16 %v201
  %v350 = vunpack.c.l.b16 %v202
  %v351 = vunpack.c.l.b16 %v203
  %v352 = vunpack.c.l.b16 %v204
  %v353 = vunpack.c.l.b16 %v205
  %v354 = vunpack.c.l.b16 %v206
  %v355 = vunpack.c.l.b16 %v207
  %v356 = vunpack.c.l.b16 %v208
  %v357 = vunpack.c.l.b16 %v209
  %v358 = vunpack.c.l.b16 %v210
  %v359 = vunpack.c.l.b16 %v211
  %v360 = vpack.c.b16 %v297, %v296
  %v361 = vpack.c.b16 %v299, %v298
  %v362 = vpack.c.b16 %v301, %v300
  %v363 = vpack.c.b16 %v303, %v302
  %v364 = vpack.c.b16 %v305, %v304
  %v365 = vpack.c.b16 %v307, %v306
  %v366 = vpack.c.b16 %v309, %v308
  %v367 = vpack.c.b16 %v311, %v310
  %v368 = vpack.c.b16 %v313, %v312
  %v369 = vpack.c.b16 %v315, %v314
  %v370 = vpack.c.b16 %v317, %v316
  %v371 = vpack.c.b16 %v319, %v318
  %v372 = vpack.c.b16 %v321, %v320
  %v373 = vpack.c.b16 %v323, %v322
  %v374 = vpack.c.b16 %v325, %v324
  %v375 = vpack.c.b16 %v327, %v326
  %v376 = vpack.c.b16 %v329, %v328
  %v377 = vpack.c.b16 %v331, %v330
  %v378 = vpack.c.b16 %v333, %v332
  %v379 = vpack.c.b16 %v335, %v334
  %v380 = vpack.c.b16 %v337, %v336
  %v381 = vpack.c.b16 %v339, %v338
  %v382 = vpack.c.b16 %v341, %v340
  %v383 = vpack.c.b16 %v343, %v342
  %v384 = vpack.c.b16 %v345, %v344
  %v385 = vpack.c.b16 %v347, %v346
  %v386 = vpack.c.b16 %v349, %v348
  %v387 = vpack.c.b16 %v351, %v350
  %v388 = vpack.c.b16 %v353, %v352
  %v389 = vpack.c.b16 %v355, %v354
  %v390 = vpack.c.b16 %v357, %v356
  %v391 = vpack.c.b16 %v359, %v358
  %v440 = vunpack.c.l.b16 %v216
  %v441 = vunpack.c.l.b16 %v217
  %v442 = vunpack.c.l.b16 %v218
  %v443 = vunpack.c.l.b16 %v219
  %v444 = vunpack.c.l.b16 %v220
  %v445 = vunpack.c.l.b16 %v221
  %v446 = vunpack.c.l.b16 %v222
  %v447 = vunpack.c.l.b16 %v223
  %v448 = vunpack.c.l.b16 %v224
  %v449 = vunpack.c.l.b16 %v225
  %v450 = vunpack.c.l.b16 %v226
  %v451 = vunpack.c.l.b16 %v227
  %v452 = vunpack.c.l.b16 %v228
  %v453 = vunpack.c.l.b16 %v229
  %v454 = vunpack.c.l.b16 %v230
  %v455 = vunpack.c.l.b16 %v231
  %v456 = vpack.c.b16 %v441, %v440
  %v457 = vpack.c.b16 %v443, %v442
  %v458 = vpack.c.b16 %v445, %v444
  %v459 = vpack.c.b16 %v447, %v446
  %v460 = vpack.c.b16 %v449, %v448
  %v461 = vpack.c.b16 %v451, %v450
  %v462 = vpack.c.b16 %v453, %v452
  %v463 = vpack.c.b16 %v455, %v454
  %472 = vmatprep.subr.bf16.mxu0 0
  %473 = vmatpush1.bf16.msra.mxu0 %v456
  %474 = vmatprep.subr.bf16.mxu0 0
  %475 = vmatpush1.bf16.msra.mxu0 %v457
  %476 = vmatprep.subr.bf16.mxu0 0
  %477 = vmatpush1.bf16.msra.mxu0 %v458
  %478 = vmatprep.subr.bf16.mxu0 0
  %479 = vmatpush1.bf16.msra.mxu0 %v459
  %480 = vmatprep.subr.bf16.mxu0 0
  %481 = vmatpush1.bf16.msra.mxu0 %v460
  %482 = vmatprep.subr.bf16.mxu0 0
  %483 = vmatpush1.bf16.msra.mxu0 %v461
  %484 = vmatprep.subr.bf16.mxu0 0
  %485 = vmatpush1.bf16.msra.mxu0 %v462
  %486 = vmatprep.subr.bf16.mxu0 0
  %487 = vmatpush1.bf16.msra.mxu0 %v463
  %488 = vmatprep.subr.bf16.mxu0 0
  %489 = vmatpush1.bf16.msra.mxu0 0
  %490 = vmatprep.subr.bf16.mxu0 0
  %491 = vmatpush1.bf16.msra.mxu0 0
  %492 = vmatprep.subr.bf16.mxu0 0
  %493 = vmatpush1.bf16.msra.mxu0 0
  %494 = vmatprep.subr.bf16.mxu0 0
  %495 = vmatpush1.bf16.msra.mxu0 0
  %496 = vmatprep.subr.bf16.mxu0 0
  %497 = vmatpush1.bf16.msra.mxu0 0
  %498 = vmatprep.subr.bf16.mxu0 0
  %499 = vmatpush1.bf16.msra.mxu0 0
  %500 = vmatprep.subr.bf16.mxu0 0
  %501 = vmatpush1.bf16.msra.mxu0 0
  %502 = vmatprep.subr.bf16.mxu0 0
  %503 = vmatpush1.bf16.msra.mxu0 0
  %504 = vmatprep.mubr.bf16.mxu0 0
  %505 = vmatmul.mubr.bf16.gmra.mrb[0].mxu0 %v360
  %v506 = vpop.f32.mrb[0].mxu0
  %v507 = vadd.f32 0.0, %v506
  %v508 = vpop.f32.mrb[0].mxu0
  %v509 = vpop.f32.mrb[0].mxu0
  %v510 = vadd.f32 0.0, %v509
  %v511 = vpop.f32.mrb[0].mxu0
  %512 = vmatprep.mubr.bf16.mxu0 0
  %513 = vmatmul.mubr.bf16.gmra.mrb[0].mxu0 %v361
  %v514 = vpop.f32.mrb[0].mxu0
  %v515 = vadd.f32 0.0, %v514
  %v516 = vpop.f32.mrb[0].mxu0
  %v517 = vpop.f32.mrb[0].mxu0
  %v518 = vadd.f32 0.0, %v517
  %v519 = vpop.f32.mrb[0].mxu0
  %520 = vmatprep.mubr.bf16.mxu0 0
  %521 = vmatmul.mubr.bf16.gmra.mrb[0].mxu0 %v362
  %v522 = vpop.f32.mrb[0].mxu0
  %v523 = vadd.f32 0.0, %v522
  %v524 = vpop.f32.mrb[0].mxu0
  %v525 = vpop.f32.mrb[0].mxu0
  %v526 = vadd.f32 0.0, %v525
  %v527 = vpop.f32.mrb[0].mxu0
  %528 = vmatprep.mubr.bf16.mxu0 0
  %529 = vmatmul.mubr.bf16.gmra.mrb[0].mxu0 %v363
  %v530 = vpop.f32.mrb[0].mxu0
  %v531 = vadd.f32 0.0, %v530
  %v532 = vpop.f32.mrb[0].mxu0
  %v533 = vpop.f32.mrb[0].mxu0
  %v534 = vadd.f32 0.0, %v533
  %v535 = vpop.f32.mrb[0].mxu0
  %536 = vmatprep.mubr.bf16.mxu0 0
  %537 = vmatmul.mubr.bf16.gmra.mrb[0].mxu0 %v364
  %v538 = vpop.f32.mrb[0].mxu0
  %v539 = vadd.f32 0.0, %v538
  %v540 = vpop.f32.mrb[0].mxu0
  %v541 = vpop.f32.mrb[0].mxu0
  %v542 = vadd.f32 0.0, %v541
  %v543 = vpop.f32.mrb[0].mxu0
  %544 = vmatprep.mubr.bf16.mxu0 0
  %545 = vmatmul.mubr.bf16.gmra.mrb[0].mxu0 %v365
  %v546 = vpop.f32.mrb[0].mxu0
  %v547 = vadd.f32 0.0, %v546
  %v548 = vpop.f32.mrb[0].mxu0
  %v549 = vpop.f32.mrb[0].mxu0
  %v550 = vadd.f32 0.0, %v549
  %v551 = vpop.f32.mrb[0].mxu0
  %552 = vmatprep.mubr.bf16.mxu0 0
  %553 = vmatmul.mubr.bf16.gmra.mrb[0].mxu0 %v366
  %v554 = vpop.f32.mrb[0].mxu0
  %v555 = vadd.f32 0.0, %v554
  %v556 = vpop.f32.mrb[0].mxu0
  %v557 = vpop.f32.mrb[0].mxu0
  %v558 = vadd.f32 0.0, %v557
  %v559 = vpop.f32.mrb[0].mxu0
  %560 = vmatprep.mubr.bf16.mxu0 0
  %561 = vmatmul.mubr.bf16.gmra.mrb[0].mxu0 %v367
  %v562 = vpop.f32.mrb[0].mxu0
  %v563 = vadd.f32 0.0, %v562
  %v564 = vpop.f32.mrb[0].mxu0
  %v565 = vpop.f32.mrb[0].mxu0
  %v566 = vadd.f32 0.0, %v565
  %v567 = vpop.f32.mrb[0].mxu0
  %568 = vmatprep.mubr.bf16.mxu0 0
  %569 = vmatmul.mubr.bf16.gmra.mrb[0].mxu0 %v368
  %v570 = vpop.f32.mrb[0].mxu0
  %v571 = vadd.f32 0.0, %v570
  %v572 = vpop.f32.mrb[0].mxu0
  %v573 = vpop.f32.mrb[0].mxu0
  %v574 = vadd.f32 0.0, %v573
  %v575 = vpop.f32.mrb[0].mxu0
  %576 = vmatprep.mubr.bf16.mxu0 0
  %577 = vmatmul.mubr.bf16.gmra.mrb[0].mxu0 %v369
  %v578 = vpop.f32.mrb[0].mxu0
  %v579 = vadd.f32 0.0, %v578
  %v580 = vpop.f32.mrb[0].mxu0
  %v581 = vpop.f32.mrb[0].mxu0
  %v582 = vadd.f32 0.0, %v581
  %v583 = vpop.f32.mrb[0].mxu0
  %584 = vmatprep.mubr.bf16.mxu0 0
  %585 = vmatmul.mubr.bf16.gmra.mrb[0].mxu0 %v370
  %v586 = vpop.f32.mrb[0].mxu0
  %v587 = vadd.f32 0.0, %v586
  %v588 = vpop.f32.mrb[0].mxu0
  %v589 = vpop.f32.mrb[0].mxu0
  %v590 = vadd.f32 0.0, %v589
  %v591 = vpop.f32.mrb[0].mxu0
  %592 = vmatprep.mubr.bf16.mxu0 0
  %593 = vmatmul.mubr.bf16.gmra.mrb[0].mxu0 %v371
  %v594 = vpop.f32.mrb[0].mxu0
  %v595 = vadd.f32 0.0, %v594
  %v596 = vpop.f32.mrb[0].mxu0
  %v597 = vpop.f32.mrb[0].mxu0
  %v598 = vadd.f32 0.0, %v597
  %v599 = vpop.f32.mrb[0].mxu0
  %600 = vmatprep.mubr.bf16.mxu0 0
  %601 = vmatmul.mubr.bf16.gmra.mrb[0].mxu0 %v372
  %v602 = vpop.f32.mrb[0].mxu0
  %v603 = vadd.f32 0.0, %v602
  %v604 = vpop.f32.mrb[0].mxu0
  %v605 = vpop.f32.mrb[0].mxu0
  %v606 = vadd.f32 0.0, %v605
  %v607 = vpop.f32.mrb[0].mxu0
  %608 = vmatprep.mubr.bf16.mxu0 0
  %609 = vmatmul.mubr.bf16.gmra.mrb[0].mxu0 %v373
  %v610 = vpop.f32.mrb[0].mxu0
  %v611 = vadd.f32 0.0, %v610
  %v612 = vpop.f32.mrb[0].mxu0
  %v613 = vpop.f32.mrb[0].mxu0
  %v614 = vadd.f32 0.0, %v613
  %v615 = vpop.f32.mrb[0].mxu0
  %616 = vmatprep.mubr.bf16.mxu0 0
  %617 = vmatmul.mubr.bf16.gmra.mrb[0].mxu0 %v374
  %v618 = vpop.f32.mrb[0].mxu0
  %v619 = vadd.f32 0.0, %v618
  %v620 = vpop.f32.mrb[0].mxu0
  %v621 = vpop.f32.mrb[0].mxu0
  %v622 = vadd.f32 0.0, %v621
  %v623 = vpop.f32.mrb[0].mxu0
  %624 = vmatprep.mubr.bf16.mxu0 0
  %625 = vmatmul.mubr.bf16.gmra.mrb[0].mxu0 %v375
  %v626 = vpop.f32.mrb[0].mxu0
  %v627 = vadd.f32 0.0, %v626
  %v628 = vpop.f32.mrb[0].mxu0
  %v629 = vpop.f32.mrb[0].mxu0
  %v630 = vadd.f32 0.0, %v629
  %v631 = vpop.f32.mrb[0].mxu0
  %632 = vmatprep.mubr.bf16.mxu0 0
  %633 = vmatmul.mubr.bf16.gmra.mrb[0].mxu0 %v376
  %v634 = vpop.f32.mrb[0].mxu0
  %v635 = vadd.f32 0.0, %v634
  %v636 = vpop.f32.mrb[0].mxu0
  %v637 = vpop.f32.mrb[0].mxu0
  %v638 = vadd.f32 0.0, %v637
  %v639 = vpop.f32.mrb[0].mxu0
  %640 = vmatprep.mubr.bf16.mxu0 0
  %641 = vmatmul.mubr.bf16.gmra.mrb[0].mxu0 %v377
  %v642 = vpop.f32.mrb[0].mxu0
  %v643 = vadd.f32 0.0, %v642
  %v644 = vpop.f32.mrb[0].mxu0
  %v645 = vpop.f32.mrb[0].mxu0
  %v646 = vadd.f32 0.0, %v645
  %v647 = vpop.f32.mrb[0].mxu0
  %648 = vmatprep.mubr.bf16.mxu0 0
  %649 = vmatmul.mubr.bf16.gmra.mrb[0].mxu0 %v378
  %v650 = vpop.f32.mrb[0].mxu0
  %v651 = vadd.f32 0.0, %v650
  %v652 = vpop.f32.mrb[0].mxu0
  %v653 = vpop.f32.mrb[0].mxu0
  %v654 = vadd.f32 0.0, %v653
  %v655 = vpop.f32.mrb[0].mxu0
  %656 = vmatprep.mubr.bf16.mxu0 0
  %657 = vmatmul.mubr.bf16.gmra.mrb[0].mxu0 %v379
  %v658 = vpop.f32.mrb[0].mxu0
  %v659 = vadd.f32 0.0, %v658
  %v660 = vpop.f32.mrb[0].mxu0
  %v661 = vpop.f32.mrb[0].mxu0
  %v662 = vadd.f32 0.0, %v661
  %v663 = vpop.f32.mrb[0].mxu0
  %664 = vmatprep.mubr.bf16.mxu0 0
  %665 = vmatmul.mubr.bf16.gmra.mrb[0].mxu0 %v380
  %v666 = vpop.f32.mrb[0].mxu0
  %v667 = vadd.f32 0.0, %v666
  %v668 = vpop.f32.mrb[0].mxu0
  %v669 = vpop.f32.mrb[0].mxu0
  %v670 = vadd.f32 0.0, %v669
  %v671 = vpop.f32.mrb[0].mxu0
  %672 = vmatprep.mubr.bf16.mxu0 0
  %673 = vmatmul.mubr.bf16.gmra.mrb[0].mxu0 %v381
  %v674 = vpop.f32.mrb[0].mxu0
  %v675 = vadd.f32 0.0, %v674
  %v676 = vpop.f32.mrb[0].mxu0
  %v677 = vpop.f32.mrb[0].mxu0
  %v678 = vadd.f32 0.0, %v677
  %v679 = vpop.f32.mrb[0].mxu0
  %680 = vmatprep.mubr.bf16.mxu0 0
  %681 = vmatmul.mubr.bf16.gmra.mrb[0].mxu0 %v382
  %v682 = vpop.f32.mrb[0].mxu0
  %v683 = vadd.f32 0.0, %v682
  %v684 = vpop.f32.mrb[0].mxu0
  %v685 = vpop.f32.mrb[0].mxu0
  %v686 = vadd.f32 0.0, %v685
  %v687 = vpop.f32.mrb[0].mxu0
  %688 = vmatprep.mubr.bf16.mxu0 0
  %689 = vmatmul.mubr.bf16.gmra.mrb[0].mxu0 %v383
  %v690 = vpop.f32.mrb[0].mxu0
  %v691 = vadd.f32 0.0, %v690
  %v692 = vpop.f32.mrb[0].mxu0
  %v693 = vpop.f32.mrb[0].mxu0
  %v694 = vadd.f32 0.0, %v693
  %v695 = vpop.f32.mrb[0].mxu0
  %696 = vmatprep.mubr.bf16.mxu0 0
  %697 = vmatmul.mubr.bf16.gmra.mrb[0].mxu0 %v384
  %v698 = vpop.f32.mrb[0].mxu0
  %v699 = vadd.f32 0.0, %v698
  %v700 = vpop.f32.mrb[0].mxu0
  %v701 = vpop.f32.mrb[0].mxu0
  %v702 = vadd.f32 0.0, %v701
  %v703 = vpop.f32.mrb[0].mxu0
  %704 = vmatprep.mubr.bf16.mxu0 0
  %705 = vmatmul.mubr.bf16.gmra.mrb[0].mxu0 %v385
  %v706 = vpop.f32.mrb[0].mxu0
  %v707 = vadd.f32 0.0, %v706
  %v708 = vpop.f32.mrb[0].mxu0
  %v709 = vpop.f32.mrb[0].mxu0
  %v710 = vadd.f32 0.0, %v709
  %v711 = vpop.f32.mrb[0].mxu0
  %712 = vmatprep.mubr.bf16.mxu0 0
  %713 = vmatmul.mubr.bf16.gmra.mrb[0].mxu0 %v386
  %v714 = vpop.f32.mrb[0].mxu0
  %v715 = vadd.f32 0.0, %v714
  %v716 = vpop.f32.mrb[0].mxu0
  %v717 = vpop.f32.mrb[0].mxu0
  %v718 = vadd.f32 0.0, %v717
  %v719 = vpop.f32.mrb[0].mxu0
  %720 = vmatprep.mubr.bf16.mxu0 0
  %721 = vmatmul.mubr.bf16.gmra.mrb[0].mxu0 %v387
  %v722 = vpop.f32.mrb[0].mxu0
  %v723 = vadd.f32 0.0, %v722
  %v724 = vpop.f32.mrb[0].mxu0
  %v725 = vpop.f32.mrb[0].mxu0
  %v726 = vadd.f32 0.0, %v725
  %v727 = vpop.f32.mrb[0].mxu0
  %728 = vmatprep.mubr.bf16.mxu0 0
  %729 = vmatmul.mubr.bf16.gmra.mrb[0].mxu0 %v388
  %v730 = vpop.f32.mrb[0].mxu0
  %v731 = vadd.f32 0.0, %v730
  %v732 = vpop.f32.mrb[0].mxu0
  %v733 = vpop.f32.mrb[0].mxu0
  %v734 = vadd.f32 0.0, %v733
  %v735 = vpop.f32.mrb[0].mxu0
  %736 = vmatprep.mubr.bf16.mxu0 0
  %737 = vmatmul.mubr.bf16.gmra.mrb[0].mxu0 %v389
  %v738 = vpop.f32.mrb[0].mxu0
  %v739 = vadd.f32 0.0, %v738
  %v740 = vpop.f32.mrb[0].mxu0
  %v741 = vpop.f32.mrb[0].mxu0
  %v742 = vadd.f32 0.0, %v741
  %v743 = vpop.f32.mrb[0].mxu0
  %744 = vmatprep.mubr.bf16.mxu0 0
  %745 = vmatmul.mubr.bf16.gmra.mrb[0].mxu0 %v390
  %v746 = vpop.f32.mrb[0].mxu0
  %v747 = vadd.f32 0.0, %v746
  %v748 = vpop.f32.mrb[0].mxu0
  %v749 = vpop.f32.mrb[0].mxu0
  %v750 = vadd.f32 0.0, %v749
  %v751 = vpop.f32.mrb[0].mxu0
  %752 = vmatprep.mubr.bf16.mxu0 0
  %753 = vmatmul.mubr.bf16.gmra.mrb[0].mxu0 %v391
  %v754 = vpop.f32.mrb[0].mxu0
  %v755 = vadd.f32 0.0, %v754
  %v756 = vpop.f32.mrb[0].mxu0
  %v757 = vpop.f32.mrb[0].mxu0
  %v758 = vadd.f32 0.0, %v757
  %v759 = vpop.f32.mrb[0].mxu0
  %760 = vdwg.mxu0
  %v761 = vadd.f32 %v84, %v507
  %v762 = vadd.f32 %v85, %v510
  %v763 = vadd.f32 %v86, %v515
  %v764 = vadd.f32 %v87, %v518
  %v765 = vadd.f32 %v88, %v523
  %v766 = vadd.f32 %v89, %v526
  %v767 = vadd.f32 %v90, %v531
  %v768 = vadd.f32 %v91, %v534
  %v769 = vadd.f32 %v92, %v539
  %v770 = vadd.f32 %v93, %v542
  %v771 = vadd.f32 %v94, %v547
  %v772 = vadd.f32 %v95, %v550
  %v773 = vadd.f32 %v96, %v555
  %v774 = vadd.f32 %v97, %v558
  %v775 = vadd.f32 %v98, %v563
  %v776 = vadd.f32 %v99, %v566
  %v777 = vadd.f32 %v100, %v571
  %v778 = vadd.f32 %v101, %v574
  %v779 = vadd.f32 %v102, %v579
  %v780 = vadd.f32 %v103, %v582
  %v781 = vadd.f32 %v104, %v587
  %v782 = vadd.f32 %v105, %v590
  %v783 = vadd.f32 %v106, %v595
  %v784 = vadd.f32 %v107, %v598
  %v785 = vadd.f32 %v108, %v603
  %v786 = vadd.f32 %v109, %v606
  %v787 = vadd.f32 %v110, %v611
  %v788 = vadd.f32 %v111, %v614
  %v789 = vadd.f32 %v112, %v619
  %v790 = vadd.f32 %v113, %v622
  %v791 = vadd.f32 %v114, %v627
  %v792 = vadd.f32 %v115, %v630
  %v793 = vadd.f32 %v116, %v635
  %v794 = vadd.f32 %v117, %v638
  %v795 = vadd.f32 %v118, %v643
  %v796 = vadd.f32 %v119, %v646
  %v797 = vadd.f32 %v120, %v651
  %v798 = vadd.f32 %v121, %v654
  %v799 = vadd.f32 %v122, %v659
  %v800 = vadd.f32 %v123, %v662
  %v801 = vadd.f32 %v124, %v667
  %v802 = vadd.f32 %v125, %v670
  %v803 = vadd.f32 %v126, %v675
  %v804 = vadd.f32 %v127, %v678
  %v805 = vadd.f32 %v128, %v683
  %v806 = vadd.f32 %v129, %v686
  %v807 = vadd.f32 %v130, %v691
  %v808 = vadd.f32 %v131, %v694
  %v809 = vadd.f32 %v132, %v699
  %v810 = vadd.f32 %v133, %v702
  %v811 = vadd.f32 %v134, %v707
  %v812 = vadd.f32 %v135, %v710
  %v813 = vadd.f32 %v136, %v715
  %v814 = vadd.f32 %v137, %v718
  %v815 = vadd.f32 %v138, %v723
  %v816 = vadd.f32 %v139, %v726
  %v817 = vadd.f32 %v140, %v731
  %v818 = vadd.f32 %v141, %v734
  %v819 = vadd.f32 %v142, %v739
  %v820 = vadd.f32 %v143, %v742
  %v821 = vadd.f32 %v144, %v747
  %v822 = vadd.f32 %v145, %v750
  %v823 = vadd.f32 %v146, %v755
  %v824 = vadd.f32 %v147, %v758
  %825 = vst [vmem:[#allocation2] sm:$0xff] %v761
  %826 = vst [vmem:[#allocation2 + $0x8] sm:$0xff] %v762
  %827 = vst [vmem:[#allocation2 + $0x10] sm:$0xff] %v763
  %828 = vst [vmem:[#allocation2 + $0x18] sm:$0xff] %v764
  %829 = vst [vmem:[#allocation2 + $0x20] sm:$0xff] %v765
  %830 = vst [vmem:[#allocation2 + $0x28] sm:$0xff] %v766
  %831 = vst [vmem:[#allocation2 + $0x30] sm:$0xff] %v767
  %832 = vst [vmem:[#allocation2 + $0x38] sm:$0xff] %v768
  %833 = vst [vmem:[#allocation2 + $0x40] sm:$0xff] %v769
  %834 = vst [vmem:[#allocation2 + $0x48] sm:$0xff] %v770
  %835 = vst [vmem:[#allocation2 + $0x50] sm:$0xff] %v771
  %836 = vst [vmem:[#allocation2 + $0x58] sm:$0xff] %v772
  %837 = vst [vmem:[#allocation2 + $0x60] sm:$0xff] %v773
  %838 = vst [vmem:[#allocation2 + $0x68] sm:$0xff] %v774
  %839 = vst [vmem:[#allocation2 + $0x70] sm:$0xff] %v775
  %840 = vst [vmem:[#allocation2 + $0x78] sm:$0xff] %v776
  %841 = vst [vmem:[#allocation2 + $0x80] sm:$0xff] %v777
  %842 = vst [vmem:[#allocation2 + $0x88] sm:$0xff] %v778
  %843 = vst [vmem:[#allocation2 + $0x90] sm:$0xff] %v779
  %844 = vst [vmem:[#allocation2 + $0x98] sm:$0xff] %v780
  %845 = vst [vmem:[#allocation2 + $0xa0] sm:$0xff] %v781
  %846 = vst [vmem:[#allocation2 + $0xa8] sm:$0xff] %v782
  %847 = vst [vmem:[#allocation2 + $0xb0] sm:$0xff] %v783
  %848 = vst [vmem:[#allocation2 + $0xb8] sm:$0xff] %v784
  %849 = vst [vmem:[#allocation2 + $0xc0] sm:$0xff] %v785
  %850 = vst [vmem:[#allocation2 + $0xc8] sm:$0xff] %v786
  %851 = vst [vmem:[#allocation2 + $0xd0] sm:$0xff] %v787
  %852 = vst [vmem:[#allocation2 + $0xd8] sm:$0xff] %v788
  %853 = vst [vmem:[#allocation2 + $0xe0] sm:$0xff] %v789
  %854 = vst [vmem:[#allocation2 + $0xe8] sm:$0xff] %v790
  %855 = vst [vmem:[#allocation2 + $0xf0] sm:$0xff] %v791
  %856 = vst [vmem:[#allocation2 + $0xf8] sm:$0xff] %v792
  %857 = vst [vmem:[#allocation2 + $0x100] sm:$0xff] %v793
  %858 = vst [vmem:[#allocation2 + $0x108] sm:$0xff] %v794
  %859 = vst [vmem:[#allocation2 + $0x110] sm:$0xff] %v795
  %860 = vst [vmem:[#allocation2 + $0x118] sm:$0xff] %v796
  %861 = vst [vmem:[#allocation2 + $0x120] sm:$0xff] %v797
  %862 = vst [vmem:[#allocation2 + $0x128] sm:$0xff] %v798
  %863 = vst [vmem:[#allocation2 + $0x130] sm:$0xff] %v799
  %864 = vst [vmem:[#allocation2 + $0x138] sm:$0xff] %v800
  %865 = vst [vmem:[#allocation2 + $0x140] sm:$0xff] %v801
  %866 = vst [vmem:[#allocation2 + $0x148] sm:$0xff] %v802
  %867 = vst [vmem:[#allocation2 + $0x150] sm:$0xff] %v803
  %868 = vst [vmem:[#allocation2 + $0x158] sm:$0xff] %v804
  %869 = vst [vmem:[#allocation2 + $0x160] sm:$0xff] %v805
  %870 = vst [vmem:[#allocation2 + $0x168] sm:$0xff] %v806
  %871 = vst [vmem:[#allocation2 + $0x170] sm:$0xff] %v807
  %872 = vst [vmem:[#allocation2 + $0x178] sm:$0xff] %v808
  %873 = vst [vmem:[#allocation2 + $0x180] sm:$0xff] %v809
  %874 = vst [vmem:[#allocation2 + $0x188] sm:$0xff] %v810
  %875 = vst [vmem:[#allocation2 + $0x190] sm:$0xff] %v811
  %876 = vst [vmem:[#allocation2 + $0x198] sm:$0xff] %v812
  %877 = vst [vmem:[#allocation2 + $0x1a0] sm:$0xff] %v813
  %878 = vst [vmem:[#allocation2 + $0x1a8] sm:$0xff] %v814
  %879 = vst [vmem:[#allocation2 + $0x1b0] sm:$0xff] %v815
  %880 = vst [vmem:[#allocation2 + $0x1b8] sm:$0xff] %v816
  %881 = vst [vmem:[#allocation2 + $0x1c0] sm:$0xff] %v817
  %882 = vst [vmem:[#allocation2 + $0x1c8] sm:$0xff] %v818
  %883 = vst [vmem:[#allocation2 + $0x1d0] sm:$0xff] %v819
  %884 = vst [vmem:[#allocation2 + $0x1d8] sm:$0xff] %v820
  %885 = vst [vmem:[#allocation2 + $0x1e0] sm:$0xff] %v821
  %886 = vst [vmem:[#allocation2 + $0x1e8] sm:$0xff] %v822
  %887 = vst [vmem:[#allocation2 + $0x1f0] sm:$0xff] %v823
  %888 = vst [vmem:[#allocation2 + $0x1f8] sm:$0xff] %v824
  // Predicated region
  $region18: #{_lambda_.8} parent=0 // pred_check
    %p889 = pneg %p15
  $region19: #{_lambda_.8} parent=0 // pred_check_branch
    %891 = sbr.rel (%p889) target = $region21
  $region20: #{_lambda_.8} parent=0 // pred_region
    %v892 = vld [vmem:[#allocation2] sm:$0xff]
    %v893 = vld [vmem:[#allocation2 + $0x8] sm:$0xff]
    %v894 = vld [vmem:[#allocation2 + $0x10] sm:$0xff]
    %v895 = vld [vmem:[#allocation2 + $0x18] sm:$0xff]
    %v896 = vld [vmem:[#allocation2 + $0x20] sm:$0xff]
    %v897 = vld [vmem:[#allocation2 + $0x28] sm:$0xff]
    %v898 = vld [vmem:[#allocation2 + $0x30] sm:$0xff]
    %v899 = vld [vmem:[#allocation2 + $0x38] sm:$0xff]
    %v900 = vld [vmem:[#allocation2 + $0x40] sm:$0xff]
    %v901 = vld [vmem:[#allocation2 + $0x48] sm:$0xff]
    %v902 = vld [vmem:[#allocation2 + $0x50] sm:$0xff]
    %v903 = vld [vmem:[#allocation2 + $0x58] sm:$0xff]
    %v904 = vld [vmem:[#allocation2 + $0x60] sm:$0xff]
    %v905 = vld [vmem:[#allocation2 + $0x68] sm:$0xff]
    %v906 = vld [vmem:[#allocation2 + $0x70] sm:$0xff]
    %v907 = vld [vmem:[#allocation2 + $0x78] sm:$0xff]
    %v908 = vld [vmem:[#allocation2 + $0x80] sm:$0xff]
    %v909 = vld [vmem:[#allocation2 + $0x88] sm:$0xff]
    %v910 = vld [vmem:[#allocation2 + $0x90] sm:$0xff]
    %v911 = vld [vmem:[#allocation2 + $0x98] sm:$0xff]
    %v912 = vld [vmem:[#allocation2 + $0xa0] sm:$0xff]
    %v913 = vld [vmem:[#allocation2 + $0xa8] sm:$0xff]
    %v914 = vld [vmem:[#allocation2 + $0xb0] sm:$0xff]
    %v915 = vld [vmem:[#allocation2 + $0xb8] sm:$0xff]
    %v916 = vld [vmem:[#allocation2 + $0xc0] sm:$0xff]
    %v917 = vld [vmem:[#allocation2 + $0xc8] sm:$0xff]
    %v918 = vld [vmem:[#allocation2 + $0xd0] sm:$0xff]
    %v919 = vld [vmem:[#allocation2 + $0xd8] sm:$0xff]
    %v920 = vld [vmem:[#allocation2 + $0xe0] sm:$0xff]
    %v921 = vld [vmem:[#allocation2 + $0xe8] sm:$0xff]
    %v922 = vld [vmem:[#allocation2 + $0xf0] sm:$0xff]
    %v923 = vld [vmem:[#allocation2 + $0xf8] sm:$0xff]
    %v924 = vld [vmem:[#allocation2 + $0x100] sm:$0xff]
    %v925 = vld [vmem:[#allocation2 + $0x108] sm:$0xff]
    %v926 = vld [vmem:[#allocation2 + $0x110] sm:$0xff]
    %v927 = vld [vmem:[#allocation2 + $0x118] sm:$0xff]
    %v928 = vld [vmem:[#allocation2 + $0x120] sm:$0xff]
    %v929 = vld [vmem:[#allocation2 + $0x128] sm:$0xff]
    %v930 = vld [vmem:[#allocation2 + $0x130] sm:$0xff]
    %v931 = vld [vmem:[#allocation2 + $0x138] sm:$0xff]
    %v932 = vld [vmem:[#allocation2 + $0x140] sm:$0xff]
    %v933 = vld [vmem:[#allocation2 + $0x148] sm:$0xff]
    %v934 = vld [vmem:[#allocation2 + $0x150] sm:$0xff]
    %v935 = vld [vmem:[#allocation2 + $0x158] sm:$0xff]
    %v936 = vld [vmem:[#allocation2 + $0x160] sm:$0xff]
    %v937 = vld [vmem:[#allocation2 + $0x168] sm:$0xff]
    %v938 = vld [vmem:[#allocation2 + $0x170] sm:$0xff]
    %v939 = vld [vmem:[#allocation2 + $0x178] sm:$0xff]
    %v940 = vld [vmem:[#allocation2 + $0x180] sm:$0xff]
    %v941 = vld [vmem:[#allocation2 + $0x188] sm:$0xff]
    %v942 = vld [vmem:[#allocation2 + $0x190] sm:$0xff]
    %v943 = vld [vmem:[#allocation2 + $0x198] sm:$0xff]
    %v944 = vld [vmem:[#allocation2 + $0x1a0] sm:$0xff]
    %v945 = vld [vmem:[#allocation2 + $0x1a8] sm:$0xff]
    %v946 = vld [vmem:[#allocation2 + $0x1b0] sm:$0xff]
    %v947 = vld [vmem:[#allocation2 + $0x1b8] sm:$0xff]
    %v948 = vld [vmem:[#allocation2 + $0x1c0] sm:$0xff]
    %v949 = vld [vmem:[#allocation2 + $0x1c8] sm:$0xff]
    %v950 = vld [vmem:[#allocation2 + $0x1d0] sm:$0xff]
    %v951 = vld [vmem:[#allocation2 + $0x1d8] sm:$0xff]
    %v952 = vld [vmem:[#allocation2 + $0x1e0] sm:$0xff]
    %v953 = vld [vmem:[#allocation2 + $0x1e8] sm:$0xff]
    %v954 = vld [vmem:[#allocation2 + $0x1f0] sm:$0xff]
    %v955 = vld [vmem:[#allocation2 + $0x1f8] sm:$0xff]
    %v956 = vld [vmem:[%s2] sm:$0x1]
    %v958 = vlaneseq
    %v959 = vshrl.u32 %v958, 7
    %v960 = vsub.s32 0, %v959
    %v961 = vrot.slane %v956, %v960
    %v963 = vadd.f32 %v892, %v961
    %v964 = vadd.f32 %v893, %v961
    %v965 = vadd.f32 %v894, %v961
    %v966 = vadd.f32 %v895, %v961
    %v967 = vadd.f32 %v896, %v961
    %v968 = vadd.f32 %v897, %v961
    %v969 = vadd.f32 %v898, %v961
    %v970 = vadd.f32 %v899, %v961
    %v971 = vadd.f32 %v900, %v961
    %v972 = vadd.f32 %v901, %v961
    %v973 = vadd.f32 %v902, %v961
    %v974 = vadd.f32 %v903, %v961
    %v975 = vadd.f32 %v904, %v961
    %v976 = vadd.f32 %v905, %v961
    %v977 = vadd.f32 %v906, %v961
    %v978 = vadd.f32 %v907, %v961
    %v979 = vadd.f32 %v908, %v961
    %v980 = vadd.f32 %v909, %v961
    %v981 = vadd.f32 %v910, %v961
    %v982 = vadd.f32 %v911, %v961
    %v983 = vadd.f32 %v912, %v961
    %v984 = vadd.f32 %v913, %v961
    %v985 = vadd.f32 %v914, %v961
    %v986 = vadd.f32 %v915, %v961
    %v987 = vadd.f32 %v916, %v961
    %v988 = vadd.f32 %v917, %v961
    %v989 = vadd.f32 %v918, %v961
    %v990 = vadd.f32 %v919, %v961
    %v991 = vadd.f32 %v920, %v961
    %v992 = vadd.f32 %v921, %v961
    %v993 = vadd.f32 %v922, %v961
    %v994 = vadd.f32 %v923, %v961
    %v995 = vadd.f32 %v924, %v961
    %v996 = vadd.f32 %v925, %v961
    %v997 = vadd.f32 %v926, %v961
    %v998 = vadd.f32 %v927, %v961
    %v999 = vadd.f32 %v928, %v961
    %v1000 = vadd.f32 %v929, %v961
    %v1001 = vadd.f32 %v930, %v961
    %v1002 = vadd.f32 %v931, %v961
    %v1003 = vadd.f32 %v932, %v961
    %v1004 = vadd.f32 %v933, %v961
    %v1005 = vadd.f32 %v934, %v961
    %v1006 = vadd.f32 %v935, %v961
    %v1007 = vadd.f32 %v936, %v961
    %v1008 = vadd.f32 %v937, %v961
    %v1009 = vadd.f32 %v938, %v961
    %v1010 = vadd.f32 %v939, %v961
    %v1011 = vadd.f32 %v940, %v961
    %v1012 = vadd.f32 %v941, %v961
    %v1013 = vadd.f32 %v942, %v961
    %v1014 = vadd.f32 %v943, %v961
    %v1015 = vadd.f32 %v944, %v961
    %v1016 = vadd.f32 %v945, %v961
    %v1017 = vadd.f32 %v946, %v961
    %v1018 = vadd.f32 %v947, %v961
    %v1019 = vadd.f32 %v948, %v961
    %v1020 = vadd.f32 %v949, %v961
    %v1021 = vadd.f32 %v950, %v961
    %v1022 = vadd.f32 %v951, %v961
    %v1023 = vadd.f32 %v952, %v961
    %v1024 = vadd.f32 %v953, %v961
    %v1025 = vadd.f32 %v954, %v961
    %v1026 = vadd.f32 %v955, %v961
    %vm1027 = vcmp.ge.f32.partialorder %v963, 0.0
    %vm1028 = vcmp.ge.f32.partialorder %v964, 0.0
    %vm1029 = vcmp.ge.f32.partialorder %v965, 0.0
    %vm1030 = vcmp.ge.f32.partialorder %v966, 0.0
    %vm1031 = vcmp.ge.f32.partialorder %v967, 0.0
    %vm1032 = vcmp.ge.f32.partialorder %v968, 0.0
    %vm1033 = vcmp.ge.f32.partialorder %v969, 0.0
    %vm1034 = vcmp.ge.f32.partialorder %v970, 0.0
    %vm1035 = vcmp.ge.f32.partialorder %v971, 0.0
    %vm1036 = vcmp.ge.f32.partialorder %v972, 0.0
    %vm1037 = vcmp.ge.f32.partialorder %v973, 0.0
    %vm1038 = vcmp.ge.f32.partialorder %v974, 0.0
    %vm1039 = vcmp.ge.f32.partialorder %v975, 0.0
    %vm1040 = vcmp.ge.f32.partialorder %v976, 0.0
    %vm1041 = vcmp.ge.f32.partialorder %v977, 0.0
    %vm1042 = vcmp.ge.f32.partialorder %v978, 0.0
    %vm1043 = vcmp.ge.f32.partialorder %v979, 0.0
    %vm1044 = vcmp.ge.f32.partialorder %v980, 0.0
    %vm1045 = vcmp.ge.f32.partialorder %v981, 0.0
    %vm1046 = vcmp.ge.f32.partialorder %v982, 0.0
    %vm1047 = vcmp.ge.f32.partialorder %v983, 0.0
    %vm1048 = vcmp.ge.f32.partialorder %v984, 0.0
    %vm1049 = vcmp.ge.f32.partialorder %v985, 0.0
    %vm1050 = vcmp.ge.f32.partialorder %v986, 0.0
    %vm1051 = vcmp.ge.f32.partialorder %v987, 0.0
    %vm1052 = vcmp.ge.f32.partialorder %v988, 0.0
    %vm1053 = vcmp.ge.f32.partialorder %v989, 0.0
    %vm1054 = vcmp.ge.f32.partialorder %v990, 0.0
    %vm1055 = vcmp.ge.f32.partialorder %v991, 0.0
    %vm1056 = vcmp.ge.f32.partialorder %v992, 0.0
    %vm1057 = vcmp.ge.f32.partialorder %v993, 0.0
    %vm1058 = vcmp.ge.f32.partialorder %v994, 0.0
    %vm1059 = vcmp.ge.f32.partialorder %v995, 0.0
    %vm1060 = vcmp.ge.f32.partialorder %v996, 0.0
    %vm1061 = vcmp.ge.f32.partialorder %v997, 0.0
    %vm1062 = vcmp.ge.f32.partialorder %v998, 0.0
    %vm1063 = vcmp.ge.f32.partialorder %v999, 0.0
    %vm1064 = vcmp.ge.f32.partialorder %v1000, 0.0
    %vm1065 = vcmp.ge.f32.partialorder %v1001, 0.0
    %vm1066 = vcmp.ge.f32.partialorder %v1002, 0.0
    %vm1067 = vcmp.ge.f32.partialorder %v1003, 0.0
    %vm1068 = vcmp.ge.f32.partialorder %v1004, 0.0
    %vm1069 = vcmp.ge.f32.partialorder %v1005, 0.0
    %vm1070 = vcmp.ge.f32.partialorder %v1006, 0.0
    %vm1071 = vcmp.ge.f32.partialorder %v1007, 0.0
    %vm1072 = vcmp.ge.f32.partialorder %v1008, 0.0
    %vm1073 = vcmp.ge.f32.partialorder %v1009, 0.0
    %vm1074 = vcmp.ge.f32.partialorder %v1010, 0.0
    %vm1075 = vcmp.ge.f32.partialorder %v1011, 0.0
    %vm1076 = vcmp.ge.f32.partialorder %v1012, 0.0
    %vm1077 = vcmp.ge.f32.partialorder %v1013, 0.0
    %vm1078 = vcmp.ge.f32.partialorder %v1014, 0.0
    %vm1079 = vcmp.ge.f32.partialorder %v1015, 0.0
    %vm1080 = vcmp.ge.f32.partialorder %v1016, 0.0
    %vm1081 = vcmp.ge.f32.partialorder %v1017, 0.0
    %vm1082 = vcmp.ge.f32.partialorder %v1018, 0.0
    %vm1083 = vcmp.ge.f32.partialorder %v1019, 0.0
    %vm1084 = vcmp.ge.f32.partialorder %v1020, 0.0
    %vm1085 = vcmp.ge.f32.partialorder %v1021, 0.0
    %vm1086 = vcmp.ge.f32.partialorder %v1022, 0.0
    %vm1087 = vcmp.ge.f32.partialorder %v1023, 0.0
    %vm1088 = vcmp.ge.f32.partialorder %v1024, 0.0
    %vm1089 = vcmp.ge.f32.partialorder %v1025, 0.0
    %vm1090 = vcmp.ge.f32.partialorder %v1026, 0.0
    %v1091 = vmul.f32 %v963, 0.2
    %v1092 = vmul.f32 %v964, 0.2
    %v1093 = vmul.f32 %v965, 0.2
    %v1094 = vmul.f32 %v966, 0.2
    %v1095 = vmul.f32 %v967, 0.2
    %v1096 = vmul.f32 %v968, 0.2
    %v1097 = vmul.f32 %v969, 0.2
    %v1098 = vmul.f32 %v970, 0.2
    %v1099 = vmul.f32 %v971, 0.2
    %v1100 = vmul.f32 %v972, 0.2
    %v1101 = vmul.f32 %v973, 0.2
    %v1102 = vmul.f32 %v974, 0.2
    %v1103 = vmul.f32 %v975, 0.2
    %v1104 = vmul.f32 %v976, 0.2
    %v1105 = vmul.f32 %v977, 0.2
    %v1106 = vmul.f32 %v978, 0.2
    %v1107 = vmul.f32 %v979, 0.2
    %v1108 = vmul.f32 %v980, 0.2
    %v1109 = vmul.f32 %v981, 0.2
    %v1110 = vmul.f32 %v982, 0.2
    %v1111 = vmul.f32 %v983, 0.2
    %v1112 = vmul.f32 %v984, 0.2
    %v1113 = vmul.f32 %v985, 0.2
    %v1114 = vmul.f32 %v986, 0.2
    %v1115 = vmul.f32 %v987, 0.2
    %v1116 = vmul.f32 %v988, 0.2
    %v1117 = vmul.f32 %v989, 0.2
    %v1118 = vmul.f32 %v990, 0.2
    %v1119 = vmul.f32 %v991, 0.2
    %v1120 = vmul.f32 %v992, 0.2
    %v1121 = vmul.f32 %v993, 0.2
    %v1122 = vmul.f32 %v994, 0.2
    %v1123 = vmul.f32 %v995, 0.2
    %v1124 = vmul.f32 %v996, 0.2
    %v1125 = vmul.f32 %v997, 0.2
    %v1126 = vmul.f32 %v998, 0.2
    %v1127 = vmul.f32 %v999, 0.2
    %v1128 = vmul.f32 %v1000, 0.2
    %v1129 = vmul.f32 %v1001, 0.2
    %v1130 = vmul.f32 %v1002, 0.2
    %v1131 = vmul.f32 %v1003, 0.2
    %v1132 = vmul.f32 %v1004, 0.2
    %v1133 = vmul.f32 %v1005, 0.2
    %v1134 = vmul.f32 %v1006, 0.2
    %v1135 = vmul.f32 %v1007, 0.2
    %v1136 = vmul.f32 %v1008, 0.2
    %v1137 = vmul.f32 %v1009, 0.2
    %v1138 = vmul.f32 %v1010, 0.2
    %v1139 = vmul.f32 %v1011, 0.2
    %v1140 = vmul.f32 %v1012, 0.2
    %v1141 = vmul.f32 %v1013, 0.2
    %v1142 = vmul.f32 %v1014, 0.2
    %v1143 = vmul.f32 %v1015, 0.2
    %v1144 = vmul.f32 %v1016, 0.2
    %v1145 = vmul.f32 %v1017, 0.2
    %v1146 = vmul.f32 %v1018, 0.2
    %v1147 = vmul.f32 %v1019, 0.2
    %v1148 = vmul.f32 %v1020, 0.2
    %v1149 = vmul.f32 %v1021, 0.2
    %v1150 = vmul.f32 %v1022, 0.2
    %v1151 = vmul.f32 %v1023, 0.2
    %v1152 = vmul.f32 %v1024, 0.2
    %v1153 = vmul.f32 %v1025, 0.2
    %v1154 = vmul.f32 %v1026, 0.2
    %v1155 = vsel %vm1027, %v963, %v1091
    %v1156 = vsel %vm1028, %v964, %v1092
    %v1157 = vsel %vm1029, %v965, %v1093
    %v1158 = vsel %vm1030, %v966, %v1094
    %v1159 = vsel %vm1031, %v967, %v1095
    %v1160 = vsel %vm1032, %v968, %v1096
    %v1161 = vsel %vm1033, %v969, %v1097
    %v1162 = vsel %vm1034, %v970, %v1098
    %v1163 = vsel %vm1035, %v971, %v1099
    %v1164 = vsel %vm1036, %v972, %v1100
    %v1165 = vsel %vm1037, %v973, %v1101
    %v1166 = vsel %vm1038, %v974, %v1102
    %v1167 = vsel %vm1039, %v975, %v1103
    %v1168 = vsel %vm1040, %v976, %v1104
    %v1169 = vsel %vm1041, %v977, %v1105
    %v1170 = vsel %vm1042, %v978, %v1106
    %v1171 = vsel %vm1043, %v979, %v1107
    %v1172 = vsel %vm1044, %v980, %v1108
    %v1173 = vsel %vm1045, %v981, %v1109
    %v1174 = vsel %vm1046, %v982, %v1110
    %v1175 = vsel %vm1047, %v983, %v1111
    %v1176 = vsel %vm1048, %v984, %v1112
    %v1177 = vsel %vm1049, %v985, %v1113
    %v1178 = vsel %vm1050, %v986, %v1114
    %v1179 = vsel %vm1051, %v987, %v1115
    %v1180 = vsel %vm1052, %v988, %v1116
    %v1181 = vsel %vm1053, %v989, %v1117
    %v1182 = vsel %vm1054, %v990, %v1118
    %v1183 = vsel %vm1055, %v991, %v1119
    %v1184 = vsel %vm1056, %v992, %v1120
    %v1185 = vsel %vm1057, %v993, %v1121
    %v1186 = vsel %vm1058, %v994, %v1122
    %v1187 = vsel %vm1059, %v995, %v1123
    %v1188 = vsel %vm1060, %v996, %v1124
    %v1189 = vsel %vm1061, %v997, %v1125
    %v1190 = vsel %vm1062, %v998, %v1126
    %v1191 = vsel %vm1063, %v999, %v1127
    %v1192 = vsel %vm1064, %v1000, %v1128
    %v1193 = vsel %vm1065, %v1001, %v1129
    %v1194 = vsel %vm1066, %v1002, %v1130
    %v1195 = vsel %vm1067, %v1003, %v1131
    %v1196 = vsel %vm1068, %v1004, %v1132
    %v1197 = vsel %vm1069, %v1005, %v1133
    %v1198 = vsel %vm1070, %v1006, %v1134
    %v1199 = vsel %vm1071, %v1007, %v1135
    %v1200 = vsel %vm1072, %v1008, %v1136
    %v1201 = vsel %vm1073, %v1009, %v1137
    %v1202 = vsel %vm1074, %v1010, %v1138
    %v1203 = vsel %vm1075, %v1011, %v1139
    %v1204 = vsel %vm1076, %v1012, %v1140
    %v1205 = vsel %vm1077, %v1013, %v1141
    %v1206 = vsel %vm1078, %v1014, %v1142
    %v1207 = vsel %vm1079, %v1015, %v1143
    %v1208 = vsel %vm1080, %v1016, %v1144
    %v1209 = vsel %vm1081, %v1017, %v1145
    %v1210 = vsel %vm1082, %v1018, %v1146
    %v1211 = vsel %vm1083, %v1019, %v1147
    %v1212 = vsel %vm1084, %v1020, %v1148
    %v1213 = vsel %vm1085, %v1021, %v1149
    %v1214 = vsel %vm1086, %v1022, %v1150
    %v1215 = vsel %vm1087, %v1023, %v1151
    %v1216 = vsel %vm1088, %v1024, %v1152
    %v1217 = vsel %vm1089, %v1025, %v1153
    %v1218 = vsel %vm1090, %v1026, %v1154
    %v1219 = vpack.c.bf16 %v1156, %v1155
    %v1220 = vpack.c.bf16 %v1158, %v1157
    %v1221 = vpack.c.bf16 %v1160, %v1159
    %v1222 = vpack.c.bf16 %v1162, %v1161
    %v1223 = vpack.c.bf16 %v1164, %v1163
    %v1224 = vpack.c.bf16 %v1166, %v1165
    %v1225 = vpack.c.bf16 %v1168, %v1167
    %v1226 = vpack.c.bf16 %v1170, %v1169
    %v1227 = vpack.c.bf16 %v1172, %v1171
    %v1228 = vpack.c.bf16 %v1174, %v1173
    %v1229 = vpack.c.bf16 %v1176, %v1175
    %v1230 = vpack.c.bf16 %v1178, %v1177
    %v1231 = vpack.c.bf16 %v1180, %v1179
    %v1232 = vpack.c.bf16 %v1182, %v1181
    %v1233 = vpack.c.bf16 %v1184, %v1183
    %v1234 = vpack.c.bf16 %v1186, %v1185
    %v1235 = vpack.c.bf16 %v1188, %v1187
    %v1236 = vpack.c.bf16 %v1190, %v1189
    %v1237 = vpack.c.bf16 %v1192, %v1191
    %v1238 = vpack.c.bf16 %v1194, %v1193
    %v1239 = vpack.c.bf16 %v1196, %v1195
    %v1240 = vpack.c.bf16 %v1198, %v1197
    %v1241 = vpack.c.bf16 %v1200, %v1199
    %v1242 = vpack.c.bf16 %v1202, %v1201
    %v1243 = vpack.c.bf16 %v1204, %v1203
    %v1244 = vpack.c.bf16 %v1206, %v1205
    %v1245 = vpack.c.bf16 %v1208, %v1207
    %v1246 = vpack.c.bf16 %v1210, %v1209
    %v1247 = vpack.c.bf16 %v1212, %v1211
    %v1248 = vpack.c.bf16 %v1214, %v1213
    %v1249 = vpack.c.bf16 %v1216, %v1215
    %v1250 = vpack.c.bf16 %v1218, %v1217
    %v1283 = vunpack.c.l.b16 %v1219
    %v1284 = vunpack.c.h.b16 %v1219
    %v1285 = vunpack.c.l.b16 %v1220
    %v1286 = vunpack.c.h.b16 %v1220
    %v1287 = vunpack.c.l.b16 %v1221
    %v1288 = vunpack.c.h.b16 %v1221
    %v1289 = vunpack.c.l.b16 %v1222
    %v1290 = vunpack.c.h.b16 %v1222
    %v1291 = vunpack.c.l.b16 %v1223
    %v1292 = vunpack.c.h.b16 %v1223
    %v1293 = vunpack.c.l.b16 %v1224
    %v1294 = vunpack.c.h.b16 %v1224
    %v1295 = vunpack.c.l.b16 %v1225
    %v1296 = vunpack.c.h.b16 %v1225
    %v1297 = vunpack.c.l.b16 %v1226
    %v1298 = vunpack.c.h.b16 %v1226
    %v1299 = vunpack.c.l.b16 %v1227
    %v1300 = vunpack.c.h.b16 %v1227
    %v1301 = vunpack.c.l.b16 %v1228
    %v1302 = vunpack.c.h.b16 %v1228
    %v1303 = vunpack.c.l.b16 %v1229
    %v1304 = vunpack.c.h.b16 %v1229
    %v1305 = vunpack.c.l.b16 %v1230
    %v1306 = vunpack.c.h.b16 %v1230
    %v1307 = vunpack.c.l.b16 %v1231
    %v1308 = vunpack.c.h.b16 %v1231
    %v1309 = vunpack.c.l.b16 %v1232
    %v1310 = vunpack.c.h.b16 %v1232
    %v1311 = vunpack.c.l.b16 %v1233
    %v1312 = vunpack.c.h.b16 %v1233
    %v1313 = vunpack.c.l.b16 %v1234
    %v1314 = vunpack.c.h.b16 %v1234
    %v1315 = vunpack.c.l.b16 %v1235
    %v1316 = vunpack.c.h.b16 %v1235
    %v1317 = vunpack.c.l.b16 %v1236
    %v1318 = vunpack.c.h.b16 %v1236
    %v1319 = vunpack.c.l.b16 %v1237
    %v1320 = vunpack.c.h.b16 %v1237
    %v1321 = vunpack.c.l.b16 %v1238
    %v1322 = vunpack.c.h.b16 %v1238
    %v1323 = vunpack.c.l.b16 %v1239
    %v1324 = vunpack.c.h.b16 %v1239
    %v1325 = vunpack.c.l.b16 %v1240
    %v1326 = vunpack.c.h.b16 %v1240
    %v1327 = vunpack.c.l.b16 %v1241
    %v1328 = vunpack.c.h.b16 %v1241
    %v1329 = vunpack.c.l.b16 %v1242
    %v1330 = vunpack.c.h.b16 %v1242
    %v1331 = vunpack.c.l.b16 %v1243
    %v1332 = vunpack.c.h.b16 %v1243
    %v1333 = vunpack.c.l.b16 %v1244
    %v1334 = vunpack.c.h.b16 %v1244
    %v1335 = vunpack.c.l.b16 %v1245
    %v1336 = vunpack.c.h.b16 %v1245
    %v1337 = vunpack.c.l.b16 %v1246
    %v1338 = vunpack.c.h.b16 %v1246
    %v1339 = vunpack.c.l.b16 %v1247
    %v1340 = vunpack.c.h.b16 %v1247
    %v1341 = vunpack.c.l.b16 %v1248
    %v1342 = vunpack.c.h.b16 %v1248
    %v1343 = vunpack.c.l.b16 %v1249
    %v1344 = vunpack.c.h.b16 %v1249
    %v1345 = vunpack.c.l.b16 %v1250
    %v1346 = vunpack.c.h.b16 %v1250
    %v1347 = vpack.c.b16 %v1283, %v1283
    %v1348 = vpack.c.b16 %v1284, %v1284
    %v1349 = vpack.c.b16 %v1285, %v1285
    %v1350 = vpack.c.b16 %v1286, %v1286
    %v1351 = vpack.c.b16 %v1287, %v1287
    %v1352 = vpack.c.b16 %v1288, %v1288
    %v1353 = vpack.c.b16 %v1289, %v1289
    %v1354 = vpack.c.b16 %v1290, %v1290
    %v1355 = vpack.c.b16 %v1291, %v1291
    %v1356 = vpack.c.b16 %v1292, %v1292
    %v1357 = vpack.c.b16 %v1293, %v1293
    %v1358 = vpack.c.b16 %v1294, %v1294
    %v1359 = vpack.c.b16 %v1295, %v1295
    %v1360 = vpack.c.b16 %v1296, %v1296
    %v1361 = vpack.c.b16 %v1297, %v1297
    %v1362 = vpack.c.b16 %v1298, %v1298
    %v1363 = vpack.c.b16 %v1299, %v1299
    %v1364 = vpack.c.b16 %v1300, %v1300
    %v1365 = vpack.c.b16 %v1301, %v1301
    %v1366 = vpack.c.b16 %v1302, %v1302
    %v1367 = vpack.c.b16 %v1303, %v1303
    %v1368 = vpack.c.b16 %v1304, %v1304
    %v1369 = vpack.c.b16 %v1305, %v1305
    %v1370 = vpack.c.b16 %v1306, %v1306
    %v1371 = vpack.c.b16 %v1307, %v1307
    %v1372 = vpack.c.b16 %v1308, %v1308
    %v1373 = vpack.c.b16 %v1309, %v1309
    %v1374 = vpack.c.b16 %v1310, %v1310
    %v1375 = vpack.c.b16 %v1311, %v1311
    %v1376 = vpack.c.b16 %v1312, %v1312
    %v1377 = vpack.c.b16 %v1313, %v1313
    %v1378 = vpack.c.b16 %v1314, %v1314
    %v1379 = vpack.c.b16 %v1315, %v1315
    %v1380 = vpack.c.b16 %v1316, %v1316
    %v1381 = vpack.c.b16 %v1317, %v1317
    %v1382 = vpack.c.b16 %v1318, %v1318
    %v1383 = vpack.c.b16 %v1319, %v1319
    %v1384 = vpack.c.b16 %v1320, %v1320
    %v1385 = vpack.c.b16 %v1321, %v1321
    %v1386 = vpack.c.b16 %v1322, %v1322
    %v1387 = vpack.c.b16 %v1323, %v1323
    %v1388 = vpack.c.b16 %v1324, %v1324
    %v1389 = vpack.c.b16 %v1325, %v1325
    %v1390 = vpack.c.b16 %v1326, %v1326
    %v1391 = vpack.c.b16 %v1327, %v1327
    %v1392 = vpack.c.b16 %v1328, %v1328
    %v1393 = vpack.c.b16 %v1329, %v1329
    %v1394 = vpack.c.b16 %v1330, %v1330
    %v1395 = vpack.c.b16 %v1331, %v1331
    %v1396 = vpack.c.b16 %v1332, %v1332
    %v1397 = vpack.c.b16 %v1333, %v1333
    %v1398 = vpack.c.b16 %v1334, %v1334
    %v1399 = vpack.c.b16 %v1335, %v1335
    %v1400 = vpack.c.b16 %v1336, %v1336
    %v1401 = vpack.c.b16 %v1337, %v1337
    %v1402 = vpack.c.b16 %v1338, %v1338
    %v1403 = vpack.c.b16 %v1339, %v1339
    %v1404 = vpack.c.b16 %v1340, %v1340
    %v1405 = vpack.c.b16 %v1341, %v1341
    %v1406 = vpack.c.b16 %v1342, %v1342
    %v1407 = vpack.c.b16 %v1343, %v1343
    %v1408 = vpack.c.b16 %v1344, %v1344
    %v1409 = vpack.c.b16 %v1345, %v1345
    %v1410 = vpack.c.b16 %v1346, %v1346
    %1475 = vst [vmem:[%s3] sm:$0xf] %v1347
    %1476 = vst [vmem:[%s3 + $0x4] sm:$0xf] %v1348
    %1477 = vst [vmem:[%s3 + $0x8] sm:$0xf] %v1349
    %1478 = vst [vmem:[%s3 + $0xc] sm:$0xf] %v1350
    %1479 = vst [vmem:[%s3 + $0x10] sm:$0xf] %v1351
    %1480 = vst [vmem:[%s3 + $0x14] sm:$0xf] %v1352
    %1481 = vst [vmem:[%s3 + $0x18] sm:$0xf] %v1353
    %1482 = vst [vmem:[%s3 + $0x1c] sm:$0xf] %v1354
    %1483 = vst [vmem:[%s3 + $0x20] sm:$0xf] %v1355
    %1484 = vst [vmem:[%s3 + $0x24] sm:$0xf] %v1356
    %1485 = vst [vmem:[%s3 + $0x28] sm:$0xf] %v1357
    %1486 = vst [vmem:[%s3 + $0x2c] sm:$0xf] %v1358
    %1487 = vst [vmem:[%s3 + $0x30] sm:$0xf] %v1359
    %1488 = vst [vmem:[%s3 + $0x34] sm:$0xf] %v1360
    %1489 = vst [vmem:[%s3 + $0x38] sm:$0xf] %v1361
    %1490 = vst [vmem:[%s3 + $0x3c] sm:$0xf] %v1362
    %1491 = vst [vmem:[%s3 + $0x40] sm:$0xf] %v1363
    %1492 = vst [vmem:[%s3 + $0x44] sm:$0xf] %v1364
    %1493 = vst [vmem:[%s3 + $0x48] sm:$0xf] %v1365
    %1494 = vst [vmem:[%s3 + $0x4c] sm:$0xf] %v1366
    %1495 = vst [vmem:[%s3 + $0x50] sm:$0xf] %v1367
    %1496 = vst [vmem:[%s3 + $0x54] sm:$0xf] %v1368
    %1497 = vst [vmem:[%s3 + $0x58] sm:$0xf] %v1369
    %1498 = vst [vmem:[%s3 + $0x5c] sm:$0xf] %v1370
    %1499 = vst [vmem:[%s3 + $0x60] sm:$0xf] %v1371
    %1500 = vst [vmem:[%s3 + $0x64] sm:$0xf] %v1372
    %1501 = vst [vmem:[%s3 + $0x68] sm:$0xf] %v1373
    %1502 = vst [vmem:[%s3 + $0x6c] sm:$0xf] %v1374
    %1503 = vst [vmem:[%s3 + $0x70] sm:$0xf] %v1375
    %1504 = vst [vmem:[%s3 + $0x74] sm:$0xf] %v1376
    %1505 = vst [vmem:[%s3 + $0x78] sm:$0xf] %v1377
    %1506 = vst [vmem:[%s3 + $0x7c] sm:$0xf] %v1378
    %1507 = vst [vmem:[%s3 + $0x80] sm:$0xf] %v1379
    %1508 = vst [vmem:[%s3 + $0x84] sm:$0xf] %v1380
    %1509 = vst [vmem:[%s3 + $0x88] sm:$0xf] %v1381
    %1510 = vst [vmem:[%s3 + $0x8c] sm:$0xf] %v1382
    %1511 = vst [vmem:[%s3 + $0x90] sm:$0xf] %v1383
    %1512 = vst [vmem:[%s3 + $0x94] sm:$0xf] %v1384
    %1513 = vst [vmem:[%s3 + $0x98] sm:$0xf] %v1385
    %1514 = vst [vmem:[%s3 + $0x9c] sm:$0xf] %v1386
    %1515 = vst [vmem:[%s3 + $0xa0] sm:$0xf] %v1387
    %1516 = vst [vmem:[%s3 + $0xa4] sm:$0xf] %v1388
    %1517 = vst [vmem:[%s3 + $0xa8] sm:$0xf] %v1389
    %1518 = vst [vmem:[%s3 + $0xac] sm:$0xf] %v1390
    %1519 = vst [vmem:[%s3 + $0xb0] sm:$0xf] %v1391
    %1520 = vst [vmem:[%s3 + $0xb4] sm:$0xf] %v1392
    %1521 = vst [vmem:[%s3 + $0xb8] sm:$0xf] %v1393
    %1522 = vst [vmem:[%s3 + $0xbc] sm:$0xf] %v1394
    %1523 = vst [vmem:[%s3 + $0xc0] sm:$0xf] %v1395
    %1524 = vst [vmem:[%s3 + $0xc4] sm:$0xf] %v1396
    %1525 = vst [vmem:[%s3 + $0xc8] sm:$0xf] %v1397
    %1526 = vst [vmem:[%s3 + $0xcc] sm:$0xf] %v1398
    %1527 = vst [vmem:[%s3 + $0xd0] sm:$0xf] %v1399
    %1528 = vst [vmem:[%s3 + $0xd4] sm:$0xf] %v1400
    %1529 = vst [vmem:[%s3 + $0xd8] sm:$0xf] %v1401
    %1530 = vst [vmem:[%s3 + $0xdc] sm:$0xf] %v1402
    %1531 = vst [vmem:[%s3 + $0xe0] sm:$0xf] %v1403
    %1532 = vst [vmem:[%s3 + $0xe4] sm:$0xf] %v1404
    %1533 = vst [vmem:[%s3 + $0xe8] sm:$0xf] %v1405
    %1534 = vst [vmem:[%s3 + $0xec] sm:$0xf] %v1406
    %1535 = vst [vmem:[%s3 + $0xf0] sm:$0xf] %v1407
    %1536 = vst [vmem:[%s3 + $0xf4] sm:$0xf] %v1408
    %1537 = vst [vmem:[%s3 + $0xf8] sm:$0xf] %v1409
    %1538 = vst [vmem:[%s3 + $0xfc] sm:$0xf] %v1410
  $region21: #{_lambda_.8} parent=0 // pred_fallthru
    _
  // Predicated region
  $region22: #{_lambda_.8} parent=0 // pred_check
    _
  $region23: #{_lambda_.8} parent=0 // pred_check_branch
    %1540 = sbr.rel (0) target = $region25
  $region24: #{_lambda_.8} parent=0 // pred_region
    _
  $region25: #{_lambda_.8} parent=0 // pred_fallthru
    _
  // Predicated region
  $region26: #{_lambda_.8} parent=0 // pred_check
    _
  $region27: #{_lambda_.8} parent=0 // pred_check_branch
    %1542 = sbr.rel (0) target = $region29
  $region28: #{_lambda_.8} parent=0 // pred_region
    _
  $region29: #{_lambda_.8} parent=0 // pred_fallthru
    _

// kernel: _lambda_.9
$region0: #{_lambda_.9}
  #allocation0 [shape = 'u32[]', space=smem, size = 0x4, offset = 0x4, fixed_abs, tag = 'smem constant byte address 0x4 - core index']
  #allocation1 [shape = 'u32[144,128]{1,0:T(1,128)}', space=vmem, size = 0x12000, scoped, tag = 'internal scratch']
  #allocation2 [shape = 'f32[128,128]{1,0:T(8,128)}', space=vmem, size = 0x10000, scoped, tag = 'scratch operand']
  %s0 = inlined_call_operand.vmem [shape: bf16[128,128], index: 0, kind: input, shape index: {}]
  %s1 = inlined_call_operand.vmem [shape: bf16[128,128], index: 1, kind: input, shape index: {}]
  %s2 = inlined_call_operand.vmem [shape: f32[1,128], index: 2, kind: input, shape index: {}]
  %s3 = inlined_call_operand.vmem [shape: bf16[128,128], index: 3, kind: output, shape index: {0}]
  %s4 = inlined_call_operand.vmem [shape: f32[1,2,128], index: 4, kind: output, shape index: {1}]
  %5 = xla_tuple %s3, %s4
  %s6 = sld [smem:[#allocation0]]
  $region38: #{_lambda_.9} parent=0
    _
  %s8 = ssub.s32 1, %s6
  %s9 = scalar_select 0, %s8, %s6
  // Predicated region
  $region2: #{_lambda_.9} parent=0 // pred_check
    _
  $region3: #{_lambda_.9} parent=0 // pred_check_branch
    %11 = sbr.rel (0) target = $region5
  $region4: #{_lambda_.9} parent=0 // pred_region
    _
  $region5: #{_lambda_.9} parent=0 // pred_fallthru
    _
  // Predicated region
  $region6: #{_lambda_.9} parent=0 // pred_check
    _
  $region7: #{_lambda_.9} parent=0 // pred_check_branch
    %13 = sbr.rel (0) target = $region9
  $region8: #{_lambda_.9} parent=0 // pred_region
    _
  $region9: #{_lambda_.9} parent=0 // pred_fallthru
    _
  // Predicated region
  $region10: #{_lambda_.9} parent=0 // pred_check
    _
  $region11: #{_lambda_.9} parent=0 // pred_check_branch
    %15 = sbr.rel (0) target = $region13
  $region12: #{_lambda_.9} parent=0 // pred_region
    _
  $region13: #{_lambda_.9} parent=0 // pred_fallthru
    _
  %p17 = scmp.eq.s32.totalorder 0, 0
  // Predicated region
  $region14: #{_lambda_.9} parent=0 // pred_check
    %p18 = pneg %p17
  $region15: #{_lambda_.9} parent=0 // pred_check_branch
    %20 = sbr.rel (%p18) target = $region17
  $region16: #{_lambda_.9} parent=0 // pred_region
    %21 = vst [vmem:[#allocation2] sm:$0xff] 0.0
    %22 = vst [vmem:[#allocation2 + $0x8] sm:$0xff] 0.0
    %23 = vst [vmem:[#allocation2 + $0x10] sm:$0xff] 0.0
    %24 = vst [vmem:[#allocation2 + $0x18] sm:$0xff] 0.0
    %25 = vst [vmem:[#allocation2 + $0x20] sm:$0xff] 0.0
    %26 = vst [vmem:[#allocation2 + $0x28] sm:$0xff] 0.0
    %27 = vst [vmem:[#allocation2 + $0x30] sm:$0xff] 0.0
    %28 = vst [vmem:[#allocation2 + $0x38] sm:$0xff] 0.0
    %29 = vst [vmem:[#allocation2 + $0x40] sm:$0xff] 0.0
    %30 = vst [vmem:[#allocation2 + $0x48] sm:$0xff] 0.0
    %31 = vst [vmem:[#allocation2 + $0x50] sm:$0xff] 0.0
    %32 = vst [vmem:[#allocation2 + $0x58] sm:$0xff] 0.0
    %33 = vst [vmem:[#allocation2 + $0x60] sm:$0xff] 0.0
    %34 = vst [vmem:[#allocation2 + $0x68] sm:$0xff] 0.0
    %35 = vst [vmem:[#allocation2 + $0x70] sm:$0xff] 0.0
    %36 = vst [vmem:[#allocation2 + $0x78] sm:$0xff] 0.0
  $region17: #{_lambda_.9} parent=0 // pred_fallthru
    _
  %s37 = smul.u32 0, 128
  %v38 = vld [vmem:[#allocation2] sm:$0xff]
  %v39 = vld [vmem:[#allocation2 + $0x8] sm:$0xff]
  %v40 = vld [vmem:[#allocation2 + $0x10] sm:$0xff]
  %v41 = vld [vmem:[#allocation2 + $0x18] sm:$0xff]
  %v42 = vld [vmem:[#allocation2 + $0x20] sm:$0xff]
  %v43 = vld [vmem:[#allocation2 + $0x28] sm:$0xff]
  %v44 = vld [vmem:[#allocation2 + $0x30] sm:$0xff]
  %v45 = vld [vmem:[#allocation2 + $0x38] sm:$0xff]
  %v46 = vld [vmem:[#allocation2 + $0x40] sm:$0xff]
  %v47 = vld [vmem:[#allocation2 + $0x48] sm:$0xff]
  %v48 = vld [vmem:[#allocation2 + $0x50] sm:$0xff]
  %v49 = vld [vmem:[#allocation2 + $0x58] sm:$0xff]
  %v50 = vld [vmem:[#allocation2 + $0x60] sm:$0xff]
  %v51 = vld [vmem:[#allocation2 + $0x68] sm:$0xff]
  %v52 = vld [vmem:[#allocation2 + $0x70] sm:$0xff]
  %v53 = vld [vmem:[#allocation2 + $0x78] sm:$0xff]
  %v54 = vld [vmem:[%s0] sm:$0xf]
  %v55 = vld [vmem:[%s0 + $0x4] sm:$0xf]
  %v56 = vld [vmem:[%s0 + $0x8] sm:$0xf]
  %v57 = vld [vmem:[%s0 + $0xc] sm:$0xf]
  %v58 = vld [vmem:[%s0 + $0x10] sm:$0xf]
  %v59 = vld [vmem:[%s0 + $0x14] sm:$0xf]
  %v60 = vld [vmem:[%s0 + $0x18] sm:$0xf]
  %v61 = vld [vmem:[%s0 + $0x1c] sm:$0xf]
  %v62 = vld [vmem:[%s0 + $0x20] sm:$0xf]
  %v63 = vld [vmem:[%s0 + $0x24] sm:$0xf]
  %v64 = vld [vmem:[%s0 + $0x28] sm:$0xf]
  %v65 = vld [vmem:[%s0 + $0x2c] sm:$0xf]
  %v66 = vld [vmem:[%s0 + $0x30] sm:$0xf]
  %v67 = vld [vmem:[%s0 + $0x34] sm:$0xf]
  %v68 = vld [vmem:[%s0 + $0x38] sm:$0xf]
  %v69 = vld [vmem:[%s0 + $0x3c] sm:$0xf]
  %s70 = sshra.s32 %s37, 3
  %s71 = sand.u32 %s37, 7
  %s72 = smul.addr %s70, 4
  %s73 = scalar_lea.vmem %s1, %s72
  %v74 = vld [vmem:[%s73] sm:$0xf]
  %v75 = vld [vmem:[%s73 + $0x4] sm:$0xf]
  %v76 = vld [vmem:[%s73 + $0x8] sm:$0xf]
  %v77 = vld [vmem:[%s73 + $0xc] sm:$0xf]
  %v78 = vld [vmem:[%s73 + $0x10] sm:$0xf]
  %v79 = vld [vmem:[%s73 + $0x14] sm:$0xf]
  %v80 = vld [vmem:[%s73 + $0x18] sm:$0xf]
  %v81 = vld [vmem:[%s73 + $0x1c] sm:$0xf]
  %v82 = vld [vmem:[%s73 + $0x20] sm:$0xf]
  %v83 = vld [vmem:[%s73 + $0x24] sm:$0xf]
  %v84 = vld [vmem:[%s73 + $0x28] sm:$0xf]
  %v85 = vld [vmem:[%s73 + $0x2c] sm:$0xf]
  %v86 = vld [vmem:[%s73 + $0x30] sm:$0xf]
  %v87 = vld [vmem:[%s73 + $0x34] sm:$0xf]
  %v88 = vld [vmem:[%s73 + $0x38] sm:$0xf]
  %v89 = vld [vmem:[%s73 + $0x3c] sm:$0xf]
  %v106 = vunpack.c.l.b16 %v54
  %v107 = vunpack.c.l.b16 %v55
  %v108 = vunpack.c.l.b16 %v56
  %v109 = vunpack.c.l.b16 %v57
  %v110 = vunpack.c.l.b16 %v58
  %v111 = vunpack.c.l.b16 %v59
  %v112 = vunpack.c.l.b16 %v60
  %v113 = vunpack.c.l.b16 %v61
  %v114 = vunpack.c.l.b16 %v62
  %v115 = vunpack.c.l.b16 %v63
  %v116 = vunpack.c.l.b16 %v64
  %v117 = vunpack.c.l.b16 %v65
  %v118 = vunpack.c.l.b16 %v66
  %v119 = vunpack.c.l.b16 %v67
  %v120 = vunpack.c.l.b16 %v68
  %v121 = vunpack.c.l.b16 %v69
  %v122 = vpack.c.b16 %v107, %v106
  %v123 = vpack.c.b16 %v109, %v108
  %v124 = vpack.c.b16 %v111, %v110
  %v125 = vpack.c.b16 %v113, %v112
  %v126 = vpack.c.b16 %v115, %v114
  %v127 = vpack.c.b16 %v117, %v116
  %v128 = vpack.c.b16 %v119, %v118
  %v129 = vpack.c.b16 %v121, %v120
  %v154 = vunpack.c.l.b16 %v74
  %v155 = vunpack.c.l.b16 %v75
  %v156 = vunpack.c.l.b16 %v76
  %v157 = vunpack.c.l.b16 %v77
  %v158 = vunpack.c.l.b16 %v78
  %v159 = vunpack.c.l.b16 %v79
  %v160 = vunpack.c.l.b16 %v80
  %v161 = vunpack.c.l.b16 %v81
  %v162 = vunpack.c.l.b16 %v82
  %v163 = vunpack.c.l.b16 %v83
  %v164 = vunpack.c.l.b16 %v84
  %v165 = vunpack.c.l.b16 %v85
  %v166 = vunpack.c.l.b16 %v86
  %v167 = vunpack.c.l.b16 %v87
  %v168 = vunpack.c.l.b16 %v88
  %v169 = vunpack.c.l.b16 %v89
  %v170 = vpack.c.b16 %v155, %v154
  %v171 = vpack.c.b16 %v157, %v156
  %v172 = vpack.c.b16 %v159, %v158
  %v173 = vpack.c.b16 %v161, %v160
  %v174 = vpack.c.b16 %v163, %v162
  %v175 = vpack.c.b16 %v165, %v164
  %v176 = vpack.c.b16 %v167, %v166
  %v177 = vpack.c.b16 %v169, %v168
  %186 = vmatprep.subr.bf16.mxu0 0
  %187 = vmatpush1.bf16.msra.mxu0 %v170
  %188 = vmatprep.subr.bf16.mxu0 0
  %189 = vmatpush1.bf16.msra.mxu0 %v171
  %190 = vmatprep.subr.bf16.mxu0 0
  %191 = vmatpush1.bf16.msra.mxu0 %v172
  %192 = vmatprep.subr.bf16.mxu0 0
  %193 = vmatpush1.bf16.msra.mxu0 %v173
  %194 = vmatprep.subr.bf16.mxu0 0
  %195 = vmatpush1.bf16.msra.mxu0 %v174
  %196 = vmatprep.subr.bf16.mxu0 0
  %197 = vmatpush1.bf16.msra.mxu0 %v175
  %198 = vmatprep.subr.bf16.mxu0 0
  %199 = vmatpush1.bf16.msra.mxu0 %v176
  %200 = vmatprep.subr.bf16.mxu0 0
  %201 = vmatpush1.bf16.msra.mxu0 %v177
  %202 = vmatprep.subr.bf16.mxu0 0
  %203 = vmatpush1.bf16.msra.mxu0 0
  %204 = vmatprep.subr.bf16.mxu0 0
  %205 = vmatpush1.bf16.msra.mxu0 0
  %206 = vmatprep.subr.bf16.mxu0 0
  %207 = vmatpush1.bf16.msra.mxu0 0
  %208 = vmatprep.subr.bf16.mxu0 0
  %209 = vmatpush1.bf16.msra.mxu0 0
  %210 = vmatprep.subr.bf16.mxu0 0
  %211 = vmatpush1.bf16.msra.mxu0 0
  %212 = vmatprep.subr.bf16.mxu0 0
  %213 = vmatpush1.bf16.msra.mxu0 0
  %214 = vmatprep.subr.bf16.mxu0 0
  %215 = vmatpush1.bf16.msra.mxu0 0
  %216 = vmatprep.subr.bf16.mxu0 0
  %217 = vmatpush1.bf16.msra.mxu0 0
  %218 = vmatprep.mubr.bf16.mxu0 0
  %219 = vmatmul.mubr.bf16.gmra.mrb[0].mxu0 %v122
  %v220 = vpop.f32.mrb[0].mxu0
  %v221 = vadd.f32 0.0, %v220
  %v222 = vpop.f32.mrb[0].mxu0
  %v223 = vpop.f32.mrb[0].mxu0
  %v224 = vadd.f32 0.0, %v223
  %v225 = vpop.f32.mrb[0].mxu0
  %226 = vmatprep.mubr.bf16.mxu0 0
  %227 = vmatmul.mubr.bf16.gmra.mrb[0].mxu0 %v123
  %v228 = vpop.f32.mrb[0].mxu0
  %v229 = vadd.f32 0.0, %v228
  %v230 = vpop.f32.mrb[0].mxu0
  %v231 = vpop.f32.mrb[0].mxu0
  %v232 = vadd.f32 0.0, %v231
  %v233 = vpop.f32.mrb[0].mxu0
  %234 = vmatprep.mubr.bf16.mxu0 0
  %235 = vmatmul.mubr.bf16.gmra.mrb[0].mxu0 %v124
  %v236 = vpop.f32.mrb[0].mxu0
  %v237 = vadd.f32 0.0, %v236
  %v238 = vpop.f32.mrb[0].mxu0
  %v239 = vpop.f32.mrb[0].mxu0
  %v240 = vadd.f32 0.0, %v239
  %v241 = vpop.f32.mrb[0].mxu0
  %242 = vmatprep.mubr.bf16.mxu0 0
  %243 = vmatmul.mubr.bf16.gmra.mrb[0].mxu0 %v125
  %v244 = vpop.f32.mrb[0].mxu0
  %v245 = vadd.f32 0.0, %v244
  %v246 = vpop.f32.mrb[0].mxu0
  %v247 = vpop.f32.mrb[0].mxu0
  %v248 = vadd.f32 0.0, %v247
  %v249 = vpop.f32.mrb[0].mxu0
  %250 = vmatprep.mubr.bf16.mxu0 0
  %251 = vmatmul.mubr.bf16.gmra.mrb[0].mxu0 %v126
  %v252 = vpop.f32.mrb[0].mxu0
  %v253 = vadd.f32 0.0, %v252
  %v254 = vpop.f32.mrb[0].mxu0
  %v255 = vpop.f32.mrb[0].mxu0
  %v256 = vadd.f32 0.0, %v255
  %v257 = vpop.f32.mrb[0].mxu0
  %258 = vmatprep.mubr.bf16.mxu0 0
  %259 = vmatmul.mubr.bf16.gmra.mrb[0].mxu0 %v127
  %v260 = vpop.f32.mrb[0].mxu0
  %v261 = vadd.f32 0.0, %v260
  %v262 = vpop.f32.mrb[0].mxu0
  %v263 = vpop.f32.mrb[0].mxu0
  %v264 = vadd.f32 0.0, %v263
  %v265 = vpop.f32.mrb[0].mxu0
  %266 = vmatprep.mubr.bf16.mxu0 0
  %267 = vmatmul.mubr.bf16.gmra.mrb[0].mxu0 %v128
  %v268 = vpop.f32.mrb[0].mxu0
  %v269 = vadd.f32 0.0, %v268
  %v270 = vpop.f32.mrb[0].mxu0
  %v271 = vpop.f32.mrb[0].mxu0
  %v272 = vadd.f32 0.0, %v271
  %v273 = vpop.f32.mrb[0].mxu0
  %274 = vmatprep.mubr.bf16.mxu0 0
  %275 = vmatmul.mubr.bf16.gmra.mrb[0].mxu0 %v129
  %v276 = vpop.f32.mrb[0].mxu0
  %v277 = vadd.f32 0.0, %v276
  %v278 = vpop.f32.mrb[0].mxu0
  %v279 = vpop.f32.mrb[0].mxu0
  %v280 = vadd.f32 0.0, %v279
  %v281 = vpop.f32.mrb[0].mxu0
  %282 = vdwg.mxu0
  %v283 = vadd.f32 %v38, %v221
  %v284 = vadd.f32 %v39, %v224
  %v285 = vadd.f32 %v40, %v229
  %v286 = vadd.f32 %v41, %v232
  %v287 = vadd.f32 %v42, %v237
  %v288 = vadd.f32 %v43, %v240
  %v289 = vadd.f32 %v44, %v245
  %v290 = vadd.f32 %v45, %v248
  %v291 = vadd.f32 %v46, %v253
  %v292 = vadd.f32 %v47, %v256
  %v293 = vadd.f32 %v48, %v261
  %v294 = vadd.f32 %v49, %v264
  %v295 = vadd.f32 %v50, %v269
  %v296 = vadd.f32 %v51, %v272
  %v297 = vadd.f32 %v52, %v277
  %v298 = vadd.f32 %v53, %v280
  %299 = vst [vmem:[#allocation2] sm:$0xff] %v283
  %300 = vst [vmem:[#allocation2 + $0x8] sm:$0xff] %v284
  %301 = vst [vmem:[#allocation2 + $0x10] sm:$0xff] %v285
  %302 = vst [vmem:[#allocation2 + $0x18] sm:$0xff] %v286
  %303 = vst [vmem:[#allocation2 + $0x20] sm:$0xff] %v287
  %304 = vst [vmem:[#allocation2 + $0x28] sm:$0xff] %v288
  %305 = vst [vmem:[#allocation2 + $0x30] sm:$0xff] %v289
  %306 = vst [vmem:[#allocation2 + $0x38] sm:$0xff] %v290
  %307 = vst [vmem:[#allocation2 + $0x40] sm:$0xff] %v291
  %308 = vst [vmem:[#allocation2 + $0x48] sm:$0xff] %v292
  %309 = vst [vmem:[#allocation2 + $0x50] sm:$0xff] %v293
  %310 = vst [vmem:[#allocation2 + $0x58] sm:$0xff] %v294
  %311 = vst [vmem:[#allocation2 + $0x60] sm:$0xff] %v295
  %312 = vst [vmem:[#allocation2 + $0x68] sm:$0xff] %v296
  %313 = vst [vmem:[#allocation2 + $0x70] sm:$0xff] %v297
  %314 = vst [vmem:[#allocation2 + $0x78] sm:$0xff] %v298
  // Predicated region
  $region18: #{_lambda_.9} parent=0 // pred_check
    %p315 = pneg %p17
  $region19: #{_lambda_.9} parent=0 // pred_check_branch
    %317 = sbr.rel (%p315) target = $region21
  $region20: #{_lambda_.9} parent=0 // pred_region
    %v318 = vld [vmem:[#allocation2] sm:$0xff]
    %v319 = vld [vmem:[#allocation2 + $0x8] sm:$0xff]
    %v320 = vld [vmem:[#allocation2 + $0x10] sm:$0xff]
    %v321 = vld [vmem:[#allocation2 + $0x18] sm:$0xff]
    %v322 = vld [vmem:[#allocation2 + $0x20] sm:$0xff]
    %v323 = vld [vmem:[#allocation2 + $0x28] sm:$0xff]
    %v324 = vld [vmem:[#allocation2 + $0x30] sm:$0xff]
    %v325 = vld [vmem:[#allocation2 + $0x38] sm:$0xff]
    %v326 = vld [vmem:[#allocation2 + $0x40] sm:$0xff]
    %v327 = vld [vmem:[#allocation2 + $0x48] sm:$0xff]
    %v328 = vld [vmem:[#allocation2 + $0x50] sm:$0xff]
    %v329 = vld [vmem:[#allocation2 + $0x58] sm:$0xff]
    %v330 = vld [vmem:[#allocation2 + $0x60] sm:$0xff]
    %v331 = vld [vmem:[#allocation2 + $0x68] sm:$0xff]
    %v332 = vld [vmem:[#allocation2 + $0x70] sm:$0xff]
    %v333 = vld [vmem:[#allocation2 + $0x78] sm:$0xff]
    %v334 = vld [vmem:[%s2] sm:$0x1]
    %v336 = vlaneseq
    %v337 = vshrl.u32 %v336, 7
    %v338 = vsub.s32 0, %v337
    %v339 = vrot.slane %v334, %v338
    %v341 = vadd.f32 %v318, %v339
    %v342 = vadd.f32 %v319, %v339
    %v343 = vadd.f32 %v320, %v339
    %v344 = vadd.f32 %v321, %v339
    %v345 = vadd.f32 %v322, %v339
    %v346 = vadd.f32 %v323, %v339
    %v347 = vadd.f32 %v324, %v339
    %v348 = vadd.f32 %v325, %v339
    %v349 = vadd.f32 %v326, %v339
    %v350 = vadd.f32 %v327, %v339
    %v351 = vadd.f32 %v328, %v339
    %v352 = vadd.f32 %v329, %v339
    %v353 = vadd.f32 %v330, %v339
    %v354 = vadd.f32 %v331, %v339
    %v355 = vadd.f32 %v332, %v339
    %v356 = vadd.f32 %v333, %v339
    %v357 = vpack.c.bf16 %v342, %v341
    %v358 = vpack.c.bf16 %v344, %v343
    %v359 = vpack.c.bf16 %v346, %v345
    %v360 = vpack.c.bf16 %v348, %v347
    %v361 = vpack.c.bf16 %v350, %v349
    %v362 = vpack.c.bf16 %v352, %v351
    %v363 = vpack.c.bf16 %v354, %v353
    %v364 = vpack.c.bf16 %v356, %v355
    %v373 = vunpack.c.l.b16 %v357
    %v374 = vunpack.c.h.b16 %v357
    %v375 = vunpack.c.l.b16 %v358
    %v376 = vunpack.c.h.b16 %v358
    %v377 = vunpack.c.l.b16 %v359
    %v378 = vunpack.c.h.b16 %v359
    %v379 = vunpack.c.l.b16 %v360
    %v380 = vunpack.c.h.b16 %v360
    %v381 = vunpack.c.l.b16 %v361
    %v382 = vunpack.c.h.b16 %v361
    %v383 = vunpack.c.l.b16 %v362
    %v384 = vunpack.c.h.b16 %v362
    %v385 = vunpack.c.l.b16 %v363
    %v386 = vunpack.c.h.b16 %v363
    %v387 = vunpack.c.l.b16 %v364
    %v388 = vunpack.c.h.b16 %v364
    %v389 = vpack.c.b16 %v373, %v373
    %v390 = vpack.c.b16 %v374, %v374
    %v391 = vpack.c.b16 %v375, %v375
    %v392 = vpack.c.b16 %v376, %v376
    %v393 = vpack.c.b16 %v377, %v377
    %v394 = vpack.c.b16 %v378, %v378
    %v395 = vpack.c.b16 %v379, %v379
    %v396 = vpack.c.b16 %v380, %v380
    %v397 = vpack.c.b16 %v381, %v381
    %v398 = vpack.c.b16 %v382, %v382
    %v399 = vpack.c.b16 %v383, %v383
    %v400 = vpack.c.b16 %v384, %v384
    %v401 = vpack.c.b16 %v385, %v385
    %v402 = vpack.c.b16 %v386, %v386
    %v403 = vpack.c.b16 %v387, %v387
    %v404 = vpack.c.b16 %v388, %v388
    %421 = vst [vmem:[%s3] sm:$0xf] %v389
    %422 = vst [vmem:[%s3 + $0x4] sm:$0xf] %v390
    %423 = vst [vmem:[%s3 + $0x8] sm:$0xf] %v391
    %424 = vst [vmem:[%s3 + $0xc] sm:$0xf] %v392
    %425 = vst [vmem:[%s3 + $0x10] sm:$0xf] %v393
    %426 = vst [vmem:[%s3 + $0x14] sm:$0xf] %v394
    %427 = vst [vmem:[%s3 + $0x18] sm:$0xf] %v395
    %428 = vst [vmem:[%s3 + $0x1c] sm:$0xf] %v396
    %429 = vst [vmem:[%s3 + $0x20] sm:$0xf] %v397
    %430 = vst [vmem:[%s3 + $0x24] sm:$0xf] %v398
    %431 = vst [vmem:[%s3 + $0x28] sm:$0xf] %v399
    %432 = vst [vmem:[%s3 + $0x2c] sm:$0xf] %v400
    %433 = vst [vmem:[%s3 + $0x30] sm:$0xf] %v401
    %434 = vst [vmem:[%s3 + $0x34] sm:$0xf] %v402
    %435 = vst [vmem:[%s3 + $0x38] sm:$0xf] %v403
    %436 = vst [vmem:[%s3 + $0x3c] sm:$0xf] %v404
    %s437 = smul.u32 0, 128
    %v438 = vlaneseq
    %v439 = vshrl.u32 %v438, 7
    %v440 = vadd.s32 %v439, 8
    %v441 = vadd.s32 %v439, 16
    %v442 = vadd.s32 %v439, 24
    %v443 = vadd.s32 %v439, 32
    %v444 = vadd.s32 %v439, 40
    %v445 = vadd.s32 %v439, 48
    %v446 = vadd.s32 %v439, 56
    %v447 = vadd.s32 %v439, 64
    %v448 = vadd.s32 %v439, 72
    %v449 = vadd.s32 %v439, 80
    %v450 = vadd.s32 %v439, 88
    %v451 = vadd.s32 %v439, 96
    %v452 = vadd.s32 %v439, 104
    %v453 = vadd.s32 %v439, 112
    %v454 = vadd.s32 %v439, 120
    %v455 = vstv %s437
    %v456 = vadd.s32 %v455, %v439
    %v457 = vadd.s32 %v455, %v440
    %v458 = vadd.s32 %v455, %v441
    %v459 = vadd.s32 %v455, %v442
    %v460 = vadd.s32 %v455, %v443
    %v461 = vadd.s32 %v455, %v444
    %v462 = vadd.s32 %v455, %v445
    %v463 = vadd.s32 %v455, %v446
    %v464 = vadd.s32 %v455, %v447
    %v465 = vadd.s32 %v455, %v448
    %v466 = vadd.s32 %v455, %v449
    %v467 = vadd.s32 %v455, %v450
    %v468 = vadd.s32 %v455, %v451
    %v469 = vadd.s32 %v455, %v452
    %v470 = vadd.s32 %v455, %v453
    %v471 = vadd.s32 %v455, %v454
    %vm472 = vcmp.lt.s32.totalorder %v456, 128
    %vm473 = vcmp.lt.s32.totalorder %v457, 128
    %vm474 = vcmp.lt.s32.totalorder %v458, 128
    %vm475 = vcmp.lt.s32.totalorder %v459, 128
    %vm476 = vcmp.lt.s32.totalorder %v460, 128
    %vm477 = vcmp.lt.s32.totalorder %v461, 128
    %vm478 = vcmp.lt.s32.totalorder %v462, 128
    %vm479 = vcmp.lt.s32.totalorder %v463, 128
    %vm480 = vcmp.lt.s32.totalorder %v464, 128
    %vm481 = vcmp.lt.s32.totalorder %v465, 128
    %vm482 = vcmp.lt.s32.totalorder %v466, 128
    %vm483 = vcmp.lt.s32.totalorder %v467, 128
    %vm484 = vcmp.lt.s32.totalorder %v468, 128
    %vm485 = vcmp.lt.s32.totalorder %v469, 128
    %vm486 = vcmp.lt.s32.totalorder %v470, 128
    %vm487 = vcmp.lt.s32.totalorder %v471, 128
    %v488 = vsel %vm472, 1, 0
    %v489 = vsel %vm473, 1, 0
    %v490 = vsel %vm474, 1, 0
    %v491 = vsel %vm475, 1, 0
    %v492 = vsel %vm476, 1, 0
    %v493 = vsel %vm477, 1, 0
    %v494 = vsel %vm478, 1, 0
    %v495 = vsel %vm479, 1, 0
    %v496 = vsel %vm480, 1, 0
    %v497 = vsel %vm481, 1, 0
    %v498 = vsel %vm482, 1, 0
    %v499 = vsel %vm483, 1, 0
    %v500 = vsel %vm484, 1, 0
    %v501 = vsel %vm485, 1, 0
    %v502 = vsel %vm486, 1, 0
    %v503 = vsel %vm487, 1, 0
    %vm504 = vcmp.eq.s32.totalorder %v488, 1
    %vm505 = vcmp.eq.s32.totalorder %v489, 1
    %vm506 = vcmp.eq.s32.totalorder %v490, 1
    %vm507 = vcmp.eq.s32.totalorder %v491, 1
    %vm508 = vcmp.eq.s32.totalorder %v492, 1
    %vm509 = vcmp.eq.s32.totalorder %v493, 1
    %vm510 = vcmp.eq.s32.totalorder %v494, 1
    %vm511 = vcmp.eq.s32.totalorder %v495, 1
    %vm512 = vcmp.eq.s32.totalorder %v496, 1
    %vm513 = vcmp.eq.s32.totalorder %v497, 1
    %vm514 = vcmp.eq.s32.totalorder %v498, 1
    %vm515 = vcmp.eq.s32.totalorder %v499, 1
    %vm516 = vcmp.eq.s32.totalorder %v500, 1
    %vm517 = vcmp.eq.s32.totalorder %v501, 1
    %vm518 = vcmp.eq.s32.totalorder %v502, 1
    %vm519 = vcmp.eq.s32.totalorder %v503, 1
    %v520 = vsel %vm504, %v341, 0.0
    %v521 = vsel %vm505, %v342, 0.0
    %v522 = vsel %vm506, %v343, 0.0
    %v523 = vsel %vm507, %v344, 0.0
    %v524 = vsel %vm508, %v345, 0.0
    %v525 = vsel %vm509, %v346, 0.0
    %v526 = vsel %vm510, %v347, 0.0
    %v527 = vsel %vm511, %v348, 0.0
    %v528 = vsel %vm512, %v349, 0.0
    %v529 = vsel %vm513, %v350, 0.0
    %v530 = vsel %vm514, %v351, 0.0
    %v531 = vsel %vm515, %v352, 0.0
    %v532 = vsel %vm516, %v353, 0.0
    %v533 = vsel %vm517, %v354, 0.0
    %v534 = vsel %vm518, %v355, 0.0
    %v535 = vsel %vm519, %v356, 0.0
    %v536 = vadd.f32 %v520, %v521
    %v537 = vadd.f32 %v536, %v522
    %v538 = vadd.f32 %v537, %v523
    %v539 = vadd.f32 %v538, %v524
    %v540 = vadd.f32 %v539, %v525
    %v541 = vadd.f32 %v540, %v526
    %v542 = vadd.f32 %v541, %v527
    %v543 = vadd.f32 %v542, %v528
    %v544 = vadd.f32 %v543, %v529
    %v545 = vadd.f32 %v544, %v530
    %v546 = vadd.f32 %v545, %v531
    %v547 = vadd.f32 %v546, %v532
    %v548 = vadd.f32 %v547, %v533
    %v549 = vadd.f32 %v548, %v534
    %v550 = vadd.f32 %v549, %v535
    %v551 = vrot.slane %v550, 4
    %v552 = vadd.f32 %v550, %v551
    %v553 = vrot.slane %v552, 2
    %v554 = vadd.f32 %v552, %v553
    %v555 = vrot.slane %v554, 1
    %v556 = vadd.f32 %v554, %v555
    %v557 = vmul.f32 %v520, %v520
    %v558 = vmul.f32 %v521, %v521
    %v559 = vmul.f32 %v522, %v522
    %v560 = vmul.f32 %v523, %v523
    %v561 = vmul.f32 %v524, %v524
    %v562 = vmul.f32 %v525, %v525
    %v563 = vmul.f32 %v526, %v526
    %v564 = vmul.f32 %v527, %v527
    %v565 = vmul.f32 %v528, %v528
    %v566 = vmul.f32 %v529, %v529
    %v567 = vmul.f32 %v530, %v530
    %v568 = vmul.f32 %v531, %v531
    %v569 = vmul.f32 %v532, %v532
    %v570 = vmul.f32 %v533, %v533
    %v571 = vmul.f32 %v534, %v534
    %v572 = vmul.f32 %v535, %v535
    %v573 = vadd.f32 %v557, %v558
    %v574 = vadd.f32 %v573, %v559
    %v575 = vadd.f32 %v574, %v560
    %v576 = vadd.f32 %v575, %v561
    %v577 = vadd.f32 %v576, %v562
    %v578 = vadd.f32 %v577, %v563
    %v579 = vadd.f32 %v578, %v564
    %v580 = vadd.f32 %v579, %v565
    %v581 = vadd.f32 %v580, %v566
    %v582 = vadd.f32 %v581, %v567
    %v583 = vadd.f32 %v582, %v568
    %v584 = vadd.f32 %v583, %v569
    %v585 = vadd.f32 %v584, %v570
    %v586 = vadd.f32 %v585, %v571
    %v587 = vadd.f32 %v586, %v572
    %v588 = vrot.slane %v587, 4
    %v589 = vadd.f32 %v587, %v588
    %v590 = vrot.slane %v589, 2
    %v591 = vadd.f32 %v589, %v590
    %v592 = vrot.slane %v591, 1
    %v593 = vadd.f32 %v591, %v592
    %vm594 = vcmask 1040384
    %v595 = vsel %vm594, %v556, %v593
    %596 = vst [vmem:[%s4] sm:$0x3] %v595
  $region21: #{_lambda_.9} parent=0 // pred_fallthru
    _
  // Predicated region
  $region22: #{_lambda_.9} parent=0 // pred_check
    _
  $region23: #{_lambda_.9} parent=0 // pred_check_branch
    %598 = sbr.rel (0) target = $region25
  $region24: #{_lambda_.9} parent=0 // pred_region
    _
  $region25: #{_lambda_.9} parent=0 // pred_fallthru
    _
  // Predicated region
  $region26: #{_lambda_.9} parent=0 // pred_check
    _
  $region27: #{_lambda_.9} parent=0 // pred_check_branch
    %600 = sbr.rel (0) target = $region29
  $region28: #{_lambda_.9} parent=0 // pred_region
    _
  $region29: #{_lambda_.9} parent=0 // pred_fallthru
    _
  // Predicated region
  $region30: #{_lambda_.9} parent=0 // pred_check
    _
  $region31: #{_lambda_.9} parent=0 // pred_check_branch
    %602 = sbr.rel (0) target = $region33
  $region32: #{_lambda_.9} parent=0 // pred_region
    _
  $region33: #{_lambda_.9} parent=0 // pred_fallthru
    _
  // Predicated region
  $region34: #{_lambda_.9} parent=0 // pred_check
    _
  $region35: #{_lambda_.9} parent=0 // pred_check_branch
    %604 = sbr.rel (0) target = $region37
  $region36: #{_lambda_.9} parent=0 // pred_region
    _
  $region37: #{_lambda_.9} parent=0 // pred_fallthru
    _

// kernel: _lambda_.10
$region0: #{_lambda_.10}
  #allocation0 [shape = 'u32[]', space=smem, size = 0x4, offset = 0x4, fixed_abs, tag = 'smem constant byte address 0x4 - core index']
  #allocation1 [shape = 'u32[144,128]{1,0:T(1,128)}', space=vmem, size = 0x12000, scoped, tag = 'internal scratch']
  %s0 = inlined_call_operand.vmem [shape: bf16[128,128], index: 0, kind: input, shape index: {}]
  %s1 = inlined_call_operand.vmem [shape: f32[2,128], index: 1, kind: input, shape index: {}]
  %s2 = inlined_call_operand.vmem [shape: f32[1,128], index: 2, kind: input, shape index: {}]
  %s3 = inlined_call_operand.vmem [shape: f32[1,128], index: 3, kind: input, shape index: {}]
  %s4 = inlined_call_operand.vmem [shape: bf16[128,128], index: 4, kind: output, shape index: {}]
  %s5 = sld [smem:[#allocation0]]
  $region26: #{_lambda_.10} parent=0
    _
  %s7 = ssub.s32 1, %s5
  %s8 = scalar_select 0, %s7, %s5
  // Predicated region
  $region2: #{_lambda_.10} parent=0 // pred_check
    _
  $region3: #{_lambda_.10} parent=0 // pred_check_branch
    %10 = sbr.rel (0) target = $region5
  $region4: #{_lambda_.10} parent=0 // pred_region
    _
  $region5: #{_lambda_.10} parent=0 // pred_fallthru
    _
  // Predicated region
  $region6: #{_lambda_.10} parent=0 // pred_check
    _
  $region7: #{_lambda_.10} parent=0 // pred_check_branch
    %12 = sbr.rel (0) target = $region9
  $region8: #{_lambda_.10} parent=0 // pred_region
    _
  $region9: #{_lambda_.10} parent=0 // pred_fallthru
    _
  // Predicated region
  $region10: #{_lambda_.10} parent=0 // pred_check
    _
  $region11: #{_lambda_.10} parent=0 // pred_check_branch
    %14 = sbr.rel (0) target = $region13
  $region12: #{_lambda_.10} parent=0 // pred_region
    _
  $region13: #{_lambda_.10} parent=0 // pred_fallthru
    _
  // Predicated region
  $region14: #{_lambda_.10} parent=0 // pred_check
    _
  $region15: #{_lambda_.10} parent=0 // pred_check_branch
    %16 = sbr.rel (0) target = $region17
  $region16: #{_lambda_.10} parent=0 // pred_region
    _
  $region17: #{_lambda_.10} parent=0 // pred_fallthru
    _
  %v17 = vld [vmem:[%s0] sm:$0xf]
  %v18 = vld [vmem:[%s0 + $0x4] sm:$0xf]
  %v19 = vld [vmem:[%s0 + $0x8] sm:$0xf]
  %v20 = vld [vmem:[%s0 + $0xc] sm:$0xf]
  %v21 = vld [vmem:[%s0 + $0x10] sm:$0xf]
  %v22 = vld [vmem:[%s0 + $0x14] sm:$0xf]
  %v23 = vld [vmem:[%s0 + $0x18] sm:$0xf]
  %v24 = vld [vmem:[%s0 + $0x1c] sm:$0xf]
  %v25 = vld [vmem:[%s0 + $0x20] sm:$0xf]
  %v26 = vld [vmem:[%s0 + $0x24] sm:$0xf]
  %v27 = vld [vmem:[%s0 + $0x28] sm:$0xf]
  %v28 = vld [vmem:[%s0 + $0x2c] sm:$0xf]
  %v29 = vld [vmem:[%s0 + $0x30] sm:$0xf]
  %v30 = vld [vmem:[%s0 + $0x34] sm:$0xf]
  %v31 = vld [vmem:[%s0 + $0x38] sm:$0xf]
  %v32 = vld [vmem:[%s0 + $0x3c] sm:$0xf]
  %v33 = vunpack.c.l.bf16 %v17
  %v34 = vunpack.c.l.bf16 %v18
  %v35 = vunpack.c.l.bf16 %v19
  %v36 = vunpack.c.l.bf16 %v20
  %v37 = vunpack.c.l.bf16 %v21
  %v38 = vunpack.c.l.bf16 %v22
  %v39 = vunpack.c.l.bf16 %v23
  %v40 = vunpack.c.l.bf16 %v24
  %v41 = vunpack.c.l.bf16 %v25
  %v42 = vunpack.c.l.bf16 %v26
  %v43 = vunpack.c.l.bf16 %v27
  %v44 = vunpack.c.l.bf16 %v28
  %v45 = vunpack.c.l.bf16 %v29
  %v46 = vunpack.c.l.bf16 %v30
  %v47 = vunpack.c.l.bf16 %v31
  %v48 = vunpack.c.l.bf16 %v32
  %v49 = vld [vmem:[%s1] sm:$0x1]
  %v50 = vld [vmem:[%s1 + $0x1] sm:$0x1]
  %v51 = vlaneseq
  %v52 = vshrl.u32 %v51, 7
  %v53 = vsub.s32 0, %v52
  %v54 = vrot.slane %v49, %v53
  %v55 = vsub.f32 %v33, %v54
  %v56 = vsub.f32 %v34, %v54
  %v57 = vsub.f32 %v35, %v54
  %v58 = vsub.f32 %v36, %v54
  %v59 = vsub.f32 %v37, %v54
  %v60 = vsub.f32 %v38, %v54
  %v61 = vsub.f32 %v39, %v54
  %v62 = vsub.f32 %v40, %v54
  %v63 = vsub.f32 %v41, %v54
  %v64 = vsub.f32 %v42, %v54
  %v65 = vsub.f32 %v43, %v54
  %v66 = vsub.f32 %v44, %v54
  %v67 = vsub.f32 %v45, %v54
  %v68 = vsub.f32 %v46, %v54
  %v69 = vsub.f32 %v47, %v54
  %v70 = vsub.f32 %v48, %v54
  %v71 = vld [vmem:[%s2] sm:$0x1]
  %v72 = vmul.f32 %v50, %v71
  %v73 = vlaneseq
  %v74 = vshrl.u32 %v73, 7
  %v75 = vsub.s32 0, %v74
  %v76 = vrot.slane %v72, %v75
  %v77 = vmul.f32 %v55, %v76
  %v78 = vmul.f32 %v56, %v76
  %v79 = vmul.f32 %v57, %v76
  %v80 = vmul.f32 %v58, %v76
  %v81 = vmul.f32 %v59, %v76
  %v82 = vmul.f32 %v60, %v76
  %v83 = vmul.f32 %v61, %v76
  %v84 = vmul.f32 %v62, %v76
  %v85 = vmul.f32 %v63, %v76
  %v86 = vmul.f32 %v64, %v76
  %v87 = vmul.f32 %v65, %v76
  %v88 = vmul.f32 %v66, %v76
  %v89 = vmul.f32 %v67, %v76
  %v90 = vmul.f32 %v68, %v76
  %v91 = vmul.f32 %v69, %v76
  %v92 = vmul.f32 %v70, %v76
  %v93 = vld [vmem:[%s3] sm:$0x1]
  %v95 = vlaneseq
  %v96 = vshrl.u32 %v95, 7
  %v97 = vsub.s32 0, %v96
  %v98 = vrot.slane %v93, %v97
  %v100 = vadd.f32 %v77, %v98
  %v101 = vadd.f32 %v78, %v98
  %v102 = vadd.f32 %v79, %v98
  %v103 = vadd.f32 %v80, %v98
  %v104 = vadd.f32 %v81, %v98
  %v105 = vadd.f32 %v82, %v98
  %v106 = vadd.f32 %v83, %v98
  %v107 = vadd.f32 %v84, %v98
  %v108 = vadd.f32 %v85, %v98
  %v109 = vadd.f32 %v86, %v98
  %v110 = vadd.f32 %v87, %v98
  %v111 = vadd.f32 %v88, %v98
  %v112 = vadd.f32 %v89, %v98
  %v113 = vadd.f32 %v90, %v98
  %v114 = vadd.f32 %v91, %v98
  %v115 = vadd.f32 %v92, %v98
  %vm116 = vcmp.ge.f32.partialorder %v100, 0.0
  %vm117 = vcmp.ge.f32.partialorder %v101, 0.0
  %vm118 = vcmp.ge.f32.partialorder %v102, 0.0
  %vm119 = vcmp.ge.f32.partialorder %v103, 0.0
  %vm120 = vcmp.ge.f32.partialorder %v104, 0.0
  %vm121 = vcmp.ge.f32.partialorder %v105, 0.0
  %vm122 = vcmp.ge.f32.partialorder %v106, 0.0
  %vm123 = vcmp.ge.f32.partialorder %v107, 0.0
  %vm124 = vcmp.ge.f32.partialorder %v108, 0.0
  %vm125 = vcmp.ge.f32.partialorder %v109, 0.0
  %vm126 = vcmp.ge.f32.partialorder %v110, 0.0
  %vm127 = vcmp.ge.f32.partialorder %v111, 0.0
  %vm128 = vcmp.ge.f32.partialorder %v112, 0.0
  %vm129 = vcmp.ge.f32.partialorder %v113, 0.0
  %vm130 = vcmp.ge.f32.partialorder %v114, 0.0
  %vm131 = vcmp.ge.f32.partialorder %v115, 0.0
  %v132 = vmul.f32 %v100, 0.2
  %v133 = vmul.f32 %v101, 0.2
  %v134 = vmul.f32 %v102, 0.2
  %v135 = vmul.f32 %v103, 0.2
  %v136 = vmul.f32 %v104, 0.2
  %v137 = vmul.f32 %v105, 0.2
  %v138 = vmul.f32 %v106, 0.2
  %v139 = vmul.f32 %v107, 0.2
  %v140 = vmul.f32 %v108, 0.2
  %v141 = vmul.f32 %v109, 0.2
  %v142 = vmul.f32 %v110, 0.2
  %v143 = vmul.f32 %v111, 0.2
  %v144 = vmul.f32 %v112, 0.2
  %v145 = vmul.f32 %v113, 0.2
  %v146 = vmul.f32 %v114, 0.2
  %v147 = vmul.f32 %v115, 0.2
  %v148 = vsel %vm116, %v100, %v132
  %v149 = vsel %vm117, %v101, %v133
  %v150 = vsel %vm118, %v102, %v134
  %v151 = vsel %vm119, %v103, %v135
  %v152 = vsel %vm120, %v104, %v136
  %v153 = vsel %vm121, %v105, %v137
  %v154 = vsel %vm122, %v106, %v138
  %v155 = vsel %vm123, %v107, %v139
  %v156 = vsel %vm124, %v108, %v140
  %v157 = vsel %vm125, %v109, %v141
  %v158 = vsel %vm126, %v110, %v142
  %v159 = vsel %vm127, %v111, %v143
  %v160 = vsel %vm128, %v112, %v144
  %v161 = vsel %vm129, %v113, %v145
  %v162 = vsel %vm130, %v114, %v146
  %v163 = vsel %vm131, %v115, %v147
  %v164 = vpack.c.bf16 %v149, %v148
  %v165 = vpack.c.bf16 %v151, %v150
  %v166 = vpack.c.bf16 %v153, %v152
  %v167 = vpack.c.bf16 %v155, %v154
  %v168 = vpack.c.bf16 %v157, %v156
  %v169 = vpack.c.bf16 %v159, %v158
  %v170 = vpack.c.bf16 %v161, %v160
  %v171 = vpack.c.bf16 %v163, %v162
  %v180 = vunpack.c.l.b16 %v164
  %v181 = vunpack.c.h.b16 %v164
  %v182 = vunpack.c.l.b16 %v165
  %v183 = vunpack.c.h.b16 %v165
  %v184 = vunpack.c.l.b16 %v166
  %v185 = vunpack.c.h.b16 %v166
  %v186 = vunpack.c.l.b16 %v167
  %v187 = vunpack.c.h.b16 %v167
  %v188 = vunpack.c.l.b16 %v168
  %v189 = vunpack.c.h.b16 %v168
  %v190 = vunpack.c.l.b16 %v169
  %v191 = vunpack.c.h.b16 %v169
  %v192 = vunpack.c.l.b16 %v170
  %v193 = vunpack.c.h.b16 %v170
  %v194 = vunpack.c.l.b16 %v171
  %v195 = vunpack.c.h.b16 %v171
  %v196 = vpack.c.b16 %v180, %v180
  %v197 = vpack.c.b16 %v181, %v181
  %v198 = vpack.c.b16 %v182, %v182
  %v199 = vpack.c.b16 %v183, %v183
  %v200 = vpack.c.b16 %v184, %v184
  %v201 = vpack.c.b16 %v185, %v185
  %v202 = vpack.c.b16 %v186, %v186
  %v203 = vpack.c.b16 %v187, %v187
  %v204 = vpack.c.b16 %v188, %v188
  %v205 = vpack.c.b16 %v189, %v189
  %v206 = vpack.c.b16 %v190, %v190
  %v207 = vpack.c.b16 %v191, %v191
  %v208 = vpack.c.b16 %v192, %v192
  %v209 = vpack.c.b16 %v193, %v193
  %v210 = vpack.c.b16 %v194, %v194
  %v211 = vpack.c.b16 %v195, %v195
  %228 = vst [vmem:[%s4] sm:$0xf] %v196
  %229 = vst [vmem:[%s4 + $0x4] sm:$0xf] %v197
  %230 = vst [vmem:[%s4 + $0x8] sm:$0xf] %v198
  %231 = vst [vmem:[%s4 + $0xc] sm:$0xf] %v199
  %232 = vst [vmem:[%s4 + $0x10] sm:$0xf] %v200
  %233 = vst [vmem:[%s4 + $0x14] sm:$0xf] %v201
  %234 = vst [vmem:[%s4 + $0x18] sm:$0xf] %v202
  %235 = vst [vmem:[%s4 + $0x1c] sm:$0xf] %v203
  %236 = vst [vmem:[%s4 + $0x20] sm:$0xf] %v204
  %237 = vst [vmem:[%s4 + $0x24] sm:$0xf] %v205
  %238 = vst [vmem:[%s4 + $0x28] sm:$0xf] %v206
  %239 = vst [vmem:[%s4 + $0x2c] sm:$0xf] %v207
  %240 = vst [vmem:[%s4 + $0x30] sm:$0xf] %v208
  %241 = vst [vmem:[%s4 + $0x34] sm:$0xf] %v209
  %242 = vst [vmem:[%s4 + $0x38] sm:$0xf] %v210
  %243 = vst [vmem:[%s4 + $0x3c] sm:$0xf] %v211
  // Predicated region
  $region18: #{_lambda_.10} parent=0 // pred_check
    _
  $region19: #{_lambda_.10} parent=0 // pred_check_branch
    %245 = sbr.rel (0) target = $region21
  $region20: #{_lambda_.10} parent=0 // pred_region
    _
  $region21: #{_lambda_.10} parent=0 // pred_fallthru
    _
  // Predicated region
  $region22: #{_lambda_.10} parent=0 // pred_check
    _
  $region23: #{_lambda_.10} parent=0 // pred_check_branch
    %247 = sbr.rel (0) target = $region25
  $region24: #{_lambda_.10} parent=0 // pred_region
    _
  $region25: #{_lambda_.10} parent=0 // pred_fallthru
    _

// kernel: _lambda_.12
$region0: #{_lambda_.12}
  #allocation0 [shape = 'u32[]', space=smem, size = 0x4, offset = 0x4, fixed_abs, tag = 'smem constant byte address 0x4 - core index']
  #allocation1 [shape = 'u32[144,128]{1,0:T(1,128)}', space=vmem, size = 0x12000, scoped, tag = 'internal scratch']
  %s0 = inlined_call_operand.vmem [shape: bf16[32,128], index: 0, kind: input, shape index: {}]
  %s1 = inlined_call_operand.vmem [shape: f32[2,128], index: 1, kind: input, shape index: {}]
  %s2 = inlined_call_operand.vmem [shape: f32[1,128], index: 2, kind: input, shape index: {}]
  %s3 = inlined_call_operand.vmem [shape: f32[1,128], index: 3, kind: input, shape index: {}]
  %s4 = inlined_call_operand.vmem [shape: bf16[32,128], index: 4, kind: output, shape index: {}]
  %s5 = sld [smem:[#allocation0]]
  $region26: #{_lambda_.12} parent=0
    _
  %s7 = ssub.s32 1, %s5
  %s8 = scalar_select 0, %s7, %s5
  // Predicated region
  $region2: #{_lambda_.12} parent=0 // pred_check
    _
  $region3: #{_lambda_.12} parent=0 // pred_check_branch
    %10 = sbr.rel (0) target = $region5
  $region4: #{_lambda_.12} parent=0 // pred_region
    _
  $region5: #{_lambda_.12} parent=0 // pred_fallthru
    _
  // Predicated region
  $region6: #{_lambda_.12} parent=0 // pred_check
    _
  $region7: #{_lambda_.12} parent=0 // pred_check_branch
    %12 = sbr.rel (0) target = $region9
  $region8: #{_lambda_.12} parent=0 // pred_region
    _
  $region9: #{_lambda_.12} parent=0 // pred_fallthru
    _
  // Predicated region
  $region10: #{_lambda_.12} parent=0 // pred_check
    _
  $region11: #{_lambda_.12} parent=0 // pred_check_branch
    %14 = sbr.rel (0) target = $region13
  $region12: #{_lambda_.12} parent=0 // pred_region
    _
  $region13: #{_lambda_.12} parent=0 // pred_fallthru
    _
  // Predicated region
  $region14: #{_lambda_.12} parent=0 // pred_check
    _
  $region15: #{_lambda_.12} parent=0 // pred_check_branch
    %16 = sbr.rel (0) target = $region17
  $region16: #{_lambda_.12} parent=0 // pred_region
    _
  $region17: #{_lambda_.12} parent=0 // pred_fallthru
    _
  %v17 = vld [vmem:[%s0] sm:$0xf]
  %v18 = vld [vmem:[%s0 + $0x4] sm:$0xf]
  %v19 = vld [vmem:[%s0 + $0x8] sm:$0xf]
  %v20 = vld [vmem:[%s0 + $0xc] sm:$0xf]
  %v21 = vunpack.c.l.bf16 %v17
  %v22 = vunpack.c.l.bf16 %v18
  %v23 = vunpack.c.l.bf16 %v19
  %v24 = vunpack.c.l.bf16 %v20
  %v25 = vld [vmem:[%s1] sm:$0x1]
  %v26 = vld [vmem:[%s1 + $0x1] sm:$0x1]
  %v27 = vlaneseq
  %v28 = vshrl.u32 %v27, 7
  %v29 = vsub.s32 0, %v28
  %v30 = vrot.slane %v25, %v29
  %v31 = vsub.f32 %v21, %v30
  %v32 = vsub.f32 %v22, %v30
  %v33 = vsub.f32 %v23, %v30
  %v34 = vsub.f32 %v24, %v30
  %v35 = vld [vmem:[%s2] sm:$0x1]
  %v36 = vmul.f32 %v26, %v35
  %v37 = vlaneseq
  %v38 = vshrl.u32 %v37, 7
  %v39 = vsub.s32 0, %v38
  %v40 = vrot.slane %v36, %v39
  %v41 = vmul.f32 %v31, %v40
  %v42 = vmul.f32 %v32, %v40
  %v43 = vmul.f32 %v33, %v40
  %v44 = vmul.f32 %v34, %v40
  %v45 = vld [vmem:[%s3] sm:$0x1]
  %v47 = vlaneseq
  %v48 = vshrl.u32 %v47, 7
  %v49 = vsub.s32 0, %v48
  %v50 = vrot.slane %v45, %v49
  %v52 = vadd.f32 %v41, %v50
  %v53 = vadd.f32 %v42, %v50
  %v54 = vadd.f32 %v43, %v50
  %v55 = vadd.f32 %v44, %v50
  %vm56 = vcmp.ge.f32.partialorder %v52, 0.0
  %vm57 = vcmp.ge.f32.partialorder %v53, 0.0
  %vm58 = vcmp.ge.f32.partialorder %v54, 0.0
  %vm59 = vcmp.ge.f32.partialorder %v55, 0.0
  %v60 = vmul.f32 %v52, 0.2
  %v61 = vmul.f32 %v53, 0.2
  %v62 = vmul.f32 %v54, 0.2
  %v63 = vmul.f32 %v55, 0.2
  %v64 = vsel %vm56, %v52, %v60
  %v65 = vsel %vm57, %v53, %v61
  %v66 = vsel %vm58, %v54, %v62
  %v67 = vsel %vm59, %v55, %v63
  %v68 = vpack.c.bf16 %v65, %v64
  %v69 = vpack.c.bf16 %v67, %v66
  %v72 = vunpack.c.l.b16 %v68
  %v73 = vunpack.c.h.b16 %v68
  %v74 = vunpack.c.l.b16 %v69
  %v75 = vunpack.c.h.b16 %v69
  %v76 = vpack.c.b16 %v72, %v72
  %v77 = vpack.c.b16 %v73, %v73
  %v78 = vpack.c.b16 %v74, %v74
  %v79 = vpack.c.b16 %v75, %v75
  %84 = vst [vmem:[%s4] sm:$0xf] %v76
  %85 = vst [vmem:[%s4 + $0x4] sm:$0xf] %v77
  %86 = vst [vmem:[%s4 + $0x8] sm:$0xf] %v78
  %87 = vst [vmem:[%s4 + $0xc] sm:$0xf] %v79
  // Predicated region
  $region18: #{_lambda_.12} parent=0 // pred_check
    _
  $region19: #{_lambda_.12} parent=0 // pred_check_branch
    %89 = sbr.rel (0) target = $region21
  $region20: #{_lambda_.12} parent=0 // pred_region
    _
  $region21: #{_lambda_.12} parent=0 // pred_fallthru
    _
  // Predicated region
  $region22: #{_lambda_.12} parent=0 // pred_check
    _
  $region23: #{_lambda_.12} parent=0 // pred_check_branch
    %91 = sbr.rel (0) target = $region25
  $region24: #{_lambda_.12} parent=0 // pred_region
    _
  $region25: #{_lambda_.12} parent=0 // pred_fallthru
    _

// kernel: _lambda_.11
$region0: #{_lambda_.11}
  #allocation0 [shape = 'u32[]', space=smem, size = 0x4, offset = 0x4, fixed_abs, tag = 'smem constant byte address 0x4 - core index']
  #allocation1 [shape = 'u32[144,128]{1,0:T(1,128)}', space=vmem, size = 0x12000, scoped, tag = 'internal scratch']
  #allocation2 [shape = 'f32[32,128]{1,0:T(8,128)}', space=vmem, size = 0x4000, scoped, tag = 'scratch operand']
  %s0 = inlined_call_operand.vmem [shape: bf16[32,256], index: 0, kind: input, shape index: {}]
  %s1 = inlined_call_operand.vmem [shape: bf16[256,128], index: 1, kind: input, shape index: {}]
  %s2 = inlined_call_operand.vmem [shape: f32[1,128], index: 2, kind: input, shape index: {}]
  %s3 = inlined_call_operand.vmem [shape: bf16[32,128], index: 3, kind: output, shape index: {0}]
  %s4 = inlined_call_operand.vmem [shape: f32[1,2,128], index: 4, kind: output, shape index: {1}]
  %5 = xla_tuple %s3, %s4
  %s6 = sld [smem:[#allocation0]]
  $region38: #{_lambda_.11} parent=0
    _
  %s8 = ssub.s32 1, %s6
  %s9 = scalar_select 0, %s8, %s6
  // Predicated region
  $region2: #{_lambda_.11} parent=0 // pred_check
    _
  $region3: #{_lambda_.11} parent=0 // pred_check_branch
    %11 = sbr.rel (0) target = $region5
  $region4: #{_lambda_.11} parent=0 // pred_region
    _
  $region5: #{_lambda_.11} parent=0 // pred_fallthru
    _
  // Predicated region
  $region6: #{_lambda_.11} parent=0 // pred_check
    _
  $region7: #{_lambda_.11} parent=0 // pred_check_branch
    %13 = sbr.rel (0) target = $region9
  $region8: #{_lambda_.11} parent=0 // pred_region
    _
  $region9: #{_lambda_.11} parent=0 // pred_fallthru
    _
  // Predicated region
  $region10: #{_lambda_.11} parent=0 // pred_check
    _
  $region11: #{_lambda_.11} parent=0 // pred_check_branch
    %15 = sbr.rel (0) target = $region13
  $region12: #{_lambda_.11} parent=0 // pred_region
    _
  $region13: #{_lambda_.11} parent=0 // pred_fallthru
    _
  %p17 = scmp.eq.s32.totalorder 0, 0
  // Predicated region
  $region14: #{_lambda_.11} parent=0 // pred_check
    %p18 = pneg %p17
  $region15: #{_lambda_.11} parent=0 // pred_check_branch
    %20 = sbr.rel (%p18) target = $region17
  $region16: #{_lambda_.11} parent=0 // pred_region
    %21 = vst [vmem:[#allocation2] sm:$0xff] 0.0
    %22 = vst [vmem:[#allocation2 + $0x8] sm:$0xff] 0.0
    %23 = vst [vmem:[#allocation2 + $0x10] sm:$0xff] 0.0
    %24 = vst [vmem:[#allocation2 + $0x18] sm:$0xff] 0.0
  $region17: #{_lambda_.11} parent=0 // pred_fallthru
    _
  %s25 = smul.u32 0, 256
  %v26 = vld [vmem:[#allocation2] sm:$0xff]
  %v27 = vld [vmem:[#allocation2 + $0x8] sm:$0xff]
  %v28 = vld [vmem:[#allocation2 + $0x10] sm:$0xff]
  %v29 = vld [vmem:[#allocation2 + $0x18] sm:$0xff]
  %v30 = vld [vmem:[%s0] sm:$0xff]
  %v31 = vld [vmem:[%s0 + $0x8] sm:$0xff]
  %v32 = vld [vmem:[%s0 + $0x10] sm:$0xff]
  %v33 = vld [vmem:[%s0 + $0x18] sm:$0xff]
  %s34 = sshra.s32 %s25, 3
  %s35 = sand.u32 %s25, 7
  %s36 = smul.addr %s34, 4
  %s37 = scalar_lea.vmem %s1, %s36
  %v38 = vld [vmem:[%s37] sm:$0xf]
  %v39 = vld [vmem:[%s37 + $0x4] sm:$0xf]
  %v40 = vld [vmem:[%s37 + $0x8] sm:$0xf]
  %v41 = vld [vmem:[%s37 + $0xc] sm:$0xf]
  %v42 = vld [vmem:[%s37 + $0x10] sm:$0xf]
  %v43 = vld [vmem:[%s37 + $0x14] sm:$0xf]
  %v44 = vld [vmem:[%s37 + $0x18] sm:$0xf]
  %v45 = vld [vmem:[%s37 + $0x1c] sm:$0xf]
  %v46 = vld [vmem:[%s37 + $0x20] sm:$0xf]
  %v47 = vld [vmem:[%s37 + $0x24] sm:$0xf]
  %v48 = vld [vmem:[%s37 + $0x28] sm:$0xf]
  %v49 = vld [vmem:[%s37 + $0x2c] sm:$0xf]
  %v50 = vld [vmem:[%s37 + $0x30] sm:$0xf]
  %v51 = vld [vmem:[%s37 + $0x34] sm:$0xf]
  %v52 = vld [vmem:[%s37 + $0x38] sm:$0xf]
  %v53 = vld [vmem:[%s37 + $0x3c] sm:$0xf]
  %v54 = vld [vmem:[%s37 + $0x40] sm:$0xf]
  %v55 = vld [vmem:[%s37 + $0x44] sm:$0xf]
  %v56 = vld [vmem:[%s37 + $0x48] sm:$0xf]
  %v57 = vld [vmem:[%s37 + $0x4c] sm:$0xf]
  %v58 = vld [vmem:[%s37 + $0x50] sm:$0xf]
  %v59 = vld [vmem:[%s37 + $0x54] sm:$0xf]
  %v60 = vld [vmem:[%s37 + $0x58] sm:$0xf]
  %v61 = vld [vmem:[%s37 + $0x5c] sm:$0xf]
  %v62 = vld [vmem:[%s37 + $0x60] sm:$0xf]
  %v63 = vld [vmem:[%s37 + $0x64] sm:$0xf]
  %v64 = vld [vmem:[%s37 + $0x68] sm:$0xf]
  %v65 = vld [vmem:[%s37 + $0x6c] sm:$0xf]
  %v66 = vld [vmem:[%s37 + $0x70] sm:$0xf]
  %v67 = vld [vmem:[%s37 + $0x74] sm:$0xf]
  %v68 = vld [vmem:[%s37 + $0x78] sm:$0xf]
  %v69 = vld [vmem:[%s37 + $0x7c] sm:$0xf]
  %v74 = vunpack.c.l.b16 %v30
  %v75 = vunpack.c.h.b16 %v30
  %v76 = vunpack.c.l.b16 %v31
  %v77 = vunpack.c.h.b16 %v31
  %v78 = vunpack.c.l.b16 %v32
  %v79 = vunpack.c.h.b16 %v32
  %v80 = vunpack.c.l.b16 %v33
  %v81 = vunpack.c.h.b16 %v33
  %v82 = vpack.c.b16 %v76, %v74
  %v83 = vpack.c.b16 %v77, %v75
  %v84 = vpack.c.b16 %v80, %v78
  %v85 = vpack.c.b16 %v81, %v79
  %v122 = vunpack.c.l.b16 %v38
  %v123 = vunpack.c.l.b16 %v39
  %v124 = vunpack.c.l.b16 %v40
  %v125 = vunpack.c.l.b16 %v41
  %v126 = vunpack.c.l.b16 %v42
  %v127 = vunpack.c.l.b16 %v43
  %v128 = vunpack.c.l.b16 %v44
  %v129 = vunpack.c.l.b16 %v45
  %v130 = vunpack.c.l.b16 %v46
  %v131 = vunpack.c.l.b16 %v47
  %v132 = vunpack.c.l.b16 %v48
  %v133 = vunpack.c.l.b16 %v49
  %v134 = vunpack.c.l.b16 %v50
  %v135 = vunpack.c.l.b16 %v51
  %v136 = vunpack.c.l.b16 %v52
  %v137 = vunpack.c.l.b16 %v53
  %v138 = vunpack.c.l.b16 %v54
  %v139 = vunpack.c.l.b16 %v55
  %v140 = vunpack.c.l.b16 %v56
  %v141 = vunpack.c.l.b16 %v57
  %v142 = vunpack.c.l.b16 %v58
  %v143 = vunpack.c.l.b16 %v59
  %v144 = vunpack.c.l.b16 %v60
  %v145 = vunpack.c.l.b16 %v61
  %v146 = vunpack.c.l.b16 %v62
  %v147 = vunpack.c.l.b16 %v63
  %v148 = vunpack.c.l.b16 %v64
  %v149 = vunpack.c.l.b16 %v65
  %v150 = vunpack.c.l.b16 %v66
  %v151 = vunpack.c.l.b16 %v67
  %v152 = vunpack.c.l.b16 %v68
  %v153 = vunpack.c.l.b16 %v69
  %v154 = vpack.c.b16 %v123, %v122
  %v155 = vpack.c.b16 %v125, %v124
  %v156 = vpack.c.b16 %v127, %v126
  %v157 = vpack.c.b16 %v129, %v128
  %v158 = vpack.c.b16 %v131, %v130
  %v159 = vpack.c.b16 %v133, %v132
  %v160 = vpack.c.b16 %v135, %v134
  %v161 = vpack.c.b16 %v137, %v136
  %v162 = vpack.c.b16 %v139, %v138
  %v163 = vpack.c.b16 %v141, %v140
  %v164 = vpack.c.b16 %v143, %v142
  %v165 = vpack.c.b16 %v145, %v144
  %v166 = vpack.c.b16 %v147, %v146
  %v167 = vpack.c.b16 %v149, %v148
  %v168 = vpack.c.b16 %v151, %v150
  %v169 = vpack.c.b16 %v153, %v152
  %186 = vmatprep.subr.bf16.mxu0 0
  %187 = vmatpush1.bf16.msra.mxu0 %v154
  %188 = vmatprep.subr.bf16.mxu0 0
  %189 = vmatpush1.bf16.msra.mxu0 %v155
  %190 = vmatprep.subr.bf16.mxu0 0
  %191 = vmatpush1.bf16.msra.mxu0 %v156
  %192 = vmatprep.subr.bf16.mxu0 0
  %193 = vmatpush1.bf16.msra.mxu0 %v157
  %194 = vmatprep.subr.bf16.mxu0 0
  %195 = vmatpush1.bf16.msra.mxu0 %v158
  %196 = vmatprep.subr.bf16.mxu0 0
  %197 = vmatpush1.bf16.msra.mxu0 %v159
  %198 = vmatprep.subr.bf16.mxu0 0
  %199 = vmatpush1.bf16.msra.mxu0 %v160
  %200 = vmatprep.subr.bf16.mxu0 0
  %201 = vmatpush1.bf16.msra.mxu0 %v161
  %202 = vmatprep.subr.bf16.mxu0 0
  %203 = vmatpush1.bf16.msra.mxu0 %v162
  %204 = vmatprep.subr.bf16.mxu0 0
  %205 = vmatpush1.bf16.msra.mxu0 %v163
  %206 = vmatprep.subr.bf16.mxu0 0
  %207 = vmatpush1.bf16.msra.mxu0 %v164
  %208 = vmatprep.subr.bf16.mxu0 0
  %209 = vmatpush1.bf16.msra.mxu0 %v165
  %210 = vmatprep.subr.bf16.mxu0 0
  %211 = vmatpush1.bf16.msra.mxu0 %v166
  %212 = vmatprep.subr.bf16.mxu0 0
  %213 = vmatpush1.bf16.msra.mxu0 %v167
  %214 = vmatprep.subr.bf16.mxu0 0
  %215 = vmatpush1.bf16.msra.mxu0 %v168
  %216 = vmatprep.subr.bf16.mxu0 0
  %217 = vmatpush1.bf16.msra.mxu0 %v169
  %218 = vmatprep.mubr.bf16.mxu0 %v83
  %219 = vmatmul.mubr.bf16.gmra.mrb[0].mxu0 %v82
  %v220 = vpop.f32.mrb[0].mxu0
  %v221 = vadd.f32 0.0, %v220
  %v222 = vpop.f32.mrb[0].mxu0
  %v223 = vpop.f32.mrb[0].mxu0
  %v224 = vadd.f32 0.0, %v223
  %v225 = vpop.f32.mrb[0].mxu0
  %226 = vmatprep.mubr.bf16.mxu0 %v85
  %227 = vmatmul.mubr.bf16.gmra.mrb[0].mxu0 %v84
  %v228 = vpop.f32.mrb[0].mxu0
  %v229 = vadd.f32 0.0, %v228
  %v230 = vpop.f32.mrb[0].mxu0
  %v231 = vpop.f32.mrb[0].mxu0
  %v232 = vadd.f32 0.0, %v231
  %v233 = vpop.f32.mrb[0].mxu0
  %234 = vdwg.mxu0
  %v235 = vadd.f32 %v26, %v221
  %v236 = vadd.f32 %v27, %v224
  %v237 = vadd.f32 %v28, %v229
  %v238 = vadd.f32 %v29, %v232
  %239 = vst [vmem:[#allocation2] sm:$0xff] %v235
  %240 = vst [vmem:[#allocation2 + $0x8] sm:$0xff] %v236
  %241 = vst [vmem:[#allocation2 + $0x10] sm:$0xff] %v237
  %242 = vst [vmem:[#allocation2 + $0x18] sm:$0xff] %v238
  // Predicated region
  $region18: #{_lambda_.11} parent=0 // pred_check
    %p243 = pneg %p17
  $region19: #{_lambda_.11} parent=0 // pred_check_branch
    %245 = sbr.rel (%p243) target = $region21
  $region20: #{_lambda_.11} parent=0 // pred_region
    %v246 = vld [vmem:[#allocation2] sm:$0xff]
    %v247 = vld [vmem:[#allocation2 + $0x8] sm:$0xff]
    %v248 = vld [vmem:[#allocation2 + $0x10] sm:$0xff]
    %v249 = vld [vmem:[#allocation2 + $0x18] sm:$0xff]
    %v250 = vld [vmem:[%s2] sm:$0x1]
    %v252 = vlaneseq
    %v253 = vshrl.u32 %v252, 7
    %v254 = vsub.s32 0, %v253
    %v255 = vrot.slane %v250, %v254
    %v257 = vadd.f32 %v246, %v255
    %v258 = vadd.f32 %v247, %v255
    %v259 = vadd.f32 %v248, %v255
    %v260 = vadd.f32 %v249, %v255
    %v261 = vpack.c.bf16 %v258, %v257
    %v262 = vpack.c.bf16 %v260, %v259
    %v265 = vunpack.c.l.b16 %v261
    %v266 = vunpack.c.h.b16 %v261
    %v267 = vunpack.c.l.b16 %v262
    %v268 = vunpack.c.h.b16 %v262
    %v269 = vpack.c.b16 %v265, %v265
    %v270 = vpack.c.b16 %v266, %v266
    %v271 = vpack.c.b16 %v267, %v267
    %v272 = vpack.c.b16 %v268, %v268
    %277 = vst [vmem:[%s3] sm:$0xf] %v269
    %278 = vst [vmem:[%s3 + $0x4] sm:$0xf] %v270
    %279 = vst [vmem:[%s3 + $0x8] sm:$0xf] %v271
    %280 = vst [vmem:[%s3 + $0xc] sm:$0xf] %v272
    %s281 = smul.u32 0, 32
    %v282 = vlaneseq
    %v283 = vshrl.u32 %v282, 7
    %v284 = vadd.s32 %v283, 8
    %v285 = vadd.s32 %v283, 16
    %v286 = vadd.s32 %v283, 24
    %v287 = vstv %s281
    %v288 = vadd.s32 %v287, %v283
    %v289 = vadd.s32 %v287, %v284
    %v290 = vadd.s32 %v287, %v285
    %v291 = vadd.s32 %v287, %v286
    %vm292 = vcmp.lt.s32.totalorder %v288, 32
    %vm293 = vcmp.lt.s32.totalorder %v289, 32
    %vm294 = vcmp.lt.s32.totalorder %v290, 32
    %vm295 = vcmp.lt.s32.totalorder %v291, 32
    %v296 = vsel %vm292, 1, 0
    %v297 = vsel %vm293, 1, 0
    %v298 = vsel %vm294, 1, 0
    %v299 = vsel %vm295, 1, 0
    %vm300 = vcmp.eq.s32.totalorder %v296, 1
    %vm301 = vcmp.eq.s32.totalorder %v297, 1
    %vm302 = vcmp.eq.s32.totalorder %v298, 1
    %vm303 = vcmp.eq.s32.totalorder %v299, 1
    %v304 = vsel %vm300, %v257, 0.0
    %v305 = vsel %vm301, %v258, 0.0
    %v306 = vsel %vm302, %v259, 0.0
    %v307 = vsel %vm303, %v260, 0.0
    %v308 = vadd.f32 %v304, %v305
    %v309 = vadd.f32 %v308, %v306
    %v310 = vadd.f32 %v309, %v307
    %v311 = vrot.slane %v310, 4
    %v312 = vadd.f32 %v310, %v311
    %v313 = vrot.slane %v312, 2
    %v314 = vadd.f32 %v312, %v313
    %v315 = vrot.slane %v314, 1
    %v316 = vadd.f32 %v314, %v315
    %v317 = vmul.f32 %v304, %v304
    %v318 = vmul.f32 %v305, %v305
    %v319 = vmul.f32 %v306, %v306
    %v320 = vmul.f32 %v307, %v307
    %v321 = vadd.f32 %v317, %v318
    %v322 = vadd.f32 %v321, %v319
    %v323 = vadd.f32 %v322, %v320
    %v324 = vrot.slane %v323, 4
    %v325 = vadd.f32 %v323, %v324
    %v326 = vrot.slane %v325, 2
    %v327 = vadd.f32 %v325, %v326
    %v328 = vrot.slane %v327, 1
    %v329 = vadd.f32 %v327, %v328
    %vm330 = vcmask 1040384
    %v331 = vsel %vm330, %v316, %v329
    %332 = vst [vmem:[%s4] sm:$0x3] %v331
  $region21: #{_lambda_.11} parent=0 // pred_fallthru
    _
  // Predicated region
  $region22: #{_lambda_.11} parent=0 // pred_check
    _
  $region23: #{_lambda_.11} parent=0 // pred_check_branch
    %334 = sbr.rel (0) target = $region25
  $region24: #{_lambda_.11} parent=0 // pred_region
    _
  $region25: #{_lambda_.11} parent=0 // pred_fallthru
    _
  // Predicated region
  $region26: #{_lambda_.11} parent=0 // pred_check
    _
  $region27: #{_lambda_.11} parent=0 // pred_check_branch
    %336 = sbr.rel (0) target = $region29
  $region28: #{_lambda_.11} parent=0 // pred_region
    _
  $region29: #{_lambda_.11} parent=0 // pred_fallthru
    _
  // Predicated region
  $region30: #{_lambda_.11} parent=0 // pred_check
    _
  $region31: #{_lambda_.11} parent=0 // pred_check_branch
    %338 = sbr.rel (0) target = $region33
  $region32: #{_lambda_.11} parent=0 // pred_region
    _
  $region33: #{_lambda_.11} parent=0 // pred_fallthru
    _
  // Predicated region
  $region34: #{_lambda_.11} parent=0 // pred_check
    _
  $region35: #{_lambda_.11} parent=0 // pred_check_branch
    %340 = sbr.rel (0) target = $region37
  $region36: #{_lambda_.11} parent=0 // pred_region
    _
  $region37: #{_lambda_.11} parent=0 // pred_fallthru
    _

// kernel: _lambda_.13
$region0: #{_lambda_.13}
  #allocation0 [shape = 'u32[]', space=smem, size = 0x4, offset = 0x4, fixed_abs, tag = 'smem constant byte address 0x4 - core index']
  #allocation1 [shape = 'u32[144,128]{1,0:T(1,128)}', space=vmem, size = 0x12000, scoped, tag = 'internal scratch']
  #allocation2 [shape = 'f32[32,128]{1,0:T(8,128)}', space=vmem, size = 0x4000, scoped, tag = 'scratch operand']
  %s0 = inlined_call_operand.vmem [shape: bf16[32,512], index: 0, kind: input, shape index: {}]
  %s1 = inlined_call_operand.vmem [shape: bf16[512,128], index: 1, kind: input, shape index: {}]
  %s2 = inlined_call_operand.vmem [shape: f32[1,128], index: 2, kind: input, shape index: {}]
  %s3 = inlined_call_operand.vmem [shape: bf16[32,128], index: 3, kind: output, shape index: {0}]
  %s4 = inlined_call_operand.vmem [shape: f32[1,2,128], index: 4, kind: output, shape index: {1}]
  %5 = xla_tuple %s3, %s4
  %s6 = sld [smem:[#allocation0]]
  $region38: #{_lambda_.13} parent=0
    _
  %s8 = ssub.s32 1, %s6
  %s9 = scalar_select 0, %s8, %s6
  // Predicated region
  $region2: #{_lambda_.13} parent=0 // pred_check
    _
  $region3: #{_lambda_.13} parent=0 // pred_check_branch
    %11 = sbr.rel (0) target = $region5
  $region4: #{_lambda_.13} parent=0 // pred_region
    _
  $region5: #{_lambda_.13} parent=0 // pred_fallthru
    _
  // Predicated region
  $region6: #{_lambda_.13} parent=0 // pred_check
    _
  $region7: #{_lambda_.13} parent=0 // pred_check_branch
    %13 = sbr.rel (0) target = $region9
  $region8: #{_lambda_.13} parent=0 // pred_region
    _
  $region9: #{_lambda_.13} parent=0 // pred_fallthru
    _
  // Predicated region
  $region10: #{_lambda_.13} parent=0 // pred_check
    _
  $region11: #{_lambda_.13} parent=0 // pred_check_branch
    %15 = sbr.rel (0) target = $region13
  $region12: #{_lambda_.13} parent=0 // pred_region
    _
  $region13: #{_lambda_.13} parent=0 // pred_fallthru
    _
  %p17 = scmp.eq.s32.totalorder 0, 0
  // Predicated region
  $region14: #{_lambda_.13} parent=0 // pred_check
    %p18 = pneg %p17
  $region15: #{_lambda_.13} parent=0 // pred_check_branch
    %20 = sbr.rel (%p18) target = $region17
  $region16: #{_lambda_.13} parent=0 // pred_region
    %21 = vst [vmem:[#allocation2] sm:$0xff] 0.0
    %22 = vst [vmem:[#allocation2 + $0x8] sm:$0xff] 0.0
    %23 = vst [vmem:[#allocation2 + $0x10] sm:$0xff] 0.0
    %24 = vst [vmem:[#allocation2 + $0x18] sm:$0xff] 0.0
  $region17: #{_lambda_.13} parent=0 // pred_fallthru
    _
  %s25 = smul.u32 0, 512
  %v26 = vld [vmem:[#allocation2] sm:$0xff]
  %v27 = vld [vmem:[#allocation2 + $0x8] sm:$0xff]
  %v28 = vld [vmem:[#allocation2 + $0x10] sm:$0xff]
  %v29 = vld [vmem:[#allocation2 + $0x18] sm:$0xff]
  %v30 = vld [vmem:[%s0] sm:$0xff]
  %v31 = vld [vmem:[%s0 + $0x8] sm:$0xff]
  %v32 = vld [vmem:[%s0 + $0x10] sm:$0xff]
  %v33 = vld [vmem:[%s0 + $0x18] sm:$0xff]
  %v34 = vld [vmem:[%s0 + $0x20] sm:$0xff]
  %v35 = vld [vmem:[%s0 + $0x28] sm:$0xff]
  %v36 = vld [vmem:[%s0 + $0x30] sm:$0xff]
  %v37 = vld [vmem:[%s0 + $0x38] sm:$0xff]
  %s38 = sshra.s32 %s25, 3
  %s39 = sand.u32 %s25, 7
  %s40 = smul.addr %s38, 4
  %s41 = scalar_lea.vmem %s1, %s40
  %v42 = vld [vmem:[%s41] sm:$0xf]
  %v43 = vld [vmem:[%s41 + $0x4] sm:$0xf]
  %v44 = vld [vmem:[%s41 + $0x8] sm:$0xf]
  %v45 = vld [vmem:[%s41 + $0xc] sm:$0xf]
  %v46 = vld [vmem:[%s41 + $0x10] sm:$0xf]
  %v47 = vld [vmem:[%s41 + $0x14] sm:$0xf]
  %v48 = vld [vmem:[%s41 + $0x18] sm:$0xf]
  %v49 = vld [vmem:[%s41 + $0x1c] sm:$0xf]
  %v50 = vld [vmem:[%s41 + $0x20] sm:$0xf]
  %v51 = vld [vmem:[%s41 + $0x24] sm:$0xf]
  %v52 = vld [vmem:[%s41 + $0x28] sm:$0xf]
  %v53 = vld [vmem:[%s41 + $0x2c] sm:$0xf]
  %v54 = vld [vmem:[%s41 + $0x30] sm:$0xf]
  %v55 = vld [vmem:[%s41 + $0x34] sm:$0xf]
  %v56 = vld [vmem:[%s41 + $0x38] sm:$0xf]
  %v57 = vld [vmem:[%s41 + $0x3c] sm:$0xf]
  %v58 = vld [vmem:[%s41 + $0x40] sm:$0xf]
  %v59 = vld [vmem:[%s41 + $0x44] sm:$0xf]
  %v60 = vld [vmem:[%s41 + $0x48] sm:$0xf]
  %v61 = vld [vmem:[%s41 + $0x4c] sm:$0xf]
  %v62 = vld [vmem:[%s41 + $0x50] sm:$0xf]
  %v63 = vld [vmem:[%s41 + $0x54] sm:$0xf]
  %v64 = vld [vmem:[%s41 + $0x58] sm:$0xf]
  %v65 = vld [vmem:[%s41 + $0x5c] sm:$0xf]
  %v66 = vld [vmem:[%s41 + $0x60] sm:$0xf]
  %v67 = vld [vmem:[%s41 + $0x64] sm:$0xf]
  %v68 = vld [vmem:[%s41 + $0x68] sm:$0xf]
  %v69 = vld [vmem:[%s41 + $0x6c] sm:$0xf]
  %v70 = vld [vmem:[%s41 + $0x70] sm:$0xf]
  %v71 = vld [vmem:[%s41 + $0x74] sm:$0xf]
  %v72 = vld [vmem:[%s41 + $0x78] sm:$0xf]
  %v73 = vld [vmem:[%s41 + $0x7c] sm:$0xf]
  %v74 = vld [vmem:[%s41 + $0x80] sm:$0xf]
  %v75 = vld [vmem:[%s41 + $0x84] sm:$0xf]
  %v76 = vld [vmem:[%s41 + $0x88] sm:$0xf]
  %v77 = vld [vmem:[%s41 + $0x8c] sm:$0xf]
  %v78 = vld [vmem:[%s41 + $0x90] sm:$0xf]
  %v79 = vld [vmem:[%s41 + $0x94] sm:$0xf]
  %v80 = vld [vmem:[%s41 + $0x98] sm:$0xf]
  %v81 = vld [vmem:[%s41 + $0x9c] sm:$0xf]
  %v82 = vld [vmem:[%s41 + $0xa0] sm:$0xf]
  %v83 = vld [vmem:[%s41 + $0xa4] sm:$0xf]
  %v84 = vld [vmem:[%s41 + $0xa8] sm:$0xf]
  %v85 = vld [vmem:[%s41 + $0xac] sm:$0xf]
  %v86 = vld [vmem:[%s41 + $0xb0] sm:$0xf]
  %v87 = vld [vmem:[%s41 + $0xb4] sm:$0xf]
  %v88 = vld [vmem:[%s41 + $0xb8] sm:$0xf]
  %v89 = vld [vmem:[%s41 + $0xbc] sm:$0xf]
  %v90 = vld [vmem:[%s41 + $0xc0] sm:$0xf]
  %v91 = vld [vmem:[%s41 + $0xc4] sm:$0xf]
  %v92 = vld [vmem:[%s41 + $0xc8] sm:$0xf]
  %v93 = vld [vmem:[%s41 + $0xcc] sm:$0xf]
  %v94 = vld [vmem:[%s41 + $0xd0] sm:$0xf]
  %v95 = vld [vmem:[%s41 + $0xd4] sm:$0xf]
  %v96 = vld [vmem:[%s41 + $0xd8] sm:$0xf]
  %v97 = vld [vmem:[%s41 + $0xdc] sm:$0xf]
  %v98 = vld [vmem:[%s41 + $0xe0] sm:$0xf]
  %v99 = vld [vmem:[%s41 + $0xe4] sm:$0xf]
  %v100 = vld [vmem:[%s41 + $0xe8] sm:$0xf]
  %v101 = vld [vmem:[%s41 + $0xec] sm:$0xf]
  %v102 = vld [vmem:[%s41 + $0xf0] sm:$0xf]
  %v103 = vld [vmem:[%s41 + $0xf4] sm:$0xf]
  %v104 = vld [vmem:[%s41 + $0xf8] sm:$0xf]
  %v105 = vld [vmem:[%s41 + $0xfc] sm:$0xf]
  %v114 = vunpack.c.l.b16 %v30
  %v115 = vunpack.c.h.b16 %v30
  %v116 = vunpack.c.l.b16 %v31
  %v117 = vunpack.c.h.b16 %v31
  %v118 = vunpack.c.l.b16 %v32
  %v119 = vunpack.c.h.b16 %v32
  %v120 = vunpack.c.l.b16 %v33
  %v121 = vunpack.c.h.b16 %v33
  %v122 = vunpack.c.l.b16 %v34
  %v123 = vunpack.c.h.b16 %v34
  %v124 = vunpack.c.l.b16 %v35
  %v125 = vunpack.c.h.b16 %v35
  %v126 = vunpack.c.l.b16 %v36
  %v127 = vunpack.c.h.b16 %v36
  %v128 = vunpack.c.l.b16 %v37
  %v129 = vunpack.c.h.b16 %v37
  %v130 = vpack.c.b16 %v118, %v114
  %v131 = vpack.c.b16 %v119, %v115
  %v132 = vpack.c.b16 %v120, %v116
  %v133 = vpack.c.b16 %v121, %v117
  %v134 = vpack.c.b16 %v126, %v122
  %v135 = vpack.c.b16 %v127, %v123
  %v136 = vpack.c.b16 %v128, %v124
  %v137 = vpack.c.b16 %v129, %v125
  %v210 = vunpack.c.l.b16 %v42
  %v211 = vunpack.c.l.b16 %v43
  %v212 = vunpack.c.l.b16 %v44
  %v213 = vunpack.c.l.b16 %v45
  %v214 = vunpack.c.l.b16 %v46
  %v215 = vunpack.c.l.b16 %v47
  %v216 = vunpack.c.l.b16 %v48
  %v217 = vunpack.c.l.b16 %v49
  %v218 = vunpack.c.l.b16 %v50
  %v219 = vunpack.c.l.b16 %v51
  %v220 = vunpack.c.l.b16 %v52
  %v221 = vunpack.c.l.b16 %v53
  %v222 = vunpack.c.l.b16 %v54
  %v223 = vunpack.c.l.b16 %v55
  %v224 = vunpack.c.l.b16 %v56
  %v225 = vunpack.c.l.b16 %v57
  %v226 = vunpack.c.l.b16 %v58
  %v227 = vunpack.c.l.b16 %v59
  %v228 = vunpack.c.l.b16 %v60
  %v229 = vunpack.c.l.b16 %v61
  %v230 = vunpack.c.l.b16 %v62
  %v231 = vunpack.c.l.b16 %v63
  %v232 = vunpack.c.l.b16 %v64
  %v233 = vunpack.c.l.b16 %v65
  %v234 = vunpack.c.l.b16 %v66
  %v235 = vunpack.c.l.b16 %v67
  %v236 = vunpack.c.l.b16 %v68
  %v237 = vunpack.c.l.b16 %v69
  %v238 = vunpack.c.l.b16 %v70
  %v239 = vunpack.c.l.b16 %v71
  %v240 = vunpack.c.l.b16 %v72
  %v241 = vunpack.c.l.b16 %v73
  %v242 = vunpack.c.l.b16 %v74
  %v243 = vunpack.c.l.b16 %v75
  %v244 = vunpack.c.l.b16 %v76
  %v245 = vunpack.c.l.b16 %v77
  %v246 = vunpack.c.l.b16 %v78
  %v247 = vunpack.c.l.b16 %v79
  %v248 = vunpack.c.l.b16 %v80
  %v249 = vunpack.c.l.b16 %v81
  %v250 = vunpack.c.l.b16 %v82
  %v251 = vunpack.c.l.b16 %v83
  %v252 = vunpack.c.l.b16 %v84
  %v253 = vunpack.c.l.b16 %v85
  %v254 = vunpack.c.l.b16 %v86
  %v255 = vunpack.c.l.b16 %v87
  %v256 = vunpack.c.l.b16 %v88
  %v257 = vunpack.c.l.b16 %v89
  %v258 = vunpack.c.l.b16 %v90
  %v259 = vunpack.c.l.b16 %v91
  %v260 = vunpack.c.l.b16 %v92
  %v261 = vunpack.c.l.b16 %v93
  %v262 = vunpack.c.l.b16 %v94
  %v263 = vunpack.c.l.b16 %v95
  %v264 = vunpack.c.l.b16 %v96
  %v265 = vunpack.c.l.b16 %v97
  %v266 = vunpack.c.l.b16 %v98
  %v267 = vunpack.c.l.b16 %v99
  %v268 = vunpack.c.l.b16 %v100
  %v269 = vunpack.c.l.b16 %v101
  %v270 = vunpack.c.l.b16 %v102
  %v271 = vunpack.c.l.b16 %v103
  %v272 = vunpack.c.l.b16 %v104
  %v273 = vunpack.c.l.b16 %v105
  %v274 = vpack.c.b16 %v211, %v210
  %v275 = vpack.c.b16 %v213, %v212
  %v276 = vpack.c.b16 %v215, %v214
  %v277 = vpack.c.b16 %v217, %v216
  %v278 = vpack.c.b16 %v219, %v218
  %v279 = vpack.c.b16 %v221, %v220
  %v280 = vpack.c.b16 %v223, %v222
  %v281 = vpack.c.b16 %v225, %v224
  %v282 = vpack.c.b16 %v227, %v226
  %v283 = vpack.c.b16 %v229, %v228
  %v284 = vpack.c.b16 %v231, %v230
  %v285 = vpack.c.b16 %v233, %v232
  %v286 = vpack.c.b16 %v235, %v234
  %v287 = vpack.c.b16 %v237, %v236
  %v288 = vpack.c.b16 %v239, %v238
  %v289 = vpack.c.b16 %v241, %v240
  %v290 = vpack.c.b16 %v243, %v242
  %v291 = vpack.c.b16 %v245, %v244
  %v292 = vpack.c.b16 %v247, %v246
  %v293 = vpack.c.b16 %v249, %v248
  %v294 = vpack.c.b16 %v251, %v250
  %v295 = vpack.c.b16 %v253, %v252
  %v296 = vpack.c.b16 %v255, %v254
  %v297 = vpack.c.b16 %v257, %v256
  %v298 = vpack.c.b16 %v259, %v258
  %v299 = vpack.c.b16 %v261, %v260
  %v300 = vpack.c.b16 %v263, %v262
  %v301 = vpack.c.b16 %v265, %v264
  %v302 = vpack.c.b16 %v267, %v266
  %v303 = vpack.c.b16 %v269, %v268
  %v304 = vpack.c.b16 %v271, %v270
  %v305 = vpack.c.b16 %v273, %v272
  %338 = vmatprep.subr.bf16.mxu0 0
  %339 = vmatpush1.bf16.msra.mxu0 %v274
  %340 = vmatprep.subr.bf16.mxu0 0
  %341 = vmatpush1.bf16.msra.mxu0 %v275
  %342 = vmatprep.subr.bf16.mxu0 0
  %343 = vmatpush1.bf16.msra.mxu0 %v276
  %344 = vmatprep.subr.bf16.mxu0 0
  %345 = vmatpush1.bf16.msra.mxu0 %v277
  %346 = vmatprep.subr.bf16.mxu0 0
  %347 = vmatpush1.bf16.msra.mxu0 %v278
  %348 = vmatprep.subr.bf16.mxu0 0
  %349 = vmatpush1.bf16.msra.mxu0 %v279
  %350 = vmatprep.subr.bf16.mxu0 0
  %351 = vmatpush1.bf16.msra.mxu0 %v280
  %352 = vmatprep.subr.bf16.mxu0 0
  %353 = vmatpush1.bf16.msra.mxu0 %v281
  %354 = vmatprep.subr.bf16.mxu0 0
  %355 = vmatpush1.bf16.msra.mxu0 %v282
  %356 = vmatprep.subr.bf16.mxu0 0
  %357 = vmatpush1.bf16.msra.mxu0 %v283
  %358 = vmatprep.subr.bf16.mxu0 0
  %359 = vmatpush1.bf16.msra.mxu0 %v284
  %360 = vmatprep.subr.bf16.mxu0 0
  %361 = vmatpush1.bf16.msra.mxu0 %v285
  %362 = vmatprep.subr.bf16.mxu0 0
  %363 = vmatpush1.bf16.msra.mxu0 %v286
  %364 = vmatprep.subr.bf16.mxu0 0
  %365 = vmatpush1.bf16.msra.mxu0 %v287
  %366 = vmatprep.subr.bf16.mxu0 0
  %367 = vmatpush1.bf16.msra.mxu0 %v288
  %368 = vmatprep.subr.bf16.mxu0 0
  %369 = vmatpush1.bf16.msra.mxu0 %v289
  %370 = vmatprep.mubr.bf16.mxu0 %v131
  %371 = vmatmul.mubr.bf16.gmra.mrb[0].mxu0 %v130
  %v372 = vpop.f32.mrb[0].mxu0
  %v373 = vadd.f32 0.0, %v372
  %v374 = vpop.f32.mrb[0].mxu0
  %v375 = vpop.f32.mrb[0].mxu0
  %v376 = vadd.f32 0.0, %v375
  %v377 = vpop.f32.mrb[0].mxu0
  %378 = vmatprep.mubr.bf16.mxu0 %v135
  %379 = vmatmul.mubr.bf16.gmra.mrb[0].mxu0 %v134
  %v380 = vpop.f32.mrb[0].mxu0
  %v381 = vadd.f32 0.0, %v380
  %v382 = vpop.f32.mrb[0].mxu0
  %v383 = vpop.f32.mrb[0].mxu0
  %v384 = vadd.f32 0.0, %v383
  %v385 = vpop.f32.mrb[0].mxu0
  %386 = vdwg.mxu0
  %387 = vmatprep.subr.bf16.mxu0 0
  %388 = vmatpush1.bf16.msra.mxu0 %v290
  %389 = vmatprep.subr.bf16.mxu0 0
  %390 = vmatpush1.bf16.msra.mxu0 %v291
  %391 = vmatprep.subr.bf16.mxu0 0
  %392 = vmatpush1.bf16.msra.mxu0 %v292
  %393 = vmatprep.subr.bf16.mxu0 0
  %394 = vmatpush1.bf16.msra.mxu0 %v293
  %395 = vmatprep.subr.bf16.mxu0 0
  %396 = vmatpush1.bf16.msra.mxu0 %v294
  %397 = vmatprep.subr.bf16.mxu0 0
  %398 = vmatpush1.bf16.msra.mxu0 %v295
  %399 = vmatprep.subr.bf16.mxu0 0
  %400 = vmatpush1.bf16.msra.mxu0 %v296
  %401 = vmatprep.subr.bf16.mxu0 0
  %402 = vmatpush1.bf16.msra.mxu0 %v297
  %403 = vmatprep.subr.bf16.mxu0 0
  %404 = vmatpush1.bf16.msra.mxu0 %v298
  %405 = vmatprep.subr.bf16.mxu0 0
  %406 = vmatpush1.bf16.msra.mxu0 %v299
  %407 = vmatprep.subr.bf16.mxu0 0
  %408 = vmatpush1.bf16.msra.mxu0 %v300
  %409 = vmatprep.subr.bf16.mxu0 0
  %410 = vmatpush1.bf16.msra.mxu0 %v301
  %411 = vmatprep.subr.bf16.mxu0 0
  %412 = vmatpush1.bf16.msra.mxu0 %v302
  %413 = vmatprep.subr.bf16.mxu0 0
  %414 = vmatpush1.bf16.msra.mxu0 %v303
  %415 = vmatprep.subr.bf16.mxu0 0
  %416 = vmatpush1.bf16.msra.mxu0 %v304
  %417 = vmatprep.subr.bf16.mxu0 0
  %418 = vmatpush1.bf16.msra.mxu0 %v305
  %419 = vmatprep.mubr.bf16.mxu0 %v133
  %420 = vmatmul.mubr.bf16.gmra.mrb[0].mxu0 %v132
  %v421 = vpop.f32.mrb[0].mxu0
  %v422 = vadd.f32 %v373, %v421
  %v423 = vpop.f32.mrb[0].mxu0
  %v424 = vpop.f32.mrb[0].mxu0
  %v425 = vadd.f32 %v376, %v424
  %v426 = vpop.f32.mrb[0].mxu0
  %427 = vmatprep.mubr.bf16.mxu0 %v137
  %428 = vmatmul.mubr.bf16.gmra.mrb[0].mxu0 %v136
  %v429 = vpop.f32.mrb[0].mxu0
  %v430 = vadd.f32 %v381, %v429
  %v431 = vpop.f32.mrb[0].mxu0
  %v432 = vpop.f32.mrb[0].mxu0
  %v433 = vadd.f32 %v384, %v432
  %v434 = vpop.f32.mrb[0].mxu0
  %435 = vdwg.mxu0
  %v436 = vadd.f32 %v26, %v422
  %v437 = vadd.f32 %v27, %v425
  %v438 = vadd.f32 %v28, %v430
  %v439 = vadd.f32 %v29, %v433
  %440 = vst [vmem:[#allocation2] sm:$0xff] %v436
  %441 = vst [vmem:[#allocation2 + $0x8] sm:$0xff] %v437
  %442 = vst [vmem:[#allocation2 + $0x10] sm:$0xff] %v438
  %443 = vst [vmem:[#allocation2 + $0x18] sm:$0xff] %v439
  // Predicated region
  $region18: #{_lambda_.13} parent=0 // pred_check
    %p444 = pneg %p17
  $region19: #{_lambda_.13} parent=0 // pred_check_branch
    %446 = sbr.rel (%p444) target = $region21
  $region20: #{_lambda_.13} parent=0 // pred_region
    %v447 = vld [vmem:[#allocation2] sm:$0xff]
    %v448 = vld [vmem:[#allocation2 + $0x8] sm:$0xff]
    %v449 = vld [vmem:[#allocation2 + $0x10] sm:$0xff]
    %v450 = vld [vmem:[#allocation2 + $0x18] sm:$0xff]
    %v451 = vld [vmem:[%s2] sm:$0x1]
    %v453 = vlaneseq
    %v454 = vshrl.u32 %v453, 7
    %v455 = vsub.s32 0, %v454
    %v456 = vrot.slane %v451, %v455
    %v458 = vadd.f32 %v447, %v456
    %v459 = vadd.f32 %v448, %v456
    %v460 = vadd.f32 %v449, %v456
    %v461 = vadd.f32 %v450, %v456
    %v462 = vpack.c.bf16 %v459, %v458
    %v463 = vpack.c.bf16 %v461, %v460
    %v466 = vunpack.c.l.b16 %v462
    %v467 = vunpack.c.h.b16 %v462
    %v468 = vunpack.c.l.b16 %v463
    %v469 = vunpack.c.h.b16 %v463
    %v470 = vpack.c.b16 %v466, %v466
    %v471 = vpack.c.b16 %v467, %v467
    %v472 = vpack.c.b16 %v468, %v468
    %v473 = vpack.c.b16 %v469, %v469
    %478 = vst [vmem:[%s3] sm:$0xf] %v470
    %479 = vst [vmem:[%s3 + $0x4] sm:$0xf] %v471
    %480 = vst [vmem:[%s3 + $0x8] sm:$0xf] %v472
    %481 = vst [vmem:[%s3 + $0xc] sm:$0xf] %v473
    %s482 = smul.u32 0, 32
    %v483 = vlaneseq
    %v484 = vshrl.u32 %v483, 7
    %v485 = vadd.s32 %v484, 8
    %v486 = vadd.s32 %v484, 16
    %v487 = vadd.s32 %v484, 24
    %v488 = vstv %s482
    %v489 = vadd.s32 %v488, %v484
    %v490 = vadd.s32 %v488, %v485
    %v491 = vadd.s32 %v488, %v486
    %v492 = vadd.s32 %v488, %v487
    %vm493 = vcmp.lt.s32.totalorder %v489, 18
    %vm494 = vcmp.lt.s32.totalorder %v490, 18
    %vm495 = vcmp.lt.s32.totalorder %v491, 18
    %vm496 = vcmp.lt.s32.totalorder %v492, 18
    %v497 = vsel %vm493, 1, 0
    %v498 = vsel %vm494, 1, 0
    %v499 = vsel %vm495, 1, 0
    %v500 = vsel %vm496, 1, 0
    %vm501 = vcmp.eq.s32.totalorder %v497, 1
    %vm502 = vcmp.eq.s32.totalorder %v498, 1
    %vm503 = vcmp.eq.s32.totalorder %v499, 1
    %vm504 = vcmp.eq.s32.totalorder %v500, 1
    %v505 = vsel %vm501, %v458, 0.0
    %v506 = vsel %vm502, %v459, 0.0
    %v507 = vsel %vm503, %v460, 0.0
    %v508 = vsel %vm504, %v461, 0.0
    %v509 = vadd.f32 %v505, %v506
    %v510 = vadd.f32 %v509, %v507
    %v511 = vadd.f32 %v510, %v508
    %v512 = vrot.slane %v511, 4
    %v513 = vadd.f32 %v511, %v512
    %v514 = vrot.slane %v513, 2
    %v515 = vadd.f32 %v513, %v514
    %v516 = vrot.slane %v515, 1
    %v517 = vadd.f32 %v515, %v516
    %v518 = vmul.f32 %v505, %v505
    %v519 = vmul.f32 %v506, %v506
    %v520 = vmul.f32 %v507, %v507
    %v521 = vmul.f32 %v508, %v508
    %v522 = vadd.f32 %v518, %v519
    %v523 = vadd.f32 %v522, %v520
    %v524 = vadd.f32 %v523, %v521
    %v525 = vrot.slane %v524, 4
    %v526 = vadd.f32 %v524, %v525
    %v527 = vrot.slane %v526, 2
    %v528 = vadd.f32 %v526, %v527
    %v529 = vrot.slane %v528, 1
    %v530 = vadd.f32 %v528, %v529
    %vm531 = vcmask 1040384
    %v532 = vsel %vm531, %v517, %v530
    %533 = vst [vmem:[%s4] sm:$0x3] %v532
  $region21: #{_lambda_.13} parent=0 // pred_fallthru
    _
  // Predicated region
  $region22: #{_lambda_.13} parent=0 // pred_check
    _
  $region23: #{_lambda_.13} parent=0 // pred_check_branch
    %535 = sbr.rel (0) target = $region25
  $region24: #{_lambda_.13} parent=0 // pred_region
    _
  $region25: #{_lambda_.13} parent=0 // pred_fallthru
    _
  // Predicated region
  $region26: #{_lambda_.13} parent=0 // pred_check
    _
  $region27: #{_lambda_.13} parent=0 // pred_check_branch
    %537 = sbr.rel (0) target = $region29
  $region28: #{_lambda_.13} parent=0 // pred_region
    _
  $region29: #{_lambda_.13} parent=0 // pred_fallthru
    _
  // Predicated region
  $region30: #{_lambda_.13} parent=0 // pred_check
    _
  $region31: #{_lambda_.13} parent=0 // pred_check_branch
    %539 = sbr.rel (0) target = $region33
  $region32: #{_lambda_.13} parent=0 // pred_region
    _
  $region33: #{_lambda_.13} parent=0 // pred_fallthru
    _
  // Predicated region
  $region34: #{_lambda_.13} parent=0 // pred_check
    _
  $region35: #{_lambda_.13} parent=0 // pred_check_branch
    %541 = sbr.rel (0) target = $region37
  $region36: #{_lambda_.13} parent=0 // pred_region
    _
  $region37: #{_lambda_.13} parent=0 // pred_fallthru
    _

// kernel: _lambda_.15
$region0: #{_lambda_.15}
  #allocation0 [shape = 'u32[]', space=smem, size = 0x4, offset = 0x4, fixed_abs, tag = 'smem constant byte address 0x4 - core index']
  #allocation1 [shape = 'u32[144,128]{1,0:T(1,128)}', space=vmem, size = 0x12000, scoped, tag = 'internal scratch']
  #allocation2 [shape = 'f32[16,128]{1,0:T(8,128)}', space=vmem, size = 0x2000, scoped, tag = 'scratch operand']
  %s0 = inlined_call_operand.vmem [shape: bf16[16,1024], index: 0, kind: input, shape index: {}]
  %s1 = inlined_call_operand.vmem [shape: bf16[1024,128], index: 1, kind: input, shape index: {}]
  %s2 = inlined_call_operand.vmem [shape: f32[1,128], index: 2, kind: input, shape index: {}]
  %s3 = inlined_call_operand.vmem [shape: f32[16,128], index: 3, kind: output, shape index: {}]
  %s4 = sld [smem:[#allocation0]]
  $region30: #{_lambda_.15} parent=0
    _
  %s6 = ssub.s32 1, %s4
  %s7 = scalar_select 0, %s6, %s4
  // Predicated region
  $region2: #{_lambda_.15} parent=0 // pred_check
    _
  $region3: #{_lambda_.15} parent=0 // pred_check_branch
    %9 = sbr.rel (0) target = $region5
  $region4: #{_lambda_.15} parent=0 // pred_region
    _
  $region5: #{_lambda_.15} parent=0 // pred_fallthru
    _
  // Predicated region
  $region6: #{_lambda_.15} parent=0 // pred_check
    _
  $region7: #{_lambda_.15} parent=0 // pred_check_branch
    %11 = sbr.rel (0) target = $region9
  $region8: #{_lambda_.15} parent=0 // pred_region
    _
  $region9: #{_lambda_.15} parent=0 // pred_fallthru
    _
  // Predicated region
  $region10: #{_lambda_.15} parent=0 // pred_check
    _
  $region11: #{_lambda_.15} parent=0 // pred_check_branch
    %13 = sbr.rel (0) target = $region13
  $region12: #{_lambda_.15} parent=0 // pred_region
    _
  $region13: #{_lambda_.15} parent=0 // pred_fallthru
    _
  %p15 = scmp.eq.s32.totalorder 0, 0
  // Predicated region
  $region14: #{_lambda_.15} parent=0 // pred_check
    %p16 = pneg %p15
  $region15: #{_lambda_.15} parent=0 // pred_check_branch
    %18 = sbr.rel (%p16) target = $region17
  $region16: #{_lambda_.15} parent=0 // pred_region
    %19 = vst [vmem:[#allocation2] sm:$0xff] 0.0
    %20 = vst [vmem:[#allocation2 + $0x8] sm:$0xff] 0.0
  $region17: #{_lambda_.15} parent=0 // pred_fallthru
    _
  %s21 = smul.u32 0, 1024
  %v22 = vld [vmem:[#allocation2] sm:$0xff]
  %v23 = vld [vmem:[#allocation2 + $0x8] sm:$0xff]
  %v24 = vld [vmem:[%s0] sm:$0xff]
  %v25 = vld [vmem:[%s0 + $0x8] sm:$0xff]
  %v26 = vld [vmem:[%s0 + $0x10] sm:$0xff]
  %v27 = vld [vmem:[%s0 + $0x18] sm:$0xff]
  %v28 = vld [vmem:[%s0 + $0x20] sm:$0xff]
  %v29 = vld [vmem:[%s0 + $0x28] sm:$0xff]
  %v30 = vld [vmem:[%s0 + $0x30] sm:$0xff]
  %v31 = vld [vmem:[%s0 + $0x38] sm:$0xff]
  %s32 = sshra.s32 %s21, 3
  %s33 = sand.u32 %s21, 7
  %s34 = smul.addr %s32, 4
  %s35 = scalar_lea.vmem %s1, %s34
  %v36 = vld [vmem:[%s35] sm:$0xf]
  %v37 = vld [vmem:[%s35 + $0x4] sm:$0xf]
  %v38 = vld [vmem:[%s35 + $0x8] sm:$0xf]
  %v39 = vld [vmem:[%s35 + $0xc] sm:$0xf]
  %v40 = vld [vmem:[%s35 + $0x10] sm:$0xf]
  %v41 = vld [vmem:[%s35 + $0x14] sm:$0xf]
  %v42 = vld [vmem:[%s35 + $0x18] sm:$0xf]
  %v43 = vld [vmem:[%s35 + $0x1c] sm:$0xf]
  %v44 = vld [vmem:[%s35 + $0x20] sm:$0xf]
  %v45 = vld [vmem:[%s35 + $0x24] sm:$0xf]
  %v46 = vld [vmem:[%s35 + $0x28] sm:$0xf]
  %v47 = vld [vmem:[%s35 + $0x2c] sm:$0xf]
  %v48 = vld [vmem:[%s35 + $0x30] sm:$0xf]
  %v49 = vld [vmem:[%s35 + $0x34] sm:$0xf]
  %v50 = vld [vmem:[%s35 + $0x38] sm:$0xf]
  %v51 = vld [vmem:[%s35 + $0x3c] sm:$0xf]
  %v52 = vld [vmem:[%s35 + $0x40] sm:$0xf]
  %v53 = vld [vmem:[%s35 + $0x44] sm:$0xf]
  %v54 = vld [vmem:[%s35 + $0x48] sm:$0xf]
  %v55 = vld [vmem:[%s35 + $0x4c] sm:$0xf]
  %v56 = vld [vmem:[%s35 + $0x50] sm:$0xf]
  %v57 = vld [vmem:[%s35 + $0x54] sm:$0xf]
  %v58 = vld [vmem:[%s35 + $0x58] sm:$0xf]
  %v59 = vld [vmem:[%s35 + $0x5c] sm:$0xf]
  %v60 = vld [vmem:[%s35 + $0x60] sm:$0xf]
  %v61 = vld [vmem:[%s35 + $0x64] sm:$0xf]
  %v62 = vld [vmem:[%s35 + $0x68] sm:$0xf]
  %v63 = vld [vmem:[%s35 + $0x6c] sm:$0xf]
  %v64 = vld [vmem:[%s35 + $0x70] sm:$0xf]
  %v65 = vld [vmem:[%s35 + $0x74] sm:$0xf]
  %v66 = vld [vmem:[%s35 + $0x78] sm:$0xf]
  %v67 = vld [vmem:[%s35 + $0x7c] sm:$0xf]
  %v68 = vld [vmem:[%s35 + $0x80] sm:$0xf]
  %v69 = vld [vmem:[%s35 + $0x84] sm:$0xf]
  %v70 = vld [vmem:[%s35 + $0x88] sm:$0xf]
  %v71 = vld [vmem:[%s35 + $0x8c] sm:$0xf]
  %v72 = vld [vmem:[%s35 + $0x90] sm:$0xf]
  %v73 = vld [vmem:[%s35 + $0x94] sm:$0xf]
  %v74 = vld [vmem:[%s35 + $0x98] sm:$0xf]
  %v75 = vld [vmem:[%s35 + $0x9c] sm:$0xf]
  %v76 = vld [vmem:[%s35 + $0xa0] sm:$0xf]
  %v77 = vld [vmem:[%s35 + $0xa4] sm:$0xf]
  %v78 = vld [vmem:[%s35 + $0xa8] sm:$0xf]
  %v79 = vld [vmem:[%s35 + $0xac] sm:$0xf]
  %v80 = vld [vmem:[%s35 + $0xb0] sm:$0xf]
  %v81 = vld [vmem:[%s35 + $0xb4] sm:$0xf]
  %v82 = vld [vmem:[%s35 + $0xb8] sm:$0xf]
  %v83 = vld [vmem:[%s35 + $0xbc] sm:$0xf]
  %v84 = vld [vmem:[%s35 + $0xc0] sm:$0xf]
  %v85 = vld [vmem:[%s35 + $0xc4] sm:$0xf]
  %v86 = vld [vmem:[%s35 + $0xc8] sm:$0xf]
  %v87 = vld [vmem:[%s35 + $0xcc] sm:$0xf]
  %v88 = vld [vmem:[%s35 + $0xd0] sm:$0xf]
  %v89 = vld [vmem:[%s35 + $0xd4] sm:$0xf]
  %v90 = vld [vmem:[%s35 + $0xd8] sm:$0xf]
  %v91 = vld [vmem:[%s35 + $0xdc] sm:$0xf]
  %v92 = vld [vmem:[%s35 + $0xe0] sm:$0xf]
  %v93 = vld [vmem:[%s35 + $0xe4] sm:$0xf]
  %v94 = vld [vmem:[%s35 + $0xe8] sm:$0xf]
  %v95 = vld [vmem:[%s35 + $0xec] sm:$0xf]
  %v96 = vld [vmem:[%s35 + $0xf0] sm:$0xf]
  %v97 = vld [vmem:[%s35 + $0xf4] sm:$0xf]
  %v98 = vld [vmem:[%s35 + $0xf8] sm:$0xf]
  %v99 = vld [vmem:[%s35 + $0xfc] sm:$0xf]
  %v100 = vld [vmem:[%s35 + $0x100] sm:$0xf]
  %v101 = vld [vmem:[%s35 + $0x104] sm:$0xf]
  %v102 = vld [vmem:[%s35 + $0x108] sm:$0xf]
  %v103 = vld [vmem:[%s35 + $0x10c] sm:$0xf]
  %v104 = vld [vmem:[%s35 + $0x110] sm:$0xf]
  %v105 = vld [vmem:[%s35 + $0x114] sm:$0xf]
  %v106 = vld [vmem:[%s35 + $0x118] sm:$0xf]
  %v107 = vld [vmem:[%s35 + $0x11c] sm:$0xf]
  %v108 = vld [vmem:[%s35 + $0x120] sm:$0xf]
  %v109 = vld [vmem:[%s35 + $0x124] sm:$0xf]
  %v110 = vld [vmem:[%s35 + $0x128] sm:$0xf]
  %v111 = vld [vmem:[%s35 + $0x12c] sm:$0xf]
  %v112 = vld [vmem:[%s35 + $0x130] sm:$0xf]
  %v113 = vld [vmem:[%s35 + $0x134] sm:$0xf]
  %v114 = vld [vmem:[%s35 + $0x138] sm:$0xf]
  %v115 = vld [vmem:[%s35 + $0x13c] sm:$0xf]
  %v116 = vld [vmem:[%s35 + $0x140] sm:$0xf]
  %v117 = vld [vmem:[%s35 + $0x144] sm:$0xf]
  %v118 = vld [vmem:[%s35 + $0x148] sm:$0xf]
  %v119 = vld [vmem:[%s35 + $0x14c] sm:$0xf]
  %v120 = vld [vmem:[%s35 + $0x150] sm:$0xf]
  %v121 = vld [vmem:[%s35 + $0x154] sm:$0xf]
  %v122 = vld [vmem:[%s35 + $0x158] sm:$0xf]
  %v123 = vld [vmem:[%s35 + $0x15c] sm:$0xf]
  %v124 = vld [vmem:[%s35 + $0x160] sm:$0xf]
  %v125 = vld [vmem:[%s35 + $0x164] sm:$0xf]
  %v126 = vld [vmem:[%s35 + $0x168] sm:$0xf]
  %v127 = vld [vmem:[%s35 + $0x16c] sm:$0xf]
  %v128 = vld [vmem:[%s35 + $0x170] sm:$0xf]
  %v129 = vld [vmem:[%s35 + $0x174] sm:$0xf]
  %v130 = vld [vmem:[%s35 + $0x178] sm:$0xf]
  %v131 = vld [vmem:[%s35 + $0x17c] sm:$0xf]
  %v132 = vld [vmem:[%s35 + $0x180] sm:$0xf]
  %v133 = vld [vmem:[%s35 + $0x184] sm:$0xf]
  %v134 = vld [vmem:[%s35 + $0x188] sm:$0xf]
  %v135 = vld [vmem:[%s35 + $0x18c] sm:$0xf]
  %v136 = vld [vmem:[%s35 + $0x190] sm:$0xf]
  %v137 = vld [vmem:[%s35 + $0x194] sm:$0xf]
  %v138 = vld [vmem:[%s35 + $0x198] sm:$0xf]
  %v139 = vld [vmem:[%s35 + $0x19c] sm:$0xf]
  %v140 = vld [vmem:[%s35 + $0x1a0] sm:$0xf]
  %v141 = vld [vmem:[%s35 + $0x1a4] sm:$0xf]
  %v142 = vld [vmem:[%s35 + $0x1a8] sm:$0xf]
  %v143 = vld [vmem:[%s35 + $0x1ac] sm:$0xf]
  %v144 = vld [vmem:[%s35 + $0x1b0] sm:$0xf]
  %v145 = vld [vmem:[%s35 + $0x1b4] sm:$0xf]
  %v146 = vld [vmem:[%s35 + $0x1b8] sm:$0xf]
  %v147 = vld [vmem:[%s35 + $0x1bc] sm:$0xf]
  %v148 = vld [vmem:[%s35 + $0x1c0] sm:$0xf]
  %v149 = vld [vmem:[%s35 + $0x1c4] sm:$0xf]
  %v150 = vld [vmem:[%s35 + $0x1c8] sm:$0xf]
  %v151 = vld [vmem:[%s35 + $0x1cc] sm:$0xf]
  %v152 = vld [vmem:[%s35 + $0x1d0] sm:$0xf]
  %v153 = vld [vmem:[%s35 + $0x1d4] sm:$0xf]
  %v154 = vld [vmem:[%s35 + $0x1d8] sm:$0xf]
  %v155 = vld [vmem:[%s35 + $0x1dc] sm:$0xf]
  %v156 = vld [vmem:[%s35 + $0x1e0] sm:$0xf]
  %v157 = vld [vmem:[%s35 + $0x1e4] sm:$0xf]
  %v158 = vld [vmem:[%s35 + $0x1e8] sm:$0xf]
  %v159 = vld [vmem:[%s35 + $0x1ec] sm:$0xf]
  %v160 = vld [vmem:[%s35 + $0x1f0] sm:$0xf]
  %v161 = vld [vmem:[%s35 + $0x1f4] sm:$0xf]
  %v162 = vld [vmem:[%s35 + $0x1f8] sm:$0xf]
  %v163 = vld [vmem:[%s35 + $0x1fc] sm:$0xf]
  %v172 = vunpack.c.l.b16 %v24
  %v173 = vunpack.c.h.b16 %v24
  %v174 = vunpack.c.l.b16 %v25
  %v175 = vunpack.c.h.b16 %v25
  %v176 = vunpack.c.l.b16 %v26
  %v177 = vunpack.c.h.b16 %v26
  %v178 = vunpack.c.l.b16 %v27
  %v179 = vunpack.c.h.b16 %v27
  %v180 = vunpack.c.l.b16 %v28
  %v181 = vunpack.c.h.b16 %v28
  %v182 = vunpack.c.l.b16 %v29
  %v183 = vunpack.c.h.b16 %v29
  %v184 = vunpack.c.l.b16 %v30
  %v185 = vunpack.c.h.b16 %v30
  %v186 = vunpack.c.l.b16 %v31
  %v187 = vunpack.c.h.b16 %v31
  %v188 = vpack.c.b16 %v180, %v172
  %v189 = vpack.c.b16 %v181, %v173
  %v190 = vpack.c.b16 %v182, %v174
  %v191 = vpack.c.b16 %v183, %v175
  %v192 = vpack.c.b16 %v184, %v176
  %v193 = vpack.c.b16 %v185, %v177
  %v194 = vpack.c.b16 %v186, %v178
  %v195 = vpack.c.b16 %v187, %v179
  %v332 = vunpack.c.l.b16 %v36
  %v333 = vunpack.c.l.b16 %v37
  %v334 = vunpack.c.l.b16 %v38
  %v335 = vunpack.c.l.b16 %v39
  %v336 = vunpack.c.l.b16 %v40
  %v337 = vunpack.c.l.b16 %v41
  %v338 = vunpack.c.l.b16 %v42
  %v339 = vunpack.c.l.b16 %v43
  %v340 = vunpack.c.l.b16 %v44
  %v341 = vunpack.c.l.b16 %v45
  %v342 = vunpack.c.l.b16 %v46
  %v343 = vunpack.c.l.b16 %v47
  %v344 = vunpack.c.l.b16 %v48
  %v345 = vunpack.c.l.b16 %v49
  %v346 = vunpack.c.l.b16 %v50
  %v347 = vunpack.c.l.b16 %v51
  %v348 = vunpack.c.l.b16 %v52
  %v349 = vunpack.c.l.b16 %v53
  %v350 = vunpack.c.l.b16 %v54
  %v351 = vunpack.c.l.b16 %v55
  %v352 = vunpack.c.l.b16 %v56
  %v353 = vunpack.c.l.b16 %v57
  %v354 = vunpack.c.l.b16 %v58
  %v355 = vunpack.c.l.b16 %v59
  %v356 = vunpack.c.l.b16 %v60
  %v357 = vunpack.c.l.b16 %v61
  %v358 = vunpack.c.l.b16 %v62
  %v359 = vunpack.c.l.b16 %v63
  %v360 = vunpack.c.l.b16 %v64
  %v361 = vunpack.c.l.b16 %v65
  %v362 = vunpack.c.l.b16 %v66
  %v363 = vunpack.c.l.b16 %v67
  %v364 = vunpack.c.l.b16 %v68
  %v365 = vunpack.c.l.b16 %v69
  %v366 = vunpack.c.l.b16 %v70
  %v367 = vunpack.c.l.b16 %v71
  %v368 = vunpack.c.l.b16 %v72
  %v369 = vunpack.c.l.b16 %v73
  %v370 = vunpack.c.l.b16 %v74
  %v371 = vunpack.c.l.b16 %v75
  %v372 = vunpack.c.l.b16 %v76
  %v373 = vunpack.c.l.b16 %v77
  %v374 = vunpack.c.l.b16 %v78
  %v375 = vunpack.c.l.b16 %v79
  %v376 = vunpack.c.l.b16 %v80
  %v377 = vunpack.c.l.b16 %v81
  %v378 = vunpack.c.l.b16 %v82
  %v379 = vunpack.c.l.b16 %v83
  %v380 = vunpack.c.l.b16 %v84
  %v381 = vunpack.c.l.b16 %v85
  %v382 = vunpack.c.l.b16 %v86
  %v383 = vunpack.c.l.b16 %v87
  %v384 = vunpack.c.l.b16 %v88
  %v385 = vunpack.c.l.b16 %v89
  %v386 = vunpack.c.l.b16 %v90
  %v387 = vunpack.c.l.b16 %v91
  %v388 = vunpack.c.l.b16 %v92
  %v389 = vunpack.c.l.b16 %v93
  %v390 = vunpack.c.l.b16 %v94
  %v391 = vunpack.c.l.b16 %v95
  %v392 = vunpack.c.l.b16 %v96
  %v393 = vunpack.c.l.b16 %v97
  %v394 = vunpack.c.l.b16 %v98
  %v395 = vunpack.c.l.b16 %v99
  %v396 = vunpack.c.l.b16 %v100
  %v397 = vunpack.c.l.b16 %v101
  %v398 = vunpack.c.l.b16 %v102
  %v399 = vunpack.c.l.b16 %v103
  %v400 = vunpack.c.l.b16 %v104
  %v401 = vunpack.c.l.b16 %v105
  %v402 = vunpack.c.l.b16 %v106
  %v403 = vunpack.c.l.b16 %v107
  %v404 = vunpack.c.l.b16 %v108
  %v405 = vunpack.c.l.b16 %v109
  %v406 = vunpack.c.l.b16 %v110
  %v407 = vunpack.c.l.b16 %v111
  %v408 = vunpack.c.l.b16 %v112
  %v409 = vunpack.c.l.b16 %v113
  %v410 = vunpack.c.l.b16 %v114
  %v411 = vunpack.c.l.b16 %v115
  %v412 = vunpack.c.l.b16 %v116
  %v413 = vunpack.c.l.b16 %v117
  %v414 = vunpack.c.l.b16 %v118
  %v415 = vunpack.c.l.b16 %v119
  %v416 = vunpack.c.l.b16 %v120
  %v417 = vunpack.c.l.b16 %v121
  %v418 = vunpack.c.l.b16 %v122
  %v419 = vunpack.c.l.b16 %v123
  %v420 = vunpack.c.l.b16 %v124
  %v421 = vunpack.c.l.b16 %v125
  %v422 = vunpack.c.l.b16 %v126
  %v423 = vunpack.c.l.b16 %v127
  %v424 = vunpack.c.l.b16 %v128
  %v425 = vunpack.c.l.b16 %v129
  %v426 = vunpack.c.l.b16 %v130
  %v427 = vunpack.c.l.b16 %v131
  %v428 = vunpack.c.l.b16 %v132
  %v429 = vunpack.c.l.b16 %v133
  %v430 = vunpack.c.l.b16 %v134
  %v431 = vunpack.c.l.b16 %v135
  %v432 = vunpack.c.l.b16 %v136
  %v433 = vunpack.c.l.b16 %v137
  %v434 = vunpack.c.l.b16 %v138
  %v435 = vunpack.c.l.b16 %v139
  %v436 = vunpack.c.l.b16 %v140
  %v437 = vunpack.c.l.b16 %v141
  %v438 = vunpack.c.l.b16 %v142
  %v439 = vunpack.c.l.b16 %v143
  %v440 = vunpack.c.l.b16 %v144
  %v441 = vunpack.c.l.b16 %v145
  %v442 = vunpack.c.l.b16 %v146
  %v443 = vunpack.c.l.b16 %v147
  %v444 = vunpack.c.l.b16 %v148
  %v445 = vunpack.c.l.b16 %v149
  %v446 = vunpack.c.l.b16 %v150
  %v447 = vunpack.c.l.b16 %v151
  %v448 = vunpack.c.l.b16 %v152
  %v449 = vunpack.c.l.b16 %v153
  %v450 = vunpack.c.l.b16 %v154
  %v451 = vunpack.c.l.b16 %v155
  %v452 = vunpack.c.l.b16 %v156
  %v453 = vunpack.c.l.b16 %v157
  %v454 = vunpack.c.l.b16 %v158
  %v455 = vunpack.c.l.b16 %v159
  %v456 = vunpack.c.l.b16 %v160
  %v457 = vunpack.c.l.b16 %v161
  %v458 = vunpack.c.l.b16 %v162
  %v459 = vunpack.c.l.b16 %v163
  %v460 = vpack.c.b16 %v333, %v332
  %v461 = vpack.c.b16 %v335, %v334
  %v462 = vpack.c.b16 %v337, %v336
  %v463 = vpack.c.b16 %v339, %v338
  %v464 = vpack.c.b16 %v341, %v340
  %v465 = vpack.c.b16 %v343, %v342
  %v466 = vpack.c.b16 %v345, %v344
  %v467 = vpack.c.b16 %v347, %v346
  %v468 = vpack.c.b16 %v349, %v348
  %v469 = vpack.c.b16 %v351, %v350
  %v470 = vpack.c.b16 %v353, %v352
  %v471 = vpack.c.b16 %v355, %v354
  %v472 = vpack.c.b16 %v357, %v356
  %v473 = vpack.c.b16 %v359, %v358
  %v474 = vpack.c.b16 %v361, %v360
  %v475 = vpack.c.b16 %v363, %v362
  %v476 = vpack.c.b16 %v365, %v364
  %v477 = vpack.c.b16 %v367, %v366
  %v478 = vpack.c.b16 %v369, %v368
  %v479 = vpack.c.b16 %v371, %v370
  %v480 = vpack.c.b16 %v373, %v372
  %v481 = vpack.c.b16 %v375, %v374
  %v482 = vpack.c.b16 %v377, %v376
  %v483 = vpack.c.b16 %v379, %v378
  %v484 = vpack.c.b16 %v381, %v380
  %v485 = vpack.c.b16 %v383, %v382
  %v486 = vpack.c.b16 %v385, %v384
  %v487 = vpack.c.b16 %v387, %v386
  %v488 = vpack.c.b16 %v389, %v388
  %v489 = vpack.c.b16 %v391, %v390
  %v490 = vpack.c.b16 %v393, %v392
  %v491 = vpack.c.b16 %v395, %v394
  %v492 = vpack.c.b16 %v397, %v396
  %v493 = vpack.c.b16 %v399, %v398
  %v494 = vpack.c.b16 %v401, %v400
  %v495 = vpack.c.b16 %v403, %v402
  %v496 = vpack.c.b16 %v405, %v404
  %v497 = vpack.c.b16 %v407, %v406
  %v498 = vpack.c.b16 %v409, %v408
  %v499 = vpack.c.b16 %v411, %v410
  %v500 = vpack.c.b16 %v413, %v412
  %v501 = vpack.c.b16 %v415, %v414
  %v502 = vpack.c.b16 %v417, %v416
  %v503 = vpack.c.b16 %v419, %v418
  %v504 = vpack.c.b16 %v421, %v420
  %v505 = vpack.c.b16 %v423, %v422
  %v506 = vpack.c.b16 %v425, %v424
  %v507 = vpack.c.b16 %v427, %v426
  %v508 = vpack.c.b16 %v429, %v428
  %v509 = vpack.c.b16 %v431, %v430
  %v510 = vpack.c.b16 %v433, %v432
  %v511 = vpack.c.b16 %v435, %v434
  %v512 = vpack.c.b16 %v437, %v436
  %v513 = vpack.c.b16 %v439, %v438
  %v514 = vpack.c.b16 %v441, %v440
  %v515 = vpack.c.b16 %v443, %v442
  %v516 = vpack.c.b16 %v445, %v444
  %v517 = vpack.c.b16 %v447, %v446
  %v518 = vpack.c.b16 %v449, %v448
  %v519 = vpack.c.b16 %v451, %v450
  %v520 = vpack.c.b16 %v453, %v452
  %v521 = vpack.c.b16 %v455, %v454
  %v522 = vpack.c.b16 %v457, %v456
  %v523 = vpack.c.b16 %v459, %v458
  %588 = vmatprep.subr.bf16.mxu0 0
  %589 = vmatpush1.bf16.msra.mxu0 %v460
  %590 = vmatprep.subr.bf16.mxu0 0
  %591 = vmatpush1.bf16.msra.mxu0 %v461
  %592 = vmatprep.subr.bf16.mxu0 0
  %593 = vmatpush1.bf16.msra.mxu0 %v462
  %594 = vmatprep.subr.bf16.mxu0 0
  %595 = vmatpush1.bf16.msra.mxu0 %v463
  %596 = vmatprep.subr.bf16.mxu0 0
  %597 = vmatpush1.bf16.msra.mxu0 %v464
  %598 = vmatprep.subr.bf16.mxu0 0
  %599 = vmatpush1.bf16.msra.mxu0 %v465
  %600 = vmatprep.subr.bf16.mxu0 0
  %601 = vmatpush1.bf16.msra.mxu0 %v466
  %602 = vmatprep.subr.bf16.mxu0 0
  %603 = vmatpush1.bf16.msra.mxu0 %v467
  %604 = vmatprep.subr.bf16.mxu0 0
  %605 = vmatpush1.bf16.msra.mxu0 %v468
  %606 = vmatprep.subr.bf16.mxu0 0
  %607 = vmatpush1.bf16.msra.mxu0 %v469
  %608 = vmatprep.subr.bf16.mxu0 0
  %609 = vmatpush1.bf16.msra.mxu0 %v470
  %610 = vmatprep.subr.bf16.mxu0 0
  %611 = vmatpush1.bf16.msra.mxu0 %v471
  %612 = vmatprep.subr.bf16.mxu0 0
  %613 = vmatpush1.bf16.msra.mxu0 %v472
  %614 = vmatprep.subr.bf16.mxu0 0
  %615 = vmatpush1.bf16.msra.mxu0 %v473
  %616 = vmatprep.subr.bf16.mxu0 0
  %617 = vmatpush1.bf16.msra.mxu0 %v474
  %618 = vmatprep.subr.bf16.mxu0 0
  %619 = vmatpush1.bf16.msra.mxu0 %v475
  %620 = vmatprep.mubr.bf16.mxu0 %v189
  %621 = vmatmul.mubr.bf16.gmra.mrb[0].mxu0 %v188
  %v622 = vpop.f32.mrb[0].mxu0
  %v623 = vadd.f32 0.0, %v622
  %v624 = vpop.f32.mrb[0].mxu0
  %v625 = vpop.f32.mrb[0].mxu0
  %v626 = vadd.f32 0.0, %v625
  %v627 = vpop.f32.mrb[0].mxu0
  %628 = vdwg.mxu0
  %629 = vmatprep.subr.bf16.mxu0 0
  %630 = vmatpush1.bf16.msra.mxu0 %v476
  %631 = vmatprep.subr.bf16.mxu0 0
  %632 = vmatpush1.bf16.msra.mxu0 %v477
  %633 = vmatprep.subr.bf16.mxu0 0
  %634 = vmatpush1.bf16.msra.mxu0 %v478
  %635 = vmatprep.subr.bf16.mxu0 0
  %636 = vmatpush1.bf16.msra.mxu0 %v479
  %637 = vmatprep.subr.bf16.mxu0 0
  %638 = vmatpush1.bf16.msra.mxu0 %v480
  %639 = vmatprep.subr.bf16.mxu0 0
  %640 = vmatpush1.bf16.msra.mxu0 %v481
  %641 = vmatprep.subr.bf16.mxu0 0
  %642 = vmatpush1.bf16.msra.mxu0 %v482
  %643 = vmatprep.subr.bf16.mxu0 0
  %644 = vmatpush1.bf16.msra.mxu0 %v483
  %645 = vmatprep.subr.bf16.mxu0 0
  %646 = vmatpush1.bf16.msra.mxu0 %v484
  %647 = vmatprep.subr.bf16.mxu0 0
  %648 = vmatpush1.bf16.msra.mxu0 %v485
  %649 = vmatprep.subr.bf16.mxu0 0
  %650 = vmatpush1.bf16.msra.mxu0 %v486
  %651 = vmatprep.subr.bf16.mxu0 0
  %652 = vmatpush1.bf16.msra.mxu0 %v487
  %653 = vmatprep.subr.bf16.mxu0 0
  %654 = vmatpush1.bf16.msra.mxu0 %v488
  %655 = vmatprep.subr.bf16.mxu0 0
  %656 = vmatpush1.bf16.msra.mxu0 %v489
  %657 = vmatprep.subr.bf16.mxu0 0
  %658 = vmatpush1.bf16.msra.mxu0 %v490
  %659 = vmatprep.subr.bf16.mxu0 0
  %660 = vmatpush1.bf16.msra.mxu0 %v491
  %661 = vmatprep.mubr.bf16.mxu0 %v191
  %662 = vmatmul.mubr.bf16.gmra.mrb[0].mxu0 %v190
  %v663 = vpop.f32.mrb[0].mxu0
  %v664 = vadd.f32 %v623, %v663
  %v665 = vpop.f32.mrb[0].mxu0
  %v666 = vpop.f32.mrb[0].mxu0
  %v667 = vadd.f32 %v626, %v666
  %v668 = vpop.f32.mrb[0].mxu0
  %669 = vdwg.mxu0
  %670 = vmatprep.subr.bf16.mxu0 0
  %671 = vmatpush1.bf16.msra.mxu0 %v492
  %672 = vmatprep.subr.bf16.mxu0 0
  %673 = vmatpush1.bf16.msra.mxu0 %v493
  %674 = vmatprep.subr.bf16.mxu0 0
  %675 = vmatpush1.bf16.msra.mxu0 %v494
  %676 = vmatprep.subr.bf16.mxu0 0
  %677 = vmatpush1.bf16.msra.mxu0 %v495
  %678 = vmatprep.subr.bf16.mxu0 0
  %679 = vmatpush1.bf16.msra.mxu0 %v496
  %680 = vmatprep.subr.bf16.mxu0 0
  %681 = vmatpush1.bf16.msra.mxu0 %v497
  %682 = vmatprep.subr.bf16.mxu0 0
  %683 = vmatpush1.bf16.msra.mxu0 %v498
  %684 = vmatprep.subr.bf16.mxu0 0
  %685 = vmatpush1.bf16.msra.mxu0 %v499
  %686 = vmatprep.subr.bf16.mxu0 0
  %687 = vmatpush1.bf16.msra.mxu0 %v500
  %688 = vmatprep.subr.bf16.mxu0 0
  %689 = vmatpush1.bf16.msra.mxu0 %v501
  %690 = vmatprep.subr.bf16.mxu0 0
  %691 = vmatpush1.bf16.msra.mxu0 %v502
  %692 = vmatprep.subr.bf16.mxu0 0
  %693 = vmatpush1.bf16.msra.mxu0 %v503
  %694 = vmatprep.subr.bf16.mxu0 0
  %695 = vmatpush1.bf16.msra.mxu0 %v504
  %696 = vmatprep.subr.bf16.mxu0 0
  %697 = vmatpush1.bf16.msra.mxu0 %v505
  %698 = vmatprep.subr.bf16.mxu0 0
  %699 = vmatpush1.bf16.msra.mxu0 %v506
  %700 = vmatprep.subr.bf16.mxu0 0
  %701 = vmatpush1.bf16.msra.mxu0 %v507
  %702 = vmatprep.mubr.bf16.mxu0 %v193
  %703 = vmatmul.mubr.bf16.gmra.mrb[0].mxu0 %v192
  %v704 = vpop.f32.mrb[0].mxu0
  %v705 = vadd.f32 %v664, %v704
  %v706 = vpop.f32.mrb[0].mxu0
  %v707 = vpop.f32.mrb[0].mxu0
  %v708 = vadd.f32 %v667, %v707
  %v709 = vpop.f32.mrb[0].mxu0
  %710 = vdwg.mxu0
  %711 = vmatprep.subr.bf16.mxu0 0
  %712 = vmatpush1.bf16.msra.mxu0 %v508
  %713 = vmatprep.subr.bf16.mxu0 0
  %714 = vmatpush1.bf16.msra.mxu0 %v509
  %715 = vmatprep.subr.bf16.mxu0 0
  %716 = vmatpush1.bf16.msra.mxu0 %v510
  %717 = vmatprep.subr.bf16.mxu0 0
  %718 = vmatpush1.bf16.msra.mxu0 %v511
  %719 = vmatprep.subr.bf16.mxu0 0
  %720 = vmatpush1.bf16.msra.mxu0 %v512
  %721 = vmatprep.subr.bf16.mxu0 0
  %722 = vmatpush1.bf16.msra.mxu0 %v513
  %723 = vmatprep.subr.bf16.mxu0 0
  %724 = vmatpush1.bf16.msra.mxu0 %v514
  %725 = vmatprep.subr.bf16.mxu0 0
  %726 = vmatpush1.bf16.msra.mxu0 %v515
  %727 = vmatprep.subr.bf16.mxu0 0
  %728 = vmatpush1.bf16.msra.mxu0 %v516
  %729 = vmatprep.subr.bf16.mxu0 0
  %730 = vmatpush1.bf16.msra.mxu0 %v517
  %731 = vmatprep.subr.bf16.mxu0 0
  %732 = vmatpush1.bf16.msra.mxu0 %v518
  %733 = vmatprep.subr.bf16.mxu0 0
  %734 = vmatpush1.bf16.msra.mxu0 %v519
  %735 = vmatprep.subr.bf16.mxu0 0
  %736 = vmatpush1.bf16.msra.mxu0 %v520
  %737 = vmatprep.subr.bf16.mxu0 0
  %738 = vmatpush1.bf16.msra.mxu0 %v521
  %739 = vmatprep.subr.bf16.mxu0 0
  %740 = vmatpush1.bf16.msra.mxu0 %v522
  %741 = vmatprep.subr.bf16.mxu0 0
  %742 = vmatpush1.bf16.msra.mxu0 %v523
  %743 = vmatprep.mubr.bf16.mxu0 %v195
  %744 = vmatmul.mubr.bf16.gmra.mrb[0].mxu0 %v194
  %v745 = vpop.f32.mrb[0].mxu0
  %v746 = vadd.f32 %v705, %v745
  %v747 = vpop.f32.mrb[0].mxu0
  %v748 = vpop.f32.mrb[0].mxu0
  %v749 = vadd.f32 %v708, %v748
  %v750 = vpop.f32.mrb[0].mxu0
  %751 = vdwg.mxu0
  %v752 = vadd.f32 %v22, %v746
  %v753 = vadd.f32 %v23, %v749
  %754 = vst [vmem:[#allocation2] sm:$0xff] %v752
  %755 = vst [vmem:[#allocation2 + $0x8] sm:$0xff] %v753
  // Predicated region
  $region18: #{_lambda_.15} parent=0 // pred_check
    %p756 = pneg %p15
  $region19: #{_lambda_.15} parent=0 // pred_check_branch
    %758 = sbr.rel (%p756) target = $region21
  $region20: #{_lambda_.15} parent=0 // pred_region
    %v759 = vld [vmem:[#allocation2] sm:$0xff]
    %v760 = vld [vmem:[#allocation2 + $0x8] sm:$0xff]
    %v761 = vld [vmem:[%s2] sm:$0x1]
    %v763 = vlaneseq
    %v764 = vshrl.u32 %v763, 7
    %v765 = vsub.s32 0, %v764
    %v766 = vrot.slane %v761, %v765
    %v768 = vadd.f32 %v759, %v766
    %v769 = vadd.f32 %v760, %v766
    %770 = vst [vmem:[%s3] sm:$0xff] %v768
    %771 = vst [vmem:[%s3 + $0x8] sm:$0xff] %v769
  $region21: #{_lambda_.15} parent=0 // pred_fallthru
    _
  // Predicated region
  $region22: #{_lambda_.15} parent=0 // pred_check
    _
  $region23: #{_lambda_.15} parent=0 // pred_check_branch
    %773 = sbr.rel (0) target = $region25
  $region24: #{_lambda_.15} parent=0 // pred_region
    _
  $region25: #{_lambda_.15} parent=0 // pred_fallthru
    _
  // Predicated region
  $region26: #{_lambda_.15} parent=0 // pred_check
    _
  $region27: #{_lambda_.15} parent=0 // pred_check_branch
    %775 = sbr.rel (0) target = $region29
  $region28: #{_lambda_.15} parent=0 // pred_region
    _
  $region29: #{_lambda_.15} parent=0 // pred_fallthru
    _

</llo_original>
